<compile_context>
chip_gen: v6e
topology: v6e:2x2x1
jax: 0.10.0
libtpu: 0.0.40
codegen_flags: <defaults>
</compile_context>

<pallas_src>
import jax
import jax.numpy as jnp
from jax.experimental import pallas as pl
from jax.experimental.pallas import tpu as pltpu


# --------------------------------------------------------------------------
# Fused kernel: LSTM (packed gates, hoisted input projection) + fc + fc2,
# one batch element per grid step.
# --------------------------------------------------------------------------
def fused_kernel(x_ref, wih_ref, whh_ref, b_ref,
                 fc_w1_ref, fc_b1_ref, fc_bns_ref, fc_bnb_ref,
                 fc_w2_ref, fc_b2_ref,
                 f2_w1_ref, f2_b1_ref, f2_bn1s_ref, f2_bn1b_ref,
                 f2_w2_ref, f2_b2_ref, f2_bn2s_ref, f2_bn2b_ref,
                 f2_w3_ref, f2_b3_ref,
                 out_ref, hs_scr):
    # x_ref:   (T, I)   one batch element (time-major rows)
    # wih_ref: (I, 4H)  packed input weights, gate order i|f|g|o
    # whh_ref: (H, 4H)  packed hidden weights
    # b_ref:   (1, 4H)  combined bias (b_ih + b_hh)
    # out_ref: (1, L)
    # hs_scr:  (T, H)   VMEM scratch for the hidden-state sequence
    T = x_ref.shape[0]
    H = whh_ref.shape[0]

    # ---- LSTM ------------------------------------------------------------
    # Hoisted input projection (+ bias), one lane-dense MXU pass: (T, 4H).
    xw = jnp.dot(x_ref[...], wih_ref[...],
                 preferred_element_type=jnp.float32) + b_ref[...]
    whh = whh_ref[...]

    h = jnp.zeros((1, H), jnp.float32)
    c = jnp.zeros((1, H), jnp.float32)
    for t in range(T):                       # fully unrolled; T static & small
        gates = xw[t:t + 1, :] + jnp.dot(h, whh,
                                         preferred_element_type=jnp.float32)
        i_g = jax.nn.sigmoid(gates[:, 0 * H:1 * H])
        f_g = jax.nn.sigmoid(gates[:, 1 * H:2 * H])
        g_g = jnp.tanh(gates[:, 2 * H:3 * H])
        o_g = jax.nn.sigmoid(gates[:, 3 * H:4 * H])
        c = f_g * c + i_g * g_g
        h = o_g * jnp.tanh(c)
        hs_scr[pl.ds(t, 1), :] = h

    hs = hs_scr[...]                         # (T, H), stays in VMEM

    # ---- fc: Linear(H,32) -> ReLU -> BatchNorm1d(T) -> Linear(32,L) -> ReLU
    y = jnp.dot(hs, fc_w1_ref[...],
                preferred_element_type=jnp.float32) + fc_b1_ref[...]
    y = jnp.maximum(y, 0.0)
    y = y * fc_bns_ref[...] + fc_bnb_ref[...]    # eval-mode BN over T channels
    y = jnp.dot(y, fc_w2_ref[...],
                preferred_element_type=jnp.float32) + fc_b2_ref[...]
    y = jnp.maximum(y, 0.0)                      # (T, L)

    # ---- fc2 (transposed orientation: tensors are (features, L)) ----------
    # The PyTorch x.transpose(2,1) is implicit; BN channel axis (=L) is lanes.
    z = jnp.dot(f2_w1_ref[...], y,
                preferred_element_type=jnp.float32) + f2_b1_ref[...]
    z = jnp.maximum(z, 0.0)                      # (64, L); Dropout(0.3)=identity
    z = z * f2_bn1s_ref[...] + f2_bn1b_ref[...]
    z = jnp.dot(f2_w2_ref[...], z,
                preferred_element_type=jnp.float32) + f2_b2_ref[...]
    z = jnp.maximum(z, 0.0)                      # (16, L); Dropout(0.2)=identity
    z = z * f2_bn2s_ref[...] + f2_bn2b_ref[...]
    z = jnp.dot(f2_w3_ref[...], z,
                preferred_element_type=jnp.float32) + f2_b3_ref[...]
    out_ref[...] = jnp.maximum(z, 0.0)           # (1, L)


# --------------------------------------------------------------------------
# Wrapper: one pallas_call over grid=(B,)
# --------------------------------------------------------------------------
def which_podcaster_lstm_forward(x_bct, kp):
    # x_bct: (B, input_size, T) -- PyTorch NCL layout; forward does transpose(2,1)
    B, I, T = x_bct.shape
    H = kp["whh_p"].shape[0]
    L = kp["fc_w2t"].shape[1]

    x_bti = jnp.transpose(x_bct, (0, 2, 1)).astype(jnp.float32)   # (B, T, I)

    def rep(a):                       # replicated (un-gridded) operand
        nd = a.ndim
        return pl.BlockSpec(a.shape, lambda b, nd=nd: (0,) * nd)

    args = (x_bti,
            kp["wih_p"], kp["whh_p"], kp["b_lstm_p"],
            kp["fc_w1t"], kp["fc_b1"], kp["fc_bn_s"], kp["fc_bn_b"],
            kp["fc_w2t"], kp["fc_b2"],
            kp["f2_w1k"], kp["f2_b1k"], kp["f2_bn1s_k"], kp["f2_bn1b_k"],
            kp["f2_w2k"], kp["f2_b2k"], kp["f2_bn2s_k"], kp["f2_bn2b_k"],
            kp["f2_w3k"], kp["f2_b3k"])

    in_specs = ([pl.BlockSpec((None, T, I), lambda b: (b, 0, 0))]
                + [rep(a) for a in args[1:]])

    out = pl.pallas_call(
        fused_kernel,
        out_shape=jax.ShapeDtypeStruct((B, 1, L), jnp.float32),
        grid=(B,),
        in_specs=in_specs,
        out_specs=pl.BlockSpec((None, 1, L), lambda b: (b, 0, 0)),
        scratch_shapes=[pltpu.VMEM((T, H), jnp.float32)],
        compiler_params=pltpu.CompilerParams(
            dimension_semantics=("parallel",)),
    )(*args)
    return out.reshape(B, L, 1)                                    # (B, L, 1)


# --------------------------------------------------------------------------
# Parameter helpers
# --------------------------------------------------------------------------
def bn_eval_affine(num_features, eps=1e-5):
    gamma = jnp.ones((num_features,), jnp.float32)
    beta = jnp.zeros((num_features,), jnp.float32)
    r_mean = jnp.zeros((num_features,), jnp.float32)
    r_var = jnp.ones((num_features,), jnp.float32)
    scale = gamma / jnp.sqrt(r_var + eps)
    shift = beta - r_mean * scale
    return scale.reshape(num_features, 1), shift.reshape(num_features, 1)


def init_params(key, input_size, hidden_size, max_sample_length, num_labels):
    """Math-orientation params (right-multiply form, packed LSTM gates i|f|g|o)."""
    I, H, T, L = input_size, hidden_size, max_sample_length, num_labels
    ks = jax.random.split(key, 12)

    def rnd(k, shape, scale=0.1):
        return jax.random.normal(k, shape, dtype=jnp.float32) * scale

    p = {
        # LSTM, packed along the gate axis: columns [i | f | g | o]
        "wih_p": rnd(ks[0], (I, 4 * H)),
        "whh_p": rnd(ks[1], (H, 4 * H)),
        "b_lstm_p": rnd(ks[2], (1, 4 * H)),        # b_ih + b_hh combined
        # fc: Linear(H,32) -> ReLU -> BatchNorm1d(T) -> Linear(32,L) -> ReLU
        "fc_w1t": rnd(ks[3], (H, 32)),
        "fc_b1": rnd(ks[4], (1, 32)),
        "fc_w2t": rnd(ks[5], (32, L)),
        "fc_b2": rnd(ks[6], (1, L)),
        # fc2: Linear(T,64) ... Linear(64,16) ... Linear(16,1)
        "fc2_w1t": rnd(ks[7], (T, 64)),
        "fc2_b1": rnd(ks[8], (1, 64)),
        "fc2_w2t": rnd(ks[9], (64, 16)),
        "fc2_b2": rnd(ks[10], (1, 16)),
        "fc2_w3t": rnd(ks[11], (16, 1)),
        "fc2_b3": jnp.zeros((1, 1), jnp.float32),
    }
    p["fc_bn_s"], p["fc_bn_b"] = bn_eval_affine(T)       # channel axis = T
    p["fc2_bn1_s"], p["fc2_bn1_b"] = bn_eval_affine(L)   # LazyBN infers C = L
    p["fc2_bn2_s"], p["fc2_bn2_b"] = bn_eval_affine(L)
    return p


def to_kernel_layout(p):
    """Kernel-layout params: fc2 stage pre-transposed (one-time, tiny)."""
    return dict(
        wih_p=p["wih_p"], whh_p=p["whh_p"], b_lstm_p=p["b_lstm_p"],
        fc_w1t=p["fc_w1t"], fc_b1=p["fc_b1"],
        fc_bn_s=p["fc_bn_s"], fc_bn_b=p["fc_bn_b"],
        fc_w2t=p["fc_w2t"], fc_b2=p["fc_b2"],
        f2_w1k=p["fc2_w1t"].T,   f2_b1k=p["fc2_b1"].T,
        f2_bn1s_k=p["fc2_bn1_s"].T, f2_bn1b_k=p["fc2_bn1_b"].T,
        f2_w2k=p["fc2_w2t"].T,   f2_b2k=p["fc2_b2"].T,
        f2_bn2s_k=p["fc2_bn2_s"].T, f2_bn2b_k=p["fc2_bn2_b"].T,
        f2_w3k=p["fc2_w3t"].T,   f2_b3k=p["fc2_b3"].T,
    )


# --------------------------------------------------------------------------
# Pure-JAX reference (same eval-mode semantics) for correctness check
# --------------------------------------------------------------------------
def reference_forward(x_bct, p):
    B, I, T = x_bct.shape
    H = p["whh_p"].shape[0]
    x = jnp.transpose(x_bct, (0, 2, 1))                            # (B, T, I)
    h = jnp.zeros((B, H), jnp.float32)
    c = jnp.zeros((B, H), jnp.float32)
    outs = []
    for t in range(T):
        gates = x[:, t, :] @ p["wih_p"] + h @ p["whh_p"] + p["b_lstm_p"]
        i_g = jax.nn.sigmoid(gates[:, 0 * H:1 * H])
        f_g = jax.nn.sigmoid(gates[:, 1 * H:2 * H])
        g_g = jnp.tanh(gates[:, 2 * H:3 * H])
        o_g = jax.nn.sigmoid(gates[:, 3 * H:4 * H])
        c = f_g * c + i_g * g_g
        h = o_g * jnp.tanh(c)
        outs.append(h)
    hs = jnp.stack(outs, axis=1)                                   # (B, T, H)

    y = jnp.maximum(hs @ p["fc_w1t"] + p["fc_b1"], 0.0)
    y = y * p["fc_bn_s"][None] + p["fc_bn_b"][None]
    y = jnp.maximum(y @ p["fc_w2t"] + p["fc_b2"], 0.0)             # (B, T, L)
    y = jnp.transpose(y, (0, 2, 1))                                # (B, L, T)

    z = jnp.maximum(y @ p["fc2_w1t"] + p["fc2_b1"], 0.0)
    z = z * p["fc2_bn1_s"][None] + p["fc2_bn1_b"][None]
    z = jnp.maximum(z @ p["fc2_w2t"] + p["fc2_b2"], 0.0)
    z = z * p["fc2_bn2_s"][None] + p["fc2_bn2_b"][None]
    z = jnp.maximum(z @ p["fc2_w3t"] + p["fc2_b3"], 0.0)
    return z                                                       # (B, L, 1)


if __name__ == "__main__":
    B, input_size, hidden_size = 2, 8, 32
    max_sample_length, num_labels = 16, 2

    key = jax.random.PRNGKey(0)
    k_param, k_x = jax.random.split(key)
    params = init_params(k_param, input_size, hidden_size,
                         max_sample_length, num_labels)
    kparams = to_kernel_layout(params)
    x = jax.random.normal(k_x, (B, input_size, max_sample_length),
                          dtype=jnp.float32)

    out = which_podcaster_lstm_forward(x, kparams)
    out = jax.block_until_ready(out)

    ref = reference_forward(x, params)
    assert out.shape == (B, num_labels, 1), out.shape
    assert jnp.allclose(out, ref, rtol=1e-2, atol=1e-2), (out, ref)

    print("KERNEL_OK")
</pallas_src>

<mosaic_0001>
module attributes {stable_mosaic.version = 11 : i64} {
  func.func @fused_kernel(%arg0: i32, %arg1: memref<1x16x8xf32, #tpu.memory_space<vmem>>, %arg2: memref<8x128xf32, #tpu.memory_space<vmem>>, %arg3: memref<32x128xf32, #tpu.memory_space<vmem>>, %arg4: memref<1x128xf32, #tpu.memory_space<vmem>>, %arg5: memref<32x32xf32, #tpu.memory_space<vmem>>, %arg6: memref<1x32xf32, #tpu.memory_space<vmem>>, %arg7: memref<16x1xf32, #tpu.memory_space<vmem>>, %arg8: memref<16x1xf32, #tpu.memory_space<vmem>>, %arg9: memref<32x2xf32, #tpu.memory_space<vmem>>, %arg10: memref<1x2xf32, #tpu.memory_space<vmem>>, %arg11: memref<64x16xf32, #tpu.memory_space<vmem>>, %arg12: memref<64x1xf32, #tpu.memory_space<vmem>>, %arg13: memref<1x2xf32, #tpu.memory_space<vmem>>, %arg14: memref<1x2xf32, #tpu.memory_space<vmem>>, %arg15: memref<16x64xf32, #tpu.memory_space<vmem>>, %arg16: memref<16x1xf32, #tpu.memory_space<vmem>>, %arg17: memref<1x2xf32, #tpu.memory_space<vmem>>, %arg18: memref<1x2xf32, #tpu.memory_space<vmem>>, %arg19: memref<1x16xf32, #tpu.memory_space<vmem>>, %arg20: memref<1x1xf32, #tpu.memory_space<vmem>>, %arg21: memref<1x1x2xf32, #tpu.memory_space<vmem>>, %arg22: memref<16x32xf32, #tpu.memory_space<vmem>>) attributes {dimension_semantics = [#tpu.dimension_semantics<parallel>], iteration_bounds = array<i64: 2>, scalar_prefetch = 0 : i64, scratch_operands = 1 : i64, tpu.core_type = #tpu.core_type<tc>, window_params = [{transform_indices = @transform_0, window_bounds = array<i64: 1, 16, 8>}, {pipeline_mode = #tpu.pipeline_mode<synchronous>, transform_indices = @transform_1, window_bounds = array<i64: 8, 128>}, {pipeline_mode = #tpu.pipeline_mode<synchronous>, transform_indices = @transform_2, window_bounds = array<i64: 32, 128>}, {pipeline_mode = #tpu.pipeline_mode<synchronous>, transform_indices = @transform_3, window_bounds = array<i64: 1, 128>}, {pipeline_mode = #tpu.pipeline_mode<synchronous>, transform_indices = @transform_4, window_bounds = array<i64: 32, 32>}, {pipeline_mode = #tpu.pipeline_mode<synchronous>, transform_indices = @transform_5, window_bounds = array<i64: 1, 32>}, {pipeline_mode = #tpu.pipeline_mode<synchronous>, transform_indices = @transform_6, window_bounds = array<i64: 16, 1>}, {pipeline_mode = #tpu.pipeline_mode<synchronous>, transform_indices = @transform_7, window_bounds = array<i64: 16, 1>}, {pipeline_mode = #tpu.pipeline_mode<synchronous>, transform_indices = @transform_8, window_bounds = array<i64: 32, 2>}, {pipeline_mode = #tpu.pipeline_mode<synchronous>, transform_indices = @transform_9, window_bounds = array<i64: 1, 2>}, {pipeline_mode = #tpu.pipeline_mode<synchronous>, transform_indices = @transform_10, window_bounds = array<i64: 64, 16>}, {pipeline_mode = #tpu.pipeline_mode<synchronous>, transform_indices = @transform_11, window_bounds = array<i64: 64, 1>}, {pipeline_mode = #tpu.pipeline_mode<synchronous>, transform_indices = @transform_12, window_bounds = array<i64: 1, 2>}, {pipeline_mode = #tpu.pipeline_mode<synchronous>, transform_indices = @transform_13, window_bounds = array<i64: 1, 2>}, {pipeline_mode = #tpu.pipeline_mode<synchronous>, transform_indices = @transform_14, window_bounds = array<i64: 16, 64>}, {pipeline_mode = #tpu.pipeline_mode<synchronous>, transform_indices = @transform_15, window_bounds = array<i64: 16, 1>}, {pipeline_mode = #tpu.pipeline_mode<synchronous>, transform_indices = @transform_16, window_bounds = array<i64: 1, 2>}, {pipeline_mode = #tpu.pipeline_mode<synchronous>, transform_indices = @transform_17, window_bounds = array<i64: 1, 2>}, {pipeline_mode = #tpu.pipeline_mode<synchronous>, transform_indices = @transform_18, window_bounds = array<i64: 1, 16>}, {pipeline_mode = #tpu.pipeline_mode<synchronous>, transform_indices = @transform_19, window_bounds = array<i64: 1, 1>}, {transform_indices = @transform_20, window_bounds = array<i64: 1, 1, 2>}]} {
    %c0 = arith.constant 0 : index
    %c0_0 = arith.constant 0 : index
    %c0_1 = arith.constant 0 : index
    %0 = vector.load %arg1[%c0, %c0_0, %c0_1] : memref<1x16x8xf32, #tpu.memory_space<vmem>>, vector<1x16x8xf32>
    %1 = vector.shape_cast %0 : vector<1x16x8xf32> to vector<16x8xf32>
    %c0_2 = arith.constant 0 : index
    %c0_3 = arith.constant 0 : index
    %2 = vector.load %arg2[%c0_2, %c0_3] : memref<8x128xf32, #tpu.memory_space<vmem>>, vector<8x128xf32>
    %cst = arith.constant dense<0.000000e+00> : vector<16x128xf32>
    %3 = tpu.matmul %1, %2, %cst {dimension_numbers = #tpu.dot_dimension_numbers<[1], [0], [0], [1], [0, 0, 1, 1], [], []>} : vector<16x8xf32>, vector<8x128xf32>, vector<16x128xf32> -> vector<16x128xf32>
    %c0_4 = arith.constant 0 : index
    %c0_5 = arith.constant 0 : index
    %4 = vector.load %arg4[%c0_4, %c0_5] : memref<1x128xf32, #tpu.memory_space<vmem>>, vector<1x128xf32>
    %5 = vector.broadcast %4 : vector<1x128xf32> to vector<16x128xf32>
    %6 = arith.addf %3, %5 : vector<16x128xf32>
    %c0_6 = arith.constant 0 : index
    %c0_7 = arith.constant 0 : index
    %7 = vector.load %arg3[%c0_6, %c0_7] : memref<32x128xf32, #tpu.memory_space<vmem>>, vector<32x128xf32>
    %cst_8 = arith.constant 0.000000e+00 : f32
    %8 = vector.broadcast %cst_8 : f32 to vector<1x32xf32>
    %cst_9 = arith.constant 0.000000e+00 : f32
    %9 = vector.broadcast %cst_9 : f32 to vector<1x32xf32>
    %10 = vector.extract_strided_slice %6 {offsets = [0, 0], sizes = [1, 128], strides = [1, 1]} : vector<16x128xf32> to vector<1x128xf32>
    %cst_10 = arith.constant dense<0.000000e+00> : vector<1x128xf32>
    %11 = tpu.matmul %8, %7, %cst_10 {dimension_numbers = #tpu.dot_dimension_numbers<[1], [0], [0], [1], [0, 0, 1, 1], [], []>} : vector<1x32xf32>, vector<32x128xf32>, vector<1x128xf32> -> vector<1x128xf32>
    %12 = arith.addf %10, %11 : vector<1x128xf32>
    %13 = vector.extract_strided_slice %12 {offsets = [0, 0], sizes = [1, 32], strides = [1, 1]} : vector<1x128xf32> to vector<1x32xf32>
    %14 = arith.negf %13 : vector<1x32xf32>
    %15 = math.exp %14 : vector<1x32xf32>
    %cst_11 = arith.constant 1.000000e+00 : f32
    %16 = vector.broadcast %cst_11 : f32 to vector<1x32xf32>
    %17 = arith.addf %16, %15 : vector<1x32xf32>
    %18 = arith.divf %16, %17 : vector<1x32xf32>
    %19 = vector.extract_strided_slice %12 {offsets = [0, 32], sizes = [1, 32], strides = [1, 1]} : vector<1x128xf32> to vector<1x32xf32>
    %20 = arith.negf %19 : vector<1x32xf32>
    %21 = math.exp %20 : vector<1x32xf32>
    %cst_12 = arith.constant 1.000000e+00 : f32
    %22 = vector.broadcast %cst_12 : f32 to vector<1x32xf32>
    %23 = arith.addf %22, %21 : vector<1x32xf32>
    %24 = arith.divf %22, %23 : vector<1x32xf32>
    %25 = vector.extract_strided_slice %12 {offsets = [0, 64], sizes = [1, 32], strides = [1, 1]} : vector<1x128xf32> to vector<1x32xf32>
    %26 = math.tanh %25 : vector<1x32xf32>
    %27 = vector.extract_strided_slice %12 {offsets = [0, 96], sizes = [1, 32], strides = [1, 1]} : vector<1x128xf32> to vector<1x32xf32>
    %28 = arith.negf %27 : vector<1x32xf32>
    %29 = math.exp %28 : vector<1x32xf32>
    %cst_13 = arith.constant 1.000000e+00 : f32
    %30 = vector.broadcast %cst_13 : f32 to vector<1x32xf32>
    %31 = arith.addf %30, %29 : vector<1x32xf32>
    %32 = arith.divf %30, %31 : vector<1x32xf32>
    %33 = arith.mulf %24, %9 : vector<1x32xf32>
    %34 = arith.mulf %18, %26 : vector<1x32xf32>
    %35 = arith.addf %33, %34 : vector<1x32xf32>
    %36 = math.tanh %35 : vector<1x32xf32>
    %37 = arith.mulf %32, %36 : vector<1x32xf32>
    %c0_14 = arith.constant 0 : index
    %c0_15 = arith.constant 0 : index
    %38 = vector.load %arg22[%c0_14, %c0_15] : memref<16x32xf32, #tpu.memory_space<vmem>>, vector<1x32xf32>
    tpu.vector_store %arg22[%c0_14, %c0_15], %37 {strides = array<i32>} : memref<16x32xf32, #tpu.memory_space<vmem>>, vector<1x32xf32>,
    %39 = vector.extract_strided_slice %6 {offsets = [1, 0], sizes = [1, 128], strides = [1, 1]} : vector<16x128xf32> to vector<1x128xf32>
    %cst_16 = arith.constant dense<0.000000e+00> : vector<1x128xf32>
    %40 = tpu.matmul %37, %7, %cst_16 {dimension_numbers = #tpu.dot_dimension_numbers<[1], [0], [0], [1], [0, 0, 1, 1], [], []>} : vector<1x32xf32>, vector<32x128xf32>, vector<1x128xf32> -> vector<1x128xf32>
    %41 = arith.addf %39, %40 : vector<1x128xf32>
    %42 = vector.extract_strided_slice %41 {offsets = [0, 0], sizes = [1, 32], strides = [1, 1]} : vector<1x128xf32> to vector<1x32xf32>
    %43 = arith.negf %42 : vector<1x32xf32>
    %44 = math.exp %43 : vector<1x32xf32>
    %cst_17 = arith.constant 1.000000e+00 : f32
    %45 = vector.broadcast %cst_17 : f32 to vector<1x32xf32>
    %46 = arith.addf %45, %44 : vector<1x32xf32>
    %47 = arith.divf %45, %46 : vector<1x32xf32>
    %48 = vector.extract_strided_slice %41 {offsets = [0, 32], sizes = [1, 32], strides = [1, 1]} : vector<1x128xf32> to vector<1x32xf32>
    %49 = arith.negf %48 : vector<1x32xf32>
    %50 = math.exp %49 : vector<1x32xf32>
    %cst_18 = arith.constant 1.000000e+00 : f32
    %51 = vector.broadcast %cst_18 : f32 to vector<1x32xf32>
    %52 = arith.addf %51, %50 : vector<1x32xf32>
    %53 = arith.divf %51, %52 : vector<1x32xf32>
    %54 = vector.extract_strided_slice %41 {offsets = [0, 64], sizes = [1, 32], strides = [1, 1]} : vector<1x128xf32> to vector<1x32xf32>
    %55 = math.tanh %54 : vector<1x32xf32>
    %56 = vector.extract_strided_slice %41 {offsets = [0, 96], sizes = [1, 32], strides = [1, 1]} : vector<1x128xf32> to vector<1x32xf32>
    %57 = arith.negf %56 : vector<1x32xf32>
    %58 = math.exp %57 : vector<1x32xf32>
    %cst_19 = arith.constant 1.000000e+00 : f32
    %59 = vector.broadcast %cst_19 : f32 to vector<1x32xf32>
    %60 = arith.addf %59, %58 : vector<1x32xf32>
    %61 = arith.divf %59, %60 : vector<1x32xf32>
    %62 = arith.mulf %53, %35 : vector<1x32xf32>
    %63 = arith.mulf %47, %55 : vector<1x32xf32>
    %64 = arith.addf %62, %63 : vector<1x32xf32>
    %65 = math.tanh %64 : vector<1x32xf32>
    %66 = arith.mulf %61, %65 : vector<1x32xf32>
    %c1 = arith.constant 1 : index
    %c0_20 = arith.constant 0 : index
    %67 = vector.load %arg22[%c1, %c0_20] : memref<16x32xf32, #tpu.memory_space<vmem>>, vector<1x32xf32>
    tpu.vector_store %arg22[%c1, %c0_20], %66 {strides = array<i32>} : memref<16x32xf32, #tpu.memory_space<vmem>>, vector<1x32xf32>,
    %68 = vector.extract_strided_slice %6 {offsets = [2, 0], sizes = [1, 128], strides = [1, 1]} : vector<16x128xf32> to vector<1x128xf32>
    %cst_21 = arith.constant dense<0.000000e+00> : vector<1x128xf32>
    %69 = tpu.matmul %66, %7, %cst_21 {dimension_numbers = #tpu.dot_dimension_numbers<[1], [0], [0], [1], [0, 0, 1, 1], [], []>} : vector<1x32xf32>, vector<32x128xf32>, vector<1x128xf32> -> vector<1x128xf32>
    %70 = arith.addf %68, %69 : vector<1x128xf32>
    %71 = vector.extract_strided_slice %70 {offsets = [0, 0], sizes = [1, 32], strides = [1, 1]} : vector<1x128xf32> to vector<1x32xf32>
    %72 = arith.negf %71 : vector<1x32xf32>
    %73 = math.exp %72 : vector<1x32xf32>
    %cst_22 = arith.constant 1.000000e+00 : f32
    %74 = vector.broadcast %cst_22 : f32 to vector<1x32xf32>
    %75 = arith.addf %74, %73 : vector<1x32xf32>
    %76 = arith.divf %74, %75 : vector<1x32xf32>
    %77 = vector.extract_strided_slice %70 {offsets = [0, 32], sizes = [1, 32], strides = [1, 1]} : vector<1x128xf32> to vector<1x32xf32>
    %78 = arith.negf %77 : vector<1x32xf32>
    %79 = math.exp %78 : vector<1x32xf32>
    %cst_23 = arith.constant 1.000000e+00 : f32
    %80 = vector.broadcast %cst_23 : f32 to vector<1x32xf32>
    %81 = arith.addf %80, %79 : vector<1x32xf32>
    %82 = arith.divf %80, %81 : vector<1x32xf32>
    %83 = vector.extract_strided_slice %70 {offsets = [0, 64], sizes = [1, 32], strides = [1, 1]} : vector<1x128xf32> to vector<1x32xf32>
    %84 = math.tanh %83 : vector<1x32xf32>
    %85 = vector.extract_strided_slice %70 {offsets = [0, 96], sizes = [1, 32], strides = [1, 1]} : vector<1x128xf32> to vector<1x32xf32>
    %86 = arith.negf %85 : vector<1x32xf32>
    %87 = math.exp %86 : vector<1x32xf32>
    %cst_24 = arith.constant 1.000000e+00 : f32
    %88 = vector.broadcast %cst_24 : f32 to vector<1x32xf32>
    %89 = arith.addf %88, %87 : vector<1x32xf32>
    %90 = arith.divf %88, %89 : vector<1x32xf32>
    %91 = arith.mulf %82, %64 : vector<1x32xf32>
    %92 = arith.mulf %76, %84 : vector<1x32xf32>
    %93 = arith.addf %91, %92 : vector<1x32xf32>
    %94 = math.tanh %93 : vector<1x32xf32>
    %95 = arith.mulf %90, %94 : vector<1x32xf32>
    %c2 = arith.constant 2 : index
    %c0_25 = arith.constant 0 : index
    %96 = vector.load %arg22[%c2, %c0_25] : memref<16x32xf32, #tpu.memory_space<vmem>>, vector<1x32xf32>
    tpu.vector_store %arg22[%c2, %c0_25], %95 {strides = array<i32>} : memref<16x32xf32, #tpu.memory_space<vmem>>, vector<1x32xf32>,
    %97 = vector.extract_strided_slice %6 {offsets = [3, 0], sizes = [1, 128], strides = [1, 1]} : vector<16x128xf32> to vector<1x128xf32>
    %cst_26 = arith.constant dense<0.000000e+00> : vector<1x128xf32>
    %98 = tpu.matmul %95, %7, %cst_26 {dimension_numbers = #tpu.dot_dimension_numbers<[1], [0], [0], [1], [0, 0, 1, 1], [], []>} : vector<1x32xf32>, vector<32x128xf32>, vector<1x128xf32> -> vector<1x128xf32>
    %99 = arith.addf %97, %98 : vector<1x128xf32>
    %100 = vector.extract_strided_slice %99 {offsets = [0, 0], sizes = [1, 32], strides = [1, 1]} : vector<1x128xf32> to vector<1x32xf32>
    %101 = arith.negf %100 : vector<1x32xf32>
    %102 = math.exp %101 : vector<1x32xf32>
    %cst_27 = arith.constant 1.000000e+00 : f32
    %103 = vector.broadcast %cst_27 : f32 to vector<1x32xf32>
    %104 = arith.addf %103, %102 : vector<1x32xf32>
    %105 = arith.divf %103, %104 : vector<1x32xf32>
    %106 = vector.extract_strided_slice %99 {offsets = [0, 32], sizes = [1, 32], strides = [1, 1]} : vector<1x128xf32> to vector<1x32xf32>
    %107 = arith.negf %106 : vector<1x32xf32>
    %108 = math.exp %107 : vector<1x32xf32>
    %cst_28 = arith.constant 1.000000e+00 : f32
    %109 = vector.broadcast %cst_28 : f32 to vector<1x32xf32>
    %110 = arith.addf %109, %108 : vector<1x32xf32>
    %111 = arith.divf %109, %110 : vector<1x32xf32>
    %112 = vector.extract_strided_slice %99 {offsets = [0, 64], sizes = [1, 32], strides = [1, 1]} : vector<1x128xf32> to vector<1x32xf32>
    %113 = math.tanh %112 : vector<1x32xf32>
    %114 = vector.extract_strided_slice %99 {offsets = [0, 96], sizes = [1, 32], strides = [1, 1]} : vector<1x128xf32> to vector<1x32xf32>
    %115 = arith.negf %114 : vector<1x32xf32>
    %116 = math.exp %115 : vector<1x32xf32>
    %cst_29 = arith.constant 1.000000e+00 : f32
    %117 = vector.broadcast %cst_29 : f32 to vector<1x32xf32>
    %118 = arith.addf %117, %116 : vector<1x32xf32>
    %119 = arith.divf %117, %118 : vector<1x32xf32>
    %120 = arith.mulf %111, %93 : vector<1x32xf32>
    %121 = arith.mulf %105, %113 : vector<1x32xf32>
    %122 = arith.addf %120, %121 : vector<1x32xf32>
    %123 = math.tanh %122 : vector<1x32xf32>
    %124 = arith.mulf %119, %123 : vector<1x32xf32>
    %c3 = arith.constant 3 : index
    %c0_30 = arith.constant 0 : index
    %125 = vector.load %arg22[%c3, %c0_30] : memref<16x32xf32, #tpu.memory_space<vmem>>, vector<1x32xf32>
    tpu.vector_store %arg22[%c3, %c0_30], %124 {strides = array<i32>} : memref<16x32xf32, #tpu.memory_space<vmem>>, vector<1x32xf32>,
    %126 = vector.extract_strided_slice %6 {offsets = [4, 0], sizes = [1, 128], strides = [1, 1]} : vector<16x128xf32> to vector<1x128xf32>
    %cst_31 = arith.constant dense<0.000000e+00> : vector<1x128xf32>
    %127 = tpu.matmul %124, %7, %cst_31 {dimension_numbers = #tpu.dot_dimension_numbers<[1], [0], [0], [1], [0, 0, 1, 1], [], []>} : vector<1x32xf32>, vector<32x128xf32>, vector<1x128xf32> -> vector<1x128xf32>
    %128 = arith.addf %126, %127 : vector<1x128xf32>
    %129 = vector.extract_strided_slice %128 {offsets = [0, 0], sizes = [1, 32], strides = [1, 1]} : vector<1x128xf32> to vector<1x32xf32>
    %130 = arith.negf %129 : vector<1x32xf32>
    %131 = math.exp %130 : vector<1x32xf32>
    %cst_32 = arith.constant 1.000000e+00 : f32
    %132 = vector.broadcast %cst_32 : f32 to vector<1x32xf32>
    %133 = arith.addf %132, %131 : vector<1x32xf32>
    %134 = arith.divf %132, %133 : vector<1x32xf32>
    %135 = vector.extract_strided_slice %128 {offsets = [0, 32], sizes = [1, 32], strides = [1, 1]} : vector<1x128xf32> to vector<1x32xf32>
    %136 = arith.negf %135 : vector<1x32xf32>
    %137 = math.exp %136 : vector<1x32xf32>
    %cst_33 = arith.constant 1.000000e+00 : f32
    %138 = vector.broadcast %cst_33 : f32 to vector<1x32xf32>
    %139 = arith.addf %138, %137 : vector<1x32xf32>
    %140 = arith.divf %138, %139 : vector<1x32xf32>
    %141 = vector.extract_strided_slice %128 {offsets = [0, 64], sizes = [1, 32], strides = [1, 1]} : vector<1x128xf32> to vector<1x32xf32>
    %142 = math.tanh %141 : vector<1x32xf32>
    %143 = vector.extract_strided_slice %128 {offsets = [0, 96], sizes = [1, 32], strides = [1, 1]} : vector<1x128xf32> to vector<1x32xf32>
    %144 = arith.negf %143 : vector<1x32xf32>
    %145 = math.exp %144 : vector<1x32xf32>
    %cst_34 = arith.constant 1.000000e+00 : f32
    %146 = vector.broadcast %cst_34 : f32 to vector<1x32xf32>
    %147 = arith.addf %146, %145 : vector<1x32xf32>
    %148 = arith.divf %146, %147 : vector<1x32xf32>
    %149 = arith.mulf %140, %122 : vector<1x32xf32>
    %150 = arith.mulf %134, %142 : vector<1x32xf32>
    %151 = arith.addf %149, %150 : vector<1x32xf32>
    %152 = math.tanh %151 : vector<1x32xf32>
    %153 = arith.mulf %148, %152 : vector<1x32xf32>
    %c4 = arith.constant 4 : index
    %c0_35 = arith.constant 0 : index
    %154 = vector.load %arg22[%c4, %c0_35] : memref<16x32xf32, #tpu.memory_space<vmem>>, vector<1x32xf32>
    tpu.vector_store %arg22[%c4, %c0_35], %153 {strides = array<i32>} : memref<16x32xf32, #tpu.memory_space<vmem>>, vector<1x32xf32>,
    %155 = vector.extract_strided_slice %6 {offsets = [5, 0], sizes = [1, 128], strides = [1, 1]} : vector<16x128xf32> to vector<1x128xf32>
    %cst_36 = arith.constant dense<0.000000e+00> : vector<1x128xf32>
    %156 = tpu.matmul %153, %7, %cst_36 {dimension_numbers = #tpu.dot_dimension_numbers<[1], [0], [0], [1], [0, 0, 1, 1], [], []>} : vector<1x32xf32>, vector<32x128xf32>, vector<1x128xf32> -> vector<1x128xf32>
    %157 = arith.addf %155, %156 : vector<1x128xf32>
    %158 = vector.extract_strided_slice %157 {offsets = [0, 0], sizes = [1, 32], strides = [1, 1]} : vector<1x128xf32> to vector<1x32xf32>
    %159 = arith.negf %158 : vector<1x32xf32>
    %160 = math.exp %159 : vector<1x32xf32>
    %cst_37 = arith.constant 1.000000e+00 : f32
    %161 = vector.broadcast %cst_37 : f32 to vector<1x32xf32>
    %162 = arith.addf %161, %160 : vector<1x32xf32>
    %163 = arith.divf %161, %162 : vector<1x32xf32>
    %164 = vector.extract_strided_slice %157 {offsets = [0, 32], sizes = [1, 32], strides = [1, 1]} : vector<1x128xf32> to vector<1x32xf32>
    %165 = arith.negf %164 : vector<1x32xf32>
    %166 = math.exp %165 : vector<1x32xf32>
    %cst_38 = arith.constant 1.000000e+00 : f32
    %167 = vector.broadcast %cst_38 : f32 to vector<1x32xf32>
    %168 = arith.addf %167, %166 : vector<1x32xf32>
    %169 = arith.divf %167, %168 : vector<1x32xf32>
    %170 = vector.extract_strided_slice %157 {offsets = [0, 64], sizes = [1, 32], strides = [1, 1]} : vector<1x128xf32> to vector<1x32xf32>
    %171 = math.tanh %170 : vector<1x32xf32>
    %172 = vector.extract_strided_slice %157 {offsets = [0, 96], sizes = [1, 32], strides = [1, 1]} : vector<1x128xf32> to vector<1x32xf32>
    %173 = arith.negf %172 : vector<1x32xf32>
    %174 = math.exp %173 : vector<1x32xf32>
    %cst_39 = arith.constant 1.000000e+00 : f32
    %175 = vector.broadcast %cst_39 : f32 to vector<1x32xf32>
    %176 = arith.addf %175, %174 : vector<1x32xf32>
    %177 = arith.divf %175, %176 : vector<1x32xf32>
    %178 = arith.mulf %169, %151 : vector<1x32xf32>
    %179 = arith.mulf %163, %171 : vector<1x32xf32>
    %180 = arith.addf %178, %179 : vector<1x32xf32>
    %181 = math.tanh %180 : vector<1x32xf32>
    %182 = arith.mulf %177, %181 : vector<1x32xf32>
    %c5 = arith.constant 5 : index
    %c0_40 = arith.constant 0 : index
    %183 = vector.load %arg22[%c5, %c0_40] : memref<16x32xf32, #tpu.memory_space<vmem>>, vector<1x32xf32>
    tpu.vector_store %arg22[%c5, %c0_40], %182 {strides = array<i32>} : memref<16x32xf32, #tpu.memory_space<vmem>>, vector<1x32xf32>,
    %184 = vector.extract_strided_slice %6 {offsets = [6, 0], sizes = [1, 128], strides = [1, 1]} : vector<16x128xf32> to vector<1x128xf32>
    %cst_41 = arith.constant dense<0.000000e+00> : vector<1x128xf32>
    %185 = tpu.matmul %182, %7, %cst_41 {dimension_numbers = #tpu.dot_dimension_numbers<[1], [0], [0], [1], [0, 0, 1, 1], [], []>} : vector<1x32xf32>, vector<32x128xf32>, vector<1x128xf32> -> vector<1x128xf32>
    %186 = arith.addf %184, %185 : vector<1x128xf32>
    %187 = vector.extract_strided_slice %186 {offsets = [0, 0], sizes = [1, 32], strides = [1, 1]} : vector<1x128xf32> to vector<1x32xf32>
    %188 = arith.negf %187 : vector<1x32xf32>
    %189 = math.exp %188 : vector<1x32xf32>
    %cst_42 = arith.constant 1.000000e+00 : f32
    %190 = vector.broadcast %cst_42 : f32 to vector<1x32xf32>
    %191 = arith.addf %190, %189 : vector<1x32xf32>
    %192 = arith.divf %190, %191 : vector<1x32xf32>
    %193 = vector.extract_strided_slice %186 {offsets = [0, 32], sizes = [1, 32], strides = [1, 1]} : vector<1x128xf32> to vector<1x32xf32>
    %194 = arith.negf %193 : vector<1x32xf32>
    %195 = math.exp %194 : vector<1x32xf32>
    %cst_43 = arith.constant 1.000000e+00 : f32
    %196 = vector.broadcast %cst_43 : f32 to vector<1x32xf32>
    %197 = arith.addf %196, %195 : vector<1x32xf32>
    %198 = arith.divf %196, %197 : vector<1x32xf32>
    %199 = vector.extract_strided_slice %186 {offsets = [0, 64], sizes = [1, 32], strides = [1, 1]} : vector<1x128xf32> to vector<1x32xf32>
    %200 = math.tanh %199 : vector<1x32xf32>
    %201 = vector.extract_strided_slice %186 {offsets = [0, 96], sizes = [1, 32], strides = [1, 1]} : vector<1x128xf32> to vector<1x32xf32>
    %202 = arith.negf %201 : vector<1x32xf32>
    %203 = math.exp %202 : vector<1x32xf32>
    %cst_44 = arith.constant 1.000000e+00 : f32
    %204 = vector.broadcast %cst_44 : f32 to vector<1x32xf32>
    %205 = arith.addf %204, %203 : vector<1x32xf32>
    %206 = arith.divf %204, %205 : vector<1x32xf32>
    %207 = arith.mulf %198, %180 : vector<1x32xf32>
    %208 = arith.mulf %192, %200 : vector<1x32xf32>
    %209 = arith.addf %207, %208 : vector<1x32xf32>
    %210 = math.tanh %209 : vector<1x32xf32>
    %211 = arith.mulf %206, %210 : vector<1x32xf32>
    %c6 = arith.constant 6 : index
    %c0_45 = arith.constant 0 : index
    %212 = vector.load %arg22[%c6, %c0_45] : memref<16x32xf32, #tpu.memory_space<vmem>>, vector<1x32xf32>
    tpu.vector_store %arg22[%c6, %c0_45], %211 {strides = array<i32>} : memref<16x32xf32, #tpu.memory_space<vmem>>, vector<1x32xf32>,
    %213 = vector.extract_strided_slice %6 {offsets = [7, 0], sizes = [1, 128], strides = [1, 1]} : vector<16x128xf32> to vector<1x128xf32>
    %cst_46 = arith.constant dense<0.000000e+00> : vector<1x128xf32>
    %214 = tpu.matmul %211, %7, %cst_46 {dimension_numbers = #tpu.dot_dimension_numbers<[1], [0], [0], [1], [0, 0, 1, 1], [], []>} : vector<1x32xf32>, vector<32x128xf32>, vector<1x128xf32> -> vector<1x128xf32>
    %215 = arith.addf %213, %214 : vector<1x128xf32>
    %216 = vector.extract_strided_slice %215 {offsets = [0, 0], sizes = [1, 32], strides = [1, 1]} : vector<1x128xf32> to vector<1x32xf32>
    %217 = arith.negf %216 : vector<1x32xf32>
    %218 = math.exp %217 : vector<1x32xf32>
    %cst_47 = arith.constant 1.000000e+00 : f32
    %219 = vector.broadcast %cst_47 : f32 to vector<1x32xf32>
    %220 = arith.addf %219, %218 : vector<1x32xf32>
    %221 = arith.divf %219, %220 : vector<1x32xf32>
    %222 = vector.extract_strided_slice %215 {offsets = [0, 32], sizes = [1, 32], strides = [1, 1]} : vector<1x128xf32> to vector<1x32xf32>
    %223 = arith.negf %222 : vector<1x32xf32>
    %224 = math.exp %223 : vector<1x32xf32>
    %cst_48 = arith.constant 1.000000e+00 : f32
    %225 = vector.broadcast %cst_48 : f32 to vector<1x32xf32>
    %226 = arith.addf %225, %224 : vector<1x32xf32>
    %227 = arith.divf %225, %226 : vector<1x32xf32>
    %228 = vector.extract_strided_slice %215 {offsets = [0, 64], sizes = [1, 32], strides = [1, 1]} : vector<1x128xf32> to vector<1x32xf32>
    %229 = math.tanh %228 : vector<1x32xf32>
    %230 = vector.extract_strided_slice %215 {offsets = [0, 96], sizes = [1, 32], strides = [1, 1]} : vector<1x128xf32> to vector<1x32xf32>
    %231 = arith.negf %230 : vector<1x32xf32>
    %232 = math.exp %231 : vector<1x32xf32>
    %cst_49 = arith.constant 1.000000e+00 : f32
    %233 = vector.broadcast %cst_49 : f32 to vector<1x32xf32>
    %234 = arith.addf %233, %232 : vector<1x32xf32>
    %235 = arith.divf %233, %234 : vector<1x32xf32>
    %236 = arith.mulf %227, %209 : vector<1x32xf32>
    %237 = arith.mulf %221, %229 : vector<1x32xf32>
    %238 = arith.addf %236, %237 : vector<1x32xf32>
    %239 = math.tanh %238 : vector<1x32xf32>
    %240 = arith.mulf %235, %239 : vector<1x32xf32>
    %c7 = arith.constant 7 : index
    %c0_50 = arith.constant 0 : index
    %241 = vector.load %arg22[%c7, %c0_50] : memref<16x32xf32, #tpu.memory_space<vmem>>, vector<1x32xf32>
    tpu.vector_store %arg22[%c7, %c0_50], %240 {strides = array<i32>} : memref<16x32xf32, #tpu.memory_space<vmem>>, vector<1x32xf32>,
    %242 = vector.extract_strided_slice %6 {offsets = [8, 0], sizes = [1, 128], strides = [1, 1]} : vector<16x128xf32> to vector<1x128xf32>
    %cst_51 = arith.constant dense<0.000000e+00> : vector<1x128xf32>
    %243 = tpu.matmul %240, %7, %cst_51 {dimension_numbers = #tpu.dot_dimension_numbers<[1], [0], [0], [1], [0, 0, 1, 1], [], []>} : vector<1x32xf32>, vector<32x128xf32>, vector<1x128xf32> -> vector<1x128xf32>
    %244 = arith.addf %242, %243 : vector<1x128xf32>
    %245 = vector.extract_strided_slice %244 {offsets = [0, 0], sizes = [1, 32], strides = [1, 1]} : vector<1x128xf32> to vector<1x32xf32>
    %246 = arith.negf %245 : vector<1x32xf32>
    %247 = math.exp %246 : vector<1x32xf32>
    %cst_52 = arith.constant 1.000000e+00 : f32
    %248 = vector.broadcast %cst_52 : f32 to vector<1x32xf32>
    %249 = arith.addf %248, %247 : vector<1x32xf32>
    %250 = arith.divf %248, %249 : vector<1x32xf32>
    %251 = vector.extract_strided_slice %244 {offsets = [0, 32], sizes = [1, 32], strides = [1, 1]} : vector<1x128xf32> to vector<1x32xf32>
    %252 = arith.negf %251 : vector<1x32xf32>
    %253 = math.exp %252 : vector<1x32xf32>
    %cst_53 = arith.constant 1.000000e+00 : f32
    %254 = vector.broadcast %cst_53 : f32 to vector<1x32xf32>
    %255 = arith.addf %254, %253 : vector<1x32xf32>
    %256 = arith.divf %254, %255 : vector<1x32xf32>
    %257 = vector.extract_strided_slice %244 {offsets = [0, 64], sizes = [1, 32], strides = [1, 1]} : vector<1x128xf32> to vector<1x32xf32>
    %258 = math.tanh %257 : vector<1x32xf32>
    %259 = vector.extract_strided_slice %244 {offsets = [0, 96], sizes = [1, 32], strides = [1, 1]} : vector<1x128xf32> to vector<1x32xf32>
    %260 = arith.negf %259 : vector<1x32xf32>
    %261 = math.exp %260 : vector<1x32xf32>
    %cst_54 = arith.constant 1.000000e+00 : f32
    %262 = vector.broadcast %cst_54 : f32 to vector<1x32xf32>
    %263 = arith.addf %262, %261 : vector<1x32xf32>
    %264 = arith.divf %262, %263 : vector<1x32xf32>
    %265 = arith.mulf %256, %238 : vector<1x32xf32>
    %266 = arith.mulf %250, %258 : vector<1x32xf32>
    %267 = arith.addf %265, %266 : vector<1x32xf32>
    %268 = math.tanh %267 : vector<1x32xf32>
    %269 = arith.mulf %264, %268 : vector<1x32xf32>
    %c8 = arith.constant 8 : index
    %c0_55 = arith.constant 0 : index
    %270 = vector.load %arg22[%c8, %c0_55] : memref<16x32xf32, #tpu.memory_space<vmem>>, vector<1x32xf32>
    tpu.vector_store %arg22[%c8, %c0_55], %269 {strides = array<i32>} : memref<16x32xf32, #tpu.memory_space<vmem>>, vector<1x32xf32>,
    %271 = vector.extract_strided_slice %6 {offsets = [9, 0], sizes = [1, 128], strides = [1, 1]} : vector<16x128xf32> to vector<1x128xf32>
    %cst_56 = arith.constant dense<0.000000e+00> : vector<1x128xf32>
    %272 = tpu.matmul %269, %7, %cst_56 {dimension_numbers = #tpu.dot_dimension_numbers<[1], [0], [0], [1], [0, 0, 1, 1], [], []>} : vector<1x32xf32>, vector<32x128xf32>, vector<1x128xf32> -> vector<1x128xf32>
    %273 = arith.addf %271, %272 : vector<1x128xf32>
    %274 = vector.extract_strided_slice %273 {offsets = [0, 0], sizes = [1, 32], strides = [1, 1]} : vector<1x128xf32> to vector<1x32xf32>
    %275 = arith.negf %274 : vector<1x32xf32>
    %276 = math.exp %275 : vector<1x32xf32>
    %cst_57 = arith.constant 1.000000e+00 : f32
    %277 = vector.broadcast %cst_57 : f32 to vector<1x32xf32>
    %278 = arith.addf %277, %276 : vector<1x32xf32>
    %279 = arith.divf %277, %278 : vector<1x32xf32>
    %280 = vector.extract_strided_slice %273 {offsets = [0, 32], sizes = [1, 32], strides = [1, 1]} : vector<1x128xf32> to vector<1x32xf32>
    %281 = arith.negf %280 : vector<1x32xf32>
    %282 = math.exp %281 : vector<1x32xf32>
    %cst_58 = arith.constant 1.000000e+00 : f32
    %283 = vector.broadcast %cst_58 : f32 to vector<1x32xf32>
    %284 = arith.addf %283, %282 : vector<1x32xf32>
    %285 = arith.divf %283, %284 : vector<1x32xf32>
    %286 = vector.extract_strided_slice %273 {offsets = [0, 64], sizes = [1, 32], strides = [1, 1]} : vector<1x128xf32> to vector<1x32xf32>
    %287 = math.tanh %286 : vector<1x32xf32>
    %288 = vector.extract_strided_slice %273 {offsets = [0, 96], sizes = [1, 32], strides = [1, 1]} : vector<1x128xf32> to vector<1x32xf32>
    %289 = arith.negf %288 : vector<1x32xf32>
    %290 = math.exp %289 : vector<1x32xf32>
    %cst_59 = arith.constant 1.000000e+00 : f32
    %291 = vector.broadcast %cst_59 : f32 to vector<1x32xf32>
    %292 = arith.addf %291, %290 : vector<1x32xf32>
    %293 = arith.divf %291, %292 : vector<1x32xf32>
    %294 = arith.mulf %285, %267 : vector<1x32xf32>
    %295 = arith.mulf %279, %287 : vector<1x32xf32>
    %296 = arith.addf %294, %295 : vector<1x32xf32>
    %297 = math.tanh %296 : vector<1x32xf32>
    %298 = arith.mulf %293, %297 : vector<1x32xf32>
    %c9 = arith.constant 9 : index
    %c0_60 = arith.constant 0 : index
    %299 = vector.load %arg22[%c9, %c0_60] : memref<16x32xf32, #tpu.memory_space<vmem>>, vector<1x32xf32>
    tpu.vector_store %arg22[%c9, %c0_60], %298 {strides = array<i32>} : memref<16x32xf32, #tpu.memory_space<vmem>>, vector<1x32xf32>,
    %300 = vector.extract_strided_slice %6 {offsets = [10, 0], sizes = [1, 128], strides = [1, 1]} : vector<16x128xf32> to vector<1x128xf32>
    %cst_61 = arith.constant dense<0.000000e+00> : vector<1x128xf32>
    %301 = tpu.matmul %298, %7, %cst_61 {dimension_numbers = #tpu.dot_dimension_numbers<[1], [0], [0], [1], [0, 0, 1, 1], [], []>} : vector<1x32xf32>, vector<32x128xf32>, vector<1x128xf32> -> vector<1x128xf32>
    %302 = arith.addf %300, %301 : vector<1x128xf32>
    %303 = vector.extract_strided_slice %302 {offsets = [0, 0], sizes = [1, 32], strides = [1, 1]} : vector<1x128xf32> to vector<1x32xf32>
    %304 = arith.negf %303 : vector<1x32xf32>
    %305 = math.exp %304 : vector<1x32xf32>
    %cst_62 = arith.constant 1.000000e+00 : f32
    %306 = vector.broadcast %cst_62 : f32 to vector<1x32xf32>
    %307 = arith.addf %306, %305 : vector<1x32xf32>
    %308 = arith.divf %306, %307 : vector<1x32xf32>
    %309 = vector.extract_strided_slice %302 {offsets = [0, 32], sizes = [1, 32], strides = [1, 1]} : vector<1x128xf32> to vector<1x32xf32>
    %310 = arith.negf %309 : vector<1x32xf32>
    %311 = math.exp %310 : vector<1x32xf32>
    %cst_63 = arith.constant 1.000000e+00 : f32
    %312 = vector.broadcast %cst_63 : f32 to vector<1x32xf32>
    %313 = arith.addf %312, %311 : vector<1x32xf32>
    %314 = arith.divf %312, %313 : vector<1x32xf32>
    %315 = vector.extract_strided_slice %302 {offsets = [0, 64], sizes = [1, 32], strides = [1, 1]} : vector<1x128xf32> to vector<1x32xf32>
    %316 = math.tanh %315 : vector<1x32xf32>
    %317 = vector.extract_strided_slice %302 {offsets = [0, 96], sizes = [1, 32], strides = [1, 1]} : vector<1x128xf32> to vector<1x32xf32>
    %318 = arith.negf %317 : vector<1x32xf32>
    %319 = math.exp %318 : vector<1x32xf32>
    %cst_64 = arith.constant 1.000000e+00 : f32
    %320 = vector.broadcast %cst_64 : f32 to vector<1x32xf32>
    %321 = arith.addf %320, %319 : vector<1x32xf32>
    %322 = arith.divf %320, %321 : vector<1x32xf32>
    %323 = arith.mulf %314, %296 : vector<1x32xf32>
    %324 = arith.mulf %308, %316 : vector<1x32xf32>
    %325 = arith.addf %323, %324 : vector<1x32xf32>
    %326 = math.tanh %325 : vector<1x32xf32>
    %327 = arith.mulf %322, %326 : vector<1x32xf32>
    %c10 = arith.constant 10 : index
    %c0_65 = arith.constant 0 : index
    %328 = vector.load %arg22[%c10, %c0_65] : memref<16x32xf32, #tpu.memory_space<vmem>>, vector<1x32xf32>
    tpu.vector_store %arg22[%c10, %c0_65], %327 {strides = array<i32>} : memref<16x32xf32, #tpu.memory_space<vmem>>, vector<1x32xf32>,
    %329 = vector.extract_strided_slice %6 {offsets = [11, 0], sizes = [1, 128], strides = [1, 1]} : vector<16x128xf32> to vector<1x128xf32>
    %cst_66 = arith.constant dense<0.000000e+00> : vector<1x128xf32>
    %330 = tpu.matmul %327, %7, %cst_66 {dimension_numbers = #tpu.dot_dimension_numbers<[1], [0], [0], [1], [0, 0, 1, 1], [], []>} : vector<1x32xf32>, vector<32x128xf32>, vector<1x128xf32> -> vector<1x128xf32>
    %331 = arith.addf %329, %330 : vector<1x128xf32>
    %332 = vector.extract_strided_slice %331 {offsets = [0, 0], sizes = [1, 32], strides = [1, 1]} : vector<1x128xf32> to vector<1x32xf32>
    %333 = arith.negf %332 : vector<1x32xf32>
    %334 = math.exp %333 : vector<1x32xf32>
    %cst_67 = arith.constant 1.000000e+00 : f32
    %335 = vector.broadcast %cst_67 : f32 to vector<1x32xf32>
    %336 = arith.addf %335, %334 : vector<1x32xf32>
    %337 = arith.divf %335, %336 : vector<1x32xf32>
    %338 = vector.extract_strided_slice %331 {offsets = [0, 32], sizes = [1, 32], strides = [1, 1]} : vector<1x128xf32> to vector<1x32xf32>
    %339 = arith.negf %338 : vector<1x32xf32>
    %340 = math.exp %339 : vector<1x32xf32>
    %cst_68 = arith.constant 1.000000e+00 : f32
    %341 = vector.broadcast %cst_68 : f32 to vector<1x32xf32>
    %342 = arith.addf %341, %340 : vector<1x32xf32>
    %343 = arith.divf %341, %342 : vector<1x32xf32>
    %344 = vector.extract_strided_slice %331 {offsets = [0, 64], sizes = [1, 32], strides = [1, 1]} : vector<1x128xf32> to vector<1x32xf32>
    %345 = math.tanh %344 : vector<1x32xf32>
    %346 = vector.extract_strided_slice %331 {offsets = [0, 96], sizes = [1, 32], strides = [1, 1]} : vector<1x128xf32> to vector<1x32xf32>
    %347 = arith.negf %346 : vector<1x32xf32>
    %348 = math.exp %347 : vector<1x32xf32>
    %cst_69 = arith.constant 1.000000e+00 : f32
    %349 = vector.broadcast %cst_69 : f32 to vector<1x32xf32>
    %350 = arith.addf %349, %348 : vector<1x32xf32>
    %351 = arith.divf %349, %350 : vector<1x32xf32>
    %352 = arith.mulf %343, %325 : vector<1x32xf32>
    %353 = arith.mulf %337, %345 : vector<1x32xf32>
    %354 = arith.addf %352, %353 : vector<1x32xf32>
    %355 = math.tanh %354 : vector<1x32xf32>
    %356 = arith.mulf %351, %355 : vector<1x32xf32>
    %c11 = arith.constant 11 : index
    %c0_70 = arith.constant 0 : index
    %357 = vector.load %arg22[%c11, %c0_70] : memref<16x32xf32, #tpu.memory_space<vmem>>, vector<1x32xf32>
    tpu.vector_store %arg22[%c11, %c0_70], %356 {strides = array<i32>} : memref<16x32xf32, #tpu.memory_space<vmem>>, vector<1x32xf32>,
    %358 = vector.extract_strided_slice %6 {offsets = [12, 0], sizes = [1, 128], strides = [1, 1]} : vector<16x128xf32> to vector<1x128xf32>
    %cst_71 = arith.constant dense<0.000000e+00> : vector<1x128xf32>
    %359 = tpu.matmul %356, %7, %cst_71 {dimension_numbers = #tpu.dot_dimension_numbers<[1], [0], [0], [1], [0, 0, 1, 1], [], []>} : vector<1x32xf32>, vector<32x128xf32>, vector<1x128xf32> -> vector<1x128xf32>
    %360 = arith.addf %358, %359 : vector<1x128xf32>
    %361 = vector.extract_strided_slice %360 {offsets = [0, 0], sizes = [1, 32], strides = [1, 1]} : vector<1x128xf32> to vector<1x32xf32>
    %362 = arith.negf %361 : vector<1x32xf32>
    %363 = math.exp %362 : vector<1x32xf32>
    %cst_72 = arith.constant 1.000000e+00 : f32
    %364 = vector.broadcast %cst_72 : f32 to vector<1x32xf32>
    %365 = arith.addf %364, %363 : vector<1x32xf32>
    %366 = arith.divf %364, %365 : vector<1x32xf32>
    %367 = vector.extract_strided_slice %360 {offsets = [0, 32], sizes = [1, 32], strides = [1, 1]} : vector<1x128xf32> to vector<1x32xf32>
    %368 = arith.negf %367 : vector<1x32xf32>
    %369 = math.exp %368 : vector<1x32xf32>
    %cst_73 = arith.constant 1.000000e+00 : f32
    %370 = vector.broadcast %cst_73 : f32 to vector<1x32xf32>
    %371 = arith.addf %370, %369 : vector<1x32xf32>
    %372 = arith.divf %370, %371 : vector<1x32xf32>
    %373 = vector.extract_strided_slice %360 {offsets = [0, 64], sizes = [1, 32], strides = [1, 1]} : vector<1x128xf32> to vector<1x32xf32>
    %374 = math.tanh %373 : vector<1x32xf32>
    %375 = vector.extract_strided_slice %360 {offsets = [0, 96], sizes = [1, 32], strides = [1, 1]} : vector<1x128xf32> to vector<1x32xf32>
    %376 = arith.negf %375 : vector<1x32xf32>
    %377 = math.exp %376 : vector<1x32xf32>
    %cst_74 = arith.constant 1.000000e+00 : f32
    %378 = vector.broadcast %cst_74 : f32 to vector<1x32xf32>
    %379 = arith.addf %378, %377 : vector<1x32xf32>
    %380 = arith.divf %378, %379 : vector<1x32xf32>
    %381 = arith.mulf %372, %354 : vector<1x32xf32>
    %382 = arith.mulf %366, %374 : vector<1x32xf32>
    %383 = arith.addf %381, %382 : vector<1x32xf32>
    %384 = math.tanh %383 : vector<1x32xf32>
    %385 = arith.mulf %380, %384 : vector<1x32xf32>
    %c12 = arith.constant 12 : index
    %c0_75 = arith.constant 0 : index
    %386 = vector.load %arg22[%c12, %c0_75] : memref<16x32xf32, #tpu.memory_space<vmem>>, vector<1x32xf32>
    tpu.vector_store %arg22[%c12, %c0_75], %385 {strides = array<i32>} : memref<16x32xf32, #tpu.memory_space<vmem>>, vector<1x32xf32>,
    %387 = vector.extract_strided_slice %6 {offsets = [13, 0], sizes = [1, 128], strides = [1, 1]} : vector<16x128xf32> to vector<1x128xf32>
    %cst_76 = arith.constant dense<0.000000e+00> : vector<1x128xf32>
    %388 = tpu.matmul %385, %7, %cst_76 {dimension_numbers = #tpu.dot_dimension_numbers<[1], [0], [0], [1], [0, 0, 1, 1], [], []>} : vector<1x32xf32>, vector<32x128xf32>, vector<1x128xf32> -> vector<1x128xf32>
    %389 = arith.addf %387, %388 : vector<1x128xf32>
    %390 = vector.extract_strided_slice %389 {offsets = [0, 0], sizes = [1, 32], strides = [1, 1]} : vector<1x128xf32> to vector<1x32xf32>
    %391 = arith.negf %390 : vector<1x32xf32>
    %392 = math.exp %391 : vector<1x32xf32>
    %cst_77 = arith.constant 1.000000e+00 : f32
    %393 = vector.broadcast %cst_77 : f32 to vector<1x32xf32>
    %394 = arith.addf %393, %392 : vector<1x32xf32>
    %395 = arith.divf %393, %394 : vector<1x32xf32>
    %396 = vector.extract_strided_slice %389 {offsets = [0, 32], sizes = [1, 32], strides = [1, 1]} : vector<1x128xf32> to vector<1x32xf32>
    %397 = arith.negf %396 : vector<1x32xf32>
    %398 = math.exp %397 : vector<1x32xf32>
    %cst_78 = arith.constant 1.000000e+00 : f32
    %399 = vector.broadcast %cst_78 : f32 to vector<1x32xf32>
    %400 = arith.addf %399, %398 : vector<1x32xf32>
    %401 = arith.divf %399, %400 : vector<1x32xf32>
    %402 = vector.extract_strided_slice %389 {offsets = [0, 64], sizes = [1, 32], strides = [1, 1]} : vector<1x128xf32> to vector<1x32xf32>
    %403 = math.tanh %402 : vector<1x32xf32>
    %404 = vector.extract_strided_slice %389 {offsets = [0, 96], sizes = [1, 32], strides = [1, 1]} : vector<1x128xf32> to vector<1x32xf32>
    %405 = arith.negf %404 : vector<1x32xf32>
    %406 = math.exp %405 : vector<1x32xf32>
    %cst_79 = arith.constant 1.000000e+00 : f32
    %407 = vector.broadcast %cst_79 : f32 to vector<1x32xf32>
    %408 = arith.addf %407, %406 : vector<1x32xf32>
    %409 = arith.divf %407, %408 : vector<1x32xf32>
    %410 = arith.mulf %401, %383 : vector<1x32xf32>
    %411 = arith.mulf %395, %403 : vector<1x32xf32>
    %412 = arith.addf %410, %411 : vector<1x32xf32>
    %413 = math.tanh %412 : vector<1x32xf32>
    %414 = arith.mulf %409, %413 : vector<1x32xf32>
    %c13 = arith.constant 13 : index
    %c0_80 = arith.constant 0 : index
    %415 = vector.load %arg22[%c13, %c0_80] : memref<16x32xf32, #tpu.memory_space<vmem>>, vector<1x32xf32>
    tpu.vector_store %arg22[%c13, %c0_80], %414 {strides = array<i32>} : memref<16x32xf32, #tpu.memory_space<vmem>>, vector<1x32xf32>,
    %416 = vector.extract_strided_slice %6 {offsets = [14, 0], sizes = [1, 128], strides = [1, 1]} : vector<16x128xf32> to vector<1x128xf32>
    %cst_81 = arith.constant dense<0.000000e+00> : vector<1x128xf32>
    %417 = tpu.matmul %414, %7, %cst_81 {dimension_numbers = #tpu.dot_dimension_numbers<[1], [0], [0], [1], [0, 0, 1, 1], [], []>} : vector<1x32xf32>, vector<32x128xf32>, vector<1x128xf32> -> vector<1x128xf32>
    %418 = arith.addf %416, %417 : vector<1x128xf32>
    %419 = vector.extract_strided_slice %418 {offsets = [0, 0], sizes = [1, 32], strides = [1, 1]} : vector<1x128xf32> to vector<1x32xf32>
    %420 = arith.negf %419 : vector<1x32xf32>
    %421 = math.exp %420 : vector<1x32xf32>
    %cst_82 = arith.constant 1.000000e+00 : f32
    %422 = vector.broadcast %cst_82 : f32 to vector<1x32xf32>
    %423 = arith.addf %422, %421 : vector<1x32xf32>
    %424 = arith.divf %422, %423 : vector<1x32xf32>
    %425 = vector.extract_strided_slice %418 {offsets = [0, 32], sizes = [1, 32], strides = [1, 1]} : vector<1x128xf32> to vector<1x32xf32>
    %426 = arith.negf %425 : vector<1x32xf32>
    %427 = math.exp %426 : vector<1x32xf32>
    %cst_83 = arith.constant 1.000000e+00 : f32
    %428 = vector.broadcast %cst_83 : f32 to vector<1x32xf32>
    %429 = arith.addf %428, %427 : vector<1x32xf32>
    %430 = arith.divf %428, %429 : vector<1x32xf32>
    %431 = vector.extract_strided_slice %418 {offsets = [0, 64], sizes = [1, 32], strides = [1, 1]} : vector<1x128xf32> to vector<1x32xf32>
    %432 = math.tanh %431 : vector<1x32xf32>
    %433 = vector.extract_strided_slice %418 {offsets = [0, 96], sizes = [1, 32], strides = [1, 1]} : vector<1x128xf32> to vector<1x32xf32>
    %434 = arith.negf %433 : vector<1x32xf32>
    %435 = math.exp %434 : vector<1x32xf32>
    %cst_84 = arith.constant 1.000000e+00 : f32
    %436 = vector.broadcast %cst_84 : f32 to vector<1x32xf32>
    %437 = arith.addf %436, %435 : vector<1x32xf32>
    %438 = arith.divf %436, %437 : vector<1x32xf32>
    %439 = arith.mulf %430, %412 : vector<1x32xf32>
    %440 = arith.mulf %424, %432 : vector<1x32xf32>
    %441 = arith.addf %439, %440 : vector<1x32xf32>
    %442 = math.tanh %441 : vector<1x32xf32>
    %443 = arith.mulf %438, %442 : vector<1x32xf32>
    %c14 = arith.constant 14 : index
    %c0_85 = arith.constant 0 : index
    %444 = vector.load %arg22[%c14, %c0_85] : memref<16x32xf32, #tpu.memory_space<vmem>>, vector<1x32xf32>
    tpu.vector_store %arg22[%c14, %c0_85], %443 {strides = array<i32>} : memref<16x32xf32, #tpu.memory_space<vmem>>, vector<1x32xf32>,
    %445 = vector.extract_strided_slice %6 {offsets = [15, 0], sizes = [1, 128], strides = [1, 1]} : vector<16x128xf32> to vector<1x128xf32>
    %cst_86 = arith.constant dense<0.000000e+00> : vector<1x128xf32>
    %446 = tpu.matmul %443, %7, %cst_86 {dimension_numbers = #tpu.dot_dimension_numbers<[1], [0], [0], [1], [0, 0, 1, 1], [], []>} : vector<1x32xf32>, vector<32x128xf32>, vector<1x128xf32> -> vector<1x128xf32>
    %447 = arith.addf %445, %446 : vector<1x128xf32>
    %448 = vector.extract_strided_slice %447 {offsets = [0, 0], sizes = [1, 32], strides = [1, 1]} : vector<1x128xf32> to vector<1x32xf32>
    %449 = arith.negf %448 : vector<1x32xf32>
    %450 = math.exp %449 : vector<1x32xf32>
    %cst_87 = arith.constant 1.000000e+00 : f32
    %451 = vector.broadcast %cst_87 : f32 to vector<1x32xf32>
    %452 = arith.addf %451, %450 : vector<1x32xf32>
    %453 = arith.divf %451, %452 : vector<1x32xf32>
    %454 = vector.extract_strided_slice %447 {offsets = [0, 32], sizes = [1, 32], strides = [1, 1]} : vector<1x128xf32> to vector<1x32xf32>
    %455 = arith.negf %454 : vector<1x32xf32>
    %456 = math.exp %455 : vector<1x32xf32>
    %cst_88 = arith.constant 1.000000e+00 : f32
    %457 = vector.broadcast %cst_88 : f32 to vector<1x32xf32>
    %458 = arith.addf %457, %456 : vector<1x32xf32>
    %459 = arith.divf %457, %458 : vector<1x32xf32>
    %460 = vector.extract_strided_slice %447 {offsets = [0, 64], sizes = [1, 32], strides = [1, 1]} : vector<1x128xf32> to vector<1x32xf32>
    %461 = math.tanh %460 : vector<1x32xf32>
    %462 = vector.extract_strided_slice %447 {offsets = [0, 96], sizes = [1, 32], strides = [1, 1]} : vector<1x128xf32> to vector<1x32xf32>
    %463 = arith.negf %462 : vector<1x32xf32>
    %464 = math.exp %463 : vector<1x32xf32>
    %cst_89 = arith.constant 1.000000e+00 : f32
    %465 = vector.broadcast %cst_89 : f32 to vector<1x32xf32>
    %466 = arith.addf %465, %464 : vector<1x32xf32>
    %467 = arith.divf %465, %466 : vector<1x32xf32>
    %468 = arith.mulf %459, %441 : vector<1x32xf32>
    %469 = arith.mulf %453, %461 : vector<1x32xf32>
    %470 = arith.addf %468, %469 : vector<1x32xf32>
    %471 = math.tanh %470 : vector<1x32xf32>
    %472 = arith.mulf %467, %471 : vector<1x32xf32>
    %c15 = arith.constant 15 : index
    %c0_90 = arith.constant 0 : index
    %473 = vector.load %arg22[%c15, %c0_90] : memref<16x32xf32, #tpu.memory_space<vmem>>, vector<1x32xf32>
    tpu.vector_store %arg22[%c15, %c0_90], %472 {strides = array<i32>} : memref<16x32xf32, #tpu.memory_space<vmem>>, vector<1x32xf32>,
    %c0_91 = arith.constant 0 : index
    %c0_92 = arith.constant 0 : index
    %474 = vector.load %arg22[%c0_91, %c0_92] : memref<16x32xf32, #tpu.memory_space<vmem>>, vector<16x32xf32>
    %c0_93 = arith.constant 0 : index
    %c0_94 = arith.constant 0 : index
    %475 = vector.load %arg5[%c0_93, %c0_94] : memref<32x32xf32, #tpu.memory_space<vmem>>, vector<32x32xf32>
    %cst_95 = arith.constant dense<0.000000e+00> : vector<16x32xf32>
    %476 = tpu.matmul %474, %475, %cst_95 {dimension_numbers = #tpu.dot_dimension_numbers<[1], [0], [0], [1], [0, 0, 1, 1], [], []>} : vector<16x32xf32>, vector<32x32xf32>, vector<16x32xf32> -> vector<16x32xf32>
    %c0_96 = arith.constant 0 : index
    %c0_97 = arith.constant 0 : index
    %477 = vector.load %arg6[%c0_96, %c0_97] : memref<1x32xf32, #tpu.memory_space<vmem>>, vector<1x32xf32>
    %478 = vector.broadcast %477 : vector<1x32xf32> to vector<16x32xf32>
    %479 = arith.addf %476, %478 : vector<16x32xf32>
    %cst_98 = arith.constant 0.000000e+00 : f32
    %480 = vector.broadcast %cst_98 : f32 to vector<16x32xf32>
    %481 = arith.maximumf %479, %480 : vector<16x32xf32>
    %c0_99 = arith.constant 0 : index
    %c0_100 = arith.constant 0 : index
    %482 = vector.load %arg7[%c0_99, %c0_100] : memref<16x1xf32, #tpu.memory_space<vmem>>, vector<16x1xf32>
    %483 = vector.broadcast %482 : vector<16x1xf32> to vector<16x32xf32>
    %484 = arith.mulf %481, %483 : vector<16x32xf32>
    %c0_101 = arith.constant 0 : index
    %c0_102 = arith.constant 0 : index
    %485 = vector.load %arg8[%c0_101, %c0_102] : memref<16x1xf32, #tpu.memory_space<vmem>>, vector<16x1xf32>
    %486 = vector.broadcast %485 : vector<16x1xf32> to vector<16x32xf32>
    %487 = arith.addf %484, %486 : vector<16x32xf32>
    %c0_103 = arith.constant 0 : index
    %c0_104 = arith.constant 0 : index
    %488 = vector.load %arg9[%c0_103, %c0_104] : memref<32x2xf32, #tpu.memory_space<vmem>>, vector<32x2xf32>
    %cst_105 = arith.constant dense<0.000000e+00> : vector<16x2xf32>
    %489 = tpu.matmul %487, %488, %cst_105 {dimension_numbers = #tpu.dot_dimension_numbers<[1], [0], [0], [1], [0, 0, 1, 1], [], []>} : vector<16x32xf32>, vector<32x2xf32>, vector<16x2xf32> -> vector<16x2xf32>
    %c0_106 = arith.constant 0 : index
    %c0_107 = arith.constant 0 : index
    %490 = vector.load %arg10[%c0_106, %c0_107] : memref<1x2xf32, #tpu.memory_space<vmem>>, vector<1x2xf32>
    %491 = vector.broadcast %490 : vector<1x2xf32> to vector<16x2xf32>
    %492 = arith.addf %489, %491 : vector<16x2xf32>
    %cst_108 = arith.constant 0.000000e+00 : f32
    %493 = vector.broadcast %cst_108 : f32 to vector<16x2xf32>
    %494 = arith.maximumf %492, %493 : vector<16x2xf32>
    %c0_109 = arith.constant 0 : index
    %c0_110 = arith.constant 0 : index
    %495 = vector.load %arg11[%c0_109, %c0_110] : memref<64x16xf32, #tpu.memory_space<vmem>>, vector<64x16xf32>
    %cst_111 = arith.constant dense<0.000000e+00> : vector<64x2xf32>
    %496 = tpu.matmul %495, %494, %cst_111 {dimension_numbers = #tpu.dot_dimension_numbers<[1], [0], [0], [1], [0, 0, 1, 1], [], []>} : vector<64x16xf32>, vector<16x2xf32>, vector<64x2xf32> -> vector<64x2xf32>
    %c0_112 = arith.constant 0 : index
    %c0_113 = arith.constant 0 : index
    %497 = vector.load %arg12[%c0_112, %c0_113] : memref<64x1xf32, #tpu.memory_space<vmem>>, vector<64x1xf32>
    %498 = vector.broadcast %497 : vector<64x1xf32> to vector<64x2xf32>
    %499 = arith.addf %496, %498 : vector<64x2xf32>
    %cst_114 = arith.constant 0.000000e+00 : f32
    %500 = vector.broadcast %cst_114 : f32 to vector<64x2xf32>
    %501 = arith.maximumf %499, %500 : vector<64x2xf32>
    %c0_115 = arith.constant 0 : index
    %c0_116 = arith.constant 0 : index
    %502 = vector.load %arg13[%c0_115, %c0_116] : memref<1x2xf32, #tpu.memory_space<vmem>>, vector<1x2xf32>
    %503 = vector.broadcast %502 : vector<1x2xf32> to vector<64x2xf32>
    %504 = arith.mulf %501, %503 : vector<64x2xf32>
    %c0_117 = arith.constant 0 : index
    %c0_118 = arith.constant 0 : index
    %505 = vector.load %arg14[%c0_117, %c0_118] : memref<1x2xf32, #tpu.memory_space<vmem>>, vector<1x2xf32>
    %506 = vector.broadcast %505 : vector<1x2xf32> to vector<64x2xf32>
    %507 = arith.addf %504, %506 : vector<64x2xf32>
    %c0_119 = arith.constant 0 : index
    %c0_120 = arith.constant 0 : index
    %508 = vector.load %arg15[%c0_119, %c0_120] : memref<16x64xf32, #tpu.memory_space<vmem>>, vector<16x64xf32>
    %cst_121 = arith.constant dense<0.000000e+00> : vector<16x2xf32>
    %509 = tpu.matmul %508, %507, %cst_121 {dimension_numbers = #tpu.dot_dimension_numbers<[1], [0], [0], [1], [0, 0, 1, 1], [], []>} : vector<16x64xf32>, vector<64x2xf32>, vector<16x2xf32> -> vector<16x2xf32>
    %c0_122 = arith.constant 0 : index
    %c0_123 = arith.constant 0 : index
    %510 = vector.load %arg16[%c0_122, %c0_123] : memref<16x1xf32, #tpu.memory_space<vmem>>, vector<16x1xf32>
    %511 = vector.broadcast %510 : vector<16x1xf32> to vector<16x2xf32>
    %512 = arith.addf %509, %511 : vector<16x2xf32>
    %cst_124 = arith.constant 0.000000e+00 : f32
    %513 = vector.broadcast %cst_124 : f32 to vector<16x2xf32>
    %514 = arith.maximumf %512, %513 : vector<16x2xf32>
    %c0_125 = arith.constant 0 : index
    %c0_126 = arith.constant 0 : index
    %515 = vector.load %arg17[%c0_125, %c0_126] : memref<1x2xf32, #tpu.memory_space<vmem>>, vector<1x2xf32>
    %516 = vector.broadcast %515 : vector<1x2xf32> to vector<16x2xf32>
    %517 = arith.mulf %514, %516 : vector<16x2xf32>
    %c0_127 = arith.constant 0 : index
    %c0_128 = arith.constant 0 : index
    %518 = vector.load %arg18[%c0_127, %c0_128] : memref<1x2xf32, #tpu.memory_space<vmem>>, vector<1x2xf32>
    %519 = vector.broadcast %518 : vector<1x2xf32> to vector<16x2xf32>
    %520 = arith.addf %517, %519 : vector<16x2xf32>
    %c0_129 = arith.constant 0 : index
    %c0_130 = arith.constant 0 : index
    %521 = vector.load %arg19[%c0_129, %c0_130] : memref<1x16xf32, #tpu.memory_space<vmem>>, vector<1x16xf32>
    %cst_131 = arith.constant dense<0.000000e+00> : vector<1x2xf32>
    %522 = tpu.matmul %521, %520, %cst_131 {dimension_numbers = #tpu.dot_dimension_numbers<[1], [0], [0], [1], [0, 0, 1, 1], [], []>} : vector<1x16xf32>, vector<16x2xf32>, vector<1x2xf32> -> vector<1x2xf32>
    %c0_132 = arith.constant 0 : index
    %c0_133 = arith.constant 0 : index
    %523 = vector.load %arg20[%c0_132, %c0_133] : memref<1x1xf32, #tpu.memory_space<vmem>>, vector<1x1xf32>
    %524 = vector.broadcast %523 : vector<1x1xf32> to vector<1x2xf32>
    %525 = arith.addf %522, %524 : vector<1x2xf32>
    %cst_134 = arith.constant 0.000000e+00 : f32
    %526 = vector.broadcast %cst_134 : f32 to vector<1x2xf32>
    %527 = arith.maximumf %525, %526 : vector<1x2xf32>
    %c0_135 = arith.constant 0 : index
    %c0_136 = arith.constant 0 : index
    %c0_137 = arith.constant 0 : index
    %528 = vector.load %arg21[%c0_135, %c0_136, %c0_137] : memref<1x1x2xf32, #tpu.memory_space<vmem>>, vector<1x1x2xf32>
    %529 = vector.shape_cast %528 : vector<1x1x2xf32> to vector<1x2xf32>
    %530 = vector.shape_cast %527 : vector<1x2xf32> to vector<1x1x2xf32>
    tpu.vector_store %arg21[%c0_135, %c0_136, %c0_137], %530 {strides = array<i32>} : memref<1x1x2xf32, #tpu.memory_space<vmem>>, vector<1x1x2xf32>,
    return
  }
  func.func @transform_0(%arg0: i32) -> (i32, i32, i32) {
    %c0_i32 = arith.constant 0 : i32
    %c0_i32_0 = arith.constant 0 : i32
    %c0_i32_1 = arith.constant 0 : i32
    return %arg0, %c0_i32, %c0_i32_0 : i32, i32, i32
  }
  func.func @transform_1(%arg0: i32) -> (i32, i32) {
    %c0_i32 = arith.constant 0 : i32
    %c0_i32_0 = arith.constant 0 : i32
    %c0_i32_1 = arith.constant 0 : i32
    return %c0_i32, %c0_i32_0 : i32, i32
  }
  func.func @transform_2(%arg0: i32) -> (i32, i32) {
    %c0_i32 = arith.constant 0 : i32
    %c0_i32_0 = arith.constant 0 : i32
    %c0_i32_1 = arith.constant 0 : i32
    return %c0_i32, %c0_i32_0 : i32, i32
  }
  func.func @transform_3(%arg0: i32) -> (i32, i32) {
    %c0_i32 = arith.constant 0 : i32
    %c0_i32_0 = arith.constant 0 : i32
    %c0_i32_1 = arith.constant 0 : i32
    return %c0_i32, %c0_i32_0 : i32, i32
  }
  func.func @transform_4(%arg0: i32) -> (i32, i32) {
    %c0_i32 = arith.constant 0 : i32
    %c0_i32_0 = arith.constant 0 : i32
    %c0_i32_1 = arith.constant 0 : i32
    return %c0_i32, %c0_i32_0 : i32, i32
  }
  func.func @transform_5(%arg0: i32) -> (i32, i32) {
    %c0_i32 = arith.constant 0 : i32
    %c0_i32_0 = arith.constant 0 : i32
    %c0_i32_1 = arith.constant 0 : i32
    return %c0_i32, %c0_i32_0 : i32, i32
  }
  func.func @transform_6(%arg0: i32) -> (i32, i32) {
    %c0_i32 = arith.constant 0 : i32
    %c0_i32_0 = arith.constant 0 : i32
    %c0_i32_1 = arith.constant 0 : i32
    return %c0_i32, %c0_i32_0 : i32, i32
  }
  func.func @transform_7(%arg0: i32) -> (i32, i32) {
    %c0_i32 = arith.constant 0 : i32
    %c0_i32_0 = arith.constant 0 : i32
    %c0_i32_1 = arith.constant 0 : i32
    return %c0_i32, %c0_i32_0 : i32, i32
  }
  func.func @transform_8(%arg0: i32) -> (i32, i32) {
    %c0_i32 = arith.constant 0 : i32
    %c0_i32_0 = arith.constant 0 : i32
    %c0_i32_1 = arith.constant 0 : i32
    return %c0_i32, %c0_i32_0 : i32, i32
  }
  func.func @transform_9(%arg0: i32) -> (i32, i32) {
    %c0_i32 = arith.constant 0 : i32
    %c0_i32_0 = arith.constant 0 : i32
    %c0_i32_1 = arith.constant 0 : i32
    return %c0_i32, %c0_i32_0 : i32, i32
  }
  func.func @transform_10(%arg0: i32) -> (i32, i32) {
    %c0_i32 = arith.constant 0 : i32
    %c0_i32_0 = arith.constant 0 : i32
    %c0_i32_1 = arith.constant 0 : i32
    return %c0_i32, %c0_i32_0 : i32, i32
  }
  func.func @transform_11(%arg0: i32) -> (i32, i32) {
    %c0_i32 = arith.constant 0 : i32
    %c0_i32_0 = arith.constant 0 : i32
    %c0_i32_1 = arith.constant 0 : i32
    return %c0_i32, %c0_i32_0 : i32, i32
  }
  func.func @transform_12(%arg0: i32) -> (i32, i32) {
    %c0_i32 = arith.constant 0 : i32
    %c0_i32_0 = arith.constant 0 : i32
    %c0_i32_1 = arith.constant 0 : i32
    return %c0_i32, %c0_i32_0 : i32, i32
  }
  func.func @transform_13(%arg0: i32) -> (i32, i32) {
    %c0_i32 = arith.constant 0 : i32
    %c0_i32_0 = arith.constant 0 : i32
    %c0_i32_1 = arith.constant 0 : i32
    return %c0_i32, %c0_i32_0 : i32, i32
  }
  func.func @transform_14(%arg0: i32) -> (i32, i32) {
    %c0_i32 = arith.constant 0 : i32
    %c0_i32_0 = arith.constant 0 : i32
    %c0_i32_1 = arith.constant 0 : i32
    return %c0_i32, %c0_i32_0 : i32, i32
  }
  func.func @transform_15(%arg0: i32) -> (i32, i32) {
    %c0_i32 = arith.constant 0 : i32
    %c0_i32_0 = arith.constant 0 : i32
    %c0_i32_1 = arith.constant 0 : i32
    return %c0_i32, %c0_i32_0 : i32, i32
  }
  func.func @transform_16(%arg0: i32) -> (i32, i32) {
    %c0_i32 = arith.constant 0 : i32
    %c0_i32_0 = arith.constant 0 : i32
    %c0_i32_1 = arith.constant 0 : i32
    return %c0_i32, %c0_i32_0 : i32, i32
  }
  func.func @transform_17(%arg0: i32) -> (i32, i32) {
    %c0_i32 = arith.constant 0 : i32
    %c0_i32_0 = arith.constant 0 : i32
    %c0_i32_1 = arith.constant 0 : i32
    return %c0_i32, %c0_i32_0 : i32, i32
  }
  func.func @transform_18(%arg0: i32) -> (i32, i32) {
    %c0_i32 = arith.constant 0 : i32
    %c0_i32_0 = arith.constant 0 : i32
    %c0_i32_1 = arith.constant 0 : i32
    return %c0_i32, %c0_i32_0 : i32, i32
  }
  func.func @transform_19(%arg0: i32) -> (i32, i32) {
    %c0_i32 = arith.constant 0 : i32
    %c0_i32_0 = arith.constant 0 : i32
    %c0_i32_1 = arith.constant 0 : i32
    return %c0_i32, %c0_i32_0 : i32, i32
  }
  func.func @transform_20(%arg0: i32) -> (i32, i32, i32) {
    %c0_i32 = arith.constant 0 : i32
    %c0_i32_0 = arith.constant 0 : i32
    %c0_i32_1 = arith.constant 0 : i32
    return %arg0, %c0_i32, %c0_i32_0 : i32, i32, i32
  }
}

</mosaic_0001>

<llo_original>
// kernel: tpu_custom_call.1
$region0: #{tpu_custom_call.1}
  #allocation0 [shape = 'u32[]', space=smem, size = 0x4, offset = 0x4, fixed_abs, tag = 'smem constant byte address 0x4 - core index']
  #allocation1 [shape = 'u32[144,128]{1,0:T(1,128)}', space=vmem, size = 0x12000, scoped, tag = 'internal scratch']
  #allocation2 [shape = 'f32[16,32]{1,0:T(8,128)}', space=vmem, size = 0x2000, scoped, tag = 'scratch operand']
  #allocation3 [shape = 'f32[1,1]{1,0:T(1,128)S(1)}', space=vmem, size = 0x200, scoped, tag = 'scoped memory for tpu_custom_call.1']
  %s0 = inlined_call_operand.vmem [shape: f32[2,16,8], index: 0, kind: input, shape index: {}]
  %s1 = inlined_call_operand.vmem [shape: f32[8,128], index: 1, kind: input, shape index: {}]
  %s2 = inlined_call_operand.vmem [shape: f32[32,128], index: 2, kind: input, shape index: {}]
  %s3 = inlined_call_operand.vmem [shape: f32[1,128], index: 3, kind: input, shape index: {}]
  %s4 = inlined_call_operand.vmem [shape: f32[32,32], index: 4, kind: input, shape index: {}]
  %s5 = inlined_call_operand.vmem [shape: f32[1,32], index: 5, kind: input, shape index: {}]
  %s6 = inlined_call_operand.vmem [shape: f32[16,1], index: 6, kind: input, shape index: {}]
  %s7 = inlined_call_operand.vmem [shape: f32[16,1], index: 7, kind: input, shape index: {}]
  %s8 = inlined_call_operand.vmem [shape: f32[32,2], index: 8, kind: input, shape index: {}]
  %s9 = inlined_call_operand.vmem [shape: f32[1,2], index: 9, kind: input, shape index: {}]
  %s10 = inlined_call_operand.vmem [shape: f32[64,16], index: 10, kind: input, shape index: {}]
  %s11 = inlined_call_operand.vmem [shape: f32[64,1], index: 11, kind: input, shape index: {}]
  %s12 = inlined_call_operand.vmem [shape: f32[1,2], index: 12, kind: input, shape index: {}]
  %s13 = inlined_call_operand.vmem [shape: f32[1,2], index: 13, kind: input, shape index: {}]
  %s14 = inlined_call_operand.vmem [shape: f32[16,64], index: 14, kind: input, shape index: {}]
  %s15 = inlined_call_operand.vmem [shape: f32[16,1], index: 15, kind: input, shape index: {}]
  %s16 = inlined_call_operand.vmem [shape: f32[1,2], index: 16, kind: input, shape index: {}]
  %s17 = inlined_call_operand.vmem [shape: f32[1,2], index: 17, kind: input, shape index: {}]
  %s18 = inlined_call_operand.vmem [shape: f32[1,16], index: 18, kind: input, shape index: {}]
  %s19 = inlined_call_operand.<no memory space> [shape: f32[1,1], index: 19, kind: input, shape index: {}]
  %s20 = inlined_call_operand.hbm [shape: f32[2,1,2], index: 20, kind: output, shape index: {}]
  %s21 = sld [smem:[#allocation0]]
  $region113: #{tpu_custom_call.1} parent=0
    _
  %s23 = ssub.s32 1, %s21
  %s24 = scalar_select 0, %s23, %s21
  %v25 = vstv %s19
  %26 = vst [vmem:[#allocation3] sm:$0x1] %v25
  $region1: #{tpu_custom_call.1} parent=0
    #allocation4 [shape = 'u8[1024]{0}', space=vmem, size = 0x400, scoped, tag = 'output window, operand 0']
    #allocation5 [shape = 's32[2]{0}', space=sflag, size = 0x8, scoped, tag = 'scoped memory for tpu_custom_call.1']
    %27 = vsyncpa [#allocation5], 0
    %s28 = scalar_lea.sflag [#allocation5], 1
    %29 = vsyncpa %s28, 0
    loop: start=0, step=1, limit=4
    $region2: #{tpu_custom_call.1} parent=1 // loop_pre_header
      _
    $region3: #{tpu_custom_call.1} parent=1 // loop_header
      %s31 = sphi 0, %s35
      %p32 = scmp.ge.s32.totalorder %s31, 4
      %s41 = sphi 0, %s43
      %s44 = sphi 0, %s41
      %s45 = sphi 0, %s44
      %s61 = sphi 0, %s45
      %s65 = sphi 0, %s65
      %s67 = sphi 0, %s65
      %s68 = sphi 0, %s67
      %s82 = sphi 0, %s68
      %s86 = sphi 0, %s86
      %s88 = sphi 0, %s86
      %s89 = sphi 0, %s88
      %s103 = sphi 0, %s89
      %s107 = sphi 0, %s107
      %s109 = sphi 0, %s107
      %s110 = sphi 0, %s109
      %s124 = sphi 0, %s110
      %s128 = sphi 0, %s128
      %s130 = sphi 0, %s128
      %s131 = sphi 0, %s130
      %s145 = sphi 0, %s131
      %s149 = sphi 0, %s149
      %s151 = sphi 0, %s149
      %s152 = sphi 0, %s151
      %s166 = sphi 0, %s152
      %s170 = sphi 0, %s170
      %s172 = sphi 0, %s170
      %s173 = sphi 0, %s172
      %s187 = sphi 0, %s173
      %s191 = sphi 0, %s191
      %s193 = sphi 0, %s191
      %s194 = sphi 0, %s193
      %s208 = sphi 0, %s194
      %s212 = sphi 0, %s212
      %s214 = sphi 0, %s212
      %s215 = sphi 0, %s214
      %s229 = sphi 0, %s215
      %s233 = sphi 0, %s233
      %s235 = sphi 0, %s233
      %s236 = sphi 0, %s235
      %s250 = sphi 0, %s236
      %s254 = sphi 0, %s254
      %s256 = sphi 0, %s254
      %s257 = sphi 0, %s256
      %s271 = sphi 0, %s257
      %s275 = sphi 0, %s275
      %s277 = sphi 0, %s275
      %s278 = sphi 0, %s277
      %s292 = sphi 0, %s278
      %s296 = sphi 0, %s296
      %s298 = sphi 0, %s296
      %s299 = sphi 0, %s298
      %s313 = sphi 0, %s299
      %s317 = sphi 0, %s317
      %s319 = sphi 0, %s317
      %s320 = sphi 0, %s319
      %s334 = sphi 0, %s320
      %s338 = sphi 0, %s338
      %s340 = sphi 0, %s338
      %s341 = sphi 0, %s340
      %s355 = sphi 0, %s341
      %s359 = sphi 0, %s359
      %s361 = sphi 0, %s359
      %s362 = sphi 0, %s361
      %s376 = sphi 0, %s362
      %s380 = sphi 0, %s380
      %s382 = sphi 0, %s380
      %s383 = sphi 0, %s382
      %s397 = sphi 0, %s383
      %s401 = sphi 0, %s401
      %s403 = sphi 0, %s401
      %s404 = sphi 0, %s403
      %s418 = sphi 0, %s404
      %s422 = sphi 0, %s422
      %s424 = sphi 0, %s422
      %s425 = sphi 0, %s424
      %s439 = sphi 0, %s425
      %s443 = sphi 0, %s443
      %s445 = sphi 0, %s443
      %s446 = sphi 0, %s445
      %s460 = sphi 0, %s446
      %s466 = sphi 0, %s468
      %s469 = sphi 0, %s466
      %s470 = sphi 0, %s469
      %s486 = sphi 0, %s470
    $region4: #{tpu_custom_call.1} parent=1 // loop_header_branch
      %34 = sbr.rel (%p32) target = $region8
    $region5: #{tpu_custom_call.1} parent=1 // loop_body
      %s36 = ssub.s32 %s31, 1
      %s37 = ssub.s32 %s31, 2
      %s38 = sadd.s32 %s31, 1
      %s39 = ssub.s32 %s31, %s38
      %p40 = scmp.eq.s32.totalorder %s39, 0
      %s42 = sadd.s32 %s41, 1
      %s43 = scalar_select %p40, %s41, %s42
      %p46 = pneg %p40
      %p47 = scmp.eq.s32.totalorder %s31, 1
      %p48 = por %p46, %p47
      %p49 = scmp.ne.s32.totalorder %s41, %s44
      %p50 = scmp.eq.s32.totalorder %s31, 0
      %p51 = por %p49, %p50
      %p52 = scmp.ne.s32.totalorder %s41, %s44
      %p53 = scmp.eq.s32.totalorder %s36, 1
      %p54 = por %p52, %p53
      %p55 = scmp.ne.s32.totalorder %s44, %s45
      %p56 = scmp.eq.s32.totalorder %s36, 0
      %p57 = por %p55, %p56
      %p58 = scmp.ne.s32.totalorder %s44, %s45
      %p59 = scmp.eq.s32.totalorder %s37, 1
      %p60 = por %p58, %p59
      %p62 = scmp.ne.s32.totalorder %s45, %s61
      %p63 = scmp.eq.s32.totalorder %s37, 0
      %p64 = por %p62, %p63
      %s66 = sadd.s32 %s65, 1
      %p69 = scmp.eq.s32.totalorder %s31, 1
      %p70 = scmp.ne.s32.totalorder %s65, %s67
      %p71 = scmp.eq.s32.totalorder %s31, 0
      %p72 = por %p70, %p71
      %p73 = scmp.ne.s32.totalorder %s65, %s67
      %p74 = scmp.eq.s32.totalorder %s36, 1
      %p75 = por %p73, %p74
      %p76 = scmp.ne.s32.totalorder %s67, %s68
      %p77 = scmp.eq.s32.totalorder %s36, 0
      %p78 = por %p76, %p77
      %p79 = scmp.ne.s32.totalorder %s67, %s68
      %p80 = scmp.eq.s32.totalorder %s37, 1
      %p81 = por %p79, %p80
      %p83 = scmp.ne.s32.totalorder %s68, %s82
      %p84 = scmp.eq.s32.totalorder %s37, 0
      %p85 = por %p83, %p84
      %s87 = sadd.s32 %s86, 1
      %p90 = scmp.eq.s32.totalorder %s31, 1
      %p91 = scmp.ne.s32.totalorder %s86, %s88
      %p92 = scmp.eq.s32.totalorder %s31, 0
      %p93 = por %p91, %p92
      %p94 = scmp.ne.s32.totalorder %s86, %s88
      %p95 = scmp.eq.s32.totalorder %s36, 1
      %p96 = por %p94, %p95
      %p97 = scmp.ne.s32.totalorder %s88, %s89
      %p98 = scmp.eq.s32.totalorder %s36, 0
      %p99 = por %p97, %p98
      %p100 = scmp.ne.s32.totalorder %s88, %s89
      %p101 = scmp.eq.s32.totalorder %s37, 1
      %p102 = por %p100, %p101
      %p104 = scmp.ne.s32.totalorder %s89, %s103
      %p105 = scmp.eq.s32.totalorder %s37, 0
      %p106 = por %p104, %p105
      %s108 = sadd.s32 %s107, 1
      %p111 = scmp.eq.s32.totalorder %s31, 1
      %p112 = scmp.ne.s32.totalorder %s107, %s109
      %p113 = scmp.eq.s32.totalorder %s31, 0
      %p114 = por %p112, %p113
      %p115 = scmp.ne.s32.totalorder %s107, %s109
      %p116 = scmp.eq.s32.totalorder %s36, 1
      %p117 = por %p115, %p116
      %p118 = scmp.ne.s32.totalorder %s109, %s110
      %p119 = scmp.eq.s32.totalorder %s36, 0
      %p120 = por %p118, %p119
      %p121 = scmp.ne.s32.totalorder %s109, %s110
      %p122 = scmp.eq.s32.totalorder %s37, 1
      %p123 = por %p121, %p122
      %p125 = scmp.ne.s32.totalorder %s110, %s124
      %p126 = scmp.eq.s32.totalorder %s37, 0
      %p127 = por %p125, %p126
      %s129 = sadd.s32 %s128, 1
      %p132 = scmp.eq.s32.totalorder %s31, 1
      %p133 = scmp.ne.s32.totalorder %s128, %s130
      %p134 = scmp.eq.s32.totalorder %s31, 0
      %p135 = por %p133, %p134
      %p136 = scmp.ne.s32.totalorder %s128, %s130
      %p137 = scmp.eq.s32.totalorder %s36, 1
      %p138 = por %p136, %p137
      %p139 = scmp.ne.s32.totalorder %s130, %s131
      %p140 = scmp.eq.s32.totalorder %s36, 0
      %p141 = por %p139, %p140
      %p142 = scmp.ne.s32.totalorder %s130, %s131
      %p143 = scmp.eq.s32.totalorder %s37, 1
      %p144 = por %p142, %p143
      %p146 = scmp.ne.s32.totalorder %s131, %s145
      %p147 = scmp.eq.s32.totalorder %s37, 0
      %p148 = por %p146, %p147
      %s150 = sadd.s32 %s149, 1
      %p153 = scmp.eq.s32.totalorder %s31, 1
      %p154 = scmp.ne.s32.totalorder %s149, %s151
      %p155 = scmp.eq.s32.totalorder %s31, 0
      %p156 = por %p154, %p155
      %p157 = scmp.ne.s32.totalorder %s149, %s151
      %p158 = scmp.eq.s32.totalorder %s36, 1
      %p159 = por %p157, %p158
      %p160 = scmp.ne.s32.totalorder %s151, %s152
      %p161 = scmp.eq.s32.totalorder %s36, 0
      %p162 = por %p160, %p161
      %p163 = scmp.ne.s32.totalorder %s151, %s152
      %p164 = scmp.eq.s32.totalorder %s37, 1
      %p165 = por %p163, %p164
      %p167 = scmp.ne.s32.totalorder %s152, %s166
      %p168 = scmp.eq.s32.totalorder %s37, 0
      %p169 = por %p167, %p168
      %s171 = sadd.s32 %s170, 1
      %p174 = scmp.eq.s32.totalorder %s31, 1
      %p175 = scmp.ne.s32.totalorder %s170, %s172
      %p176 = scmp.eq.s32.totalorder %s31, 0
      %p177 = por %p175, %p176
      %p178 = scmp.ne.s32.totalorder %s170, %s172
      %p179 = scmp.eq.s32.totalorder %s36, 1
      %p180 = por %p178, %p179
      %p181 = scmp.ne.s32.totalorder %s172, %s173
      %p182 = scmp.eq.s32.totalorder %s36, 0
      %p183 = por %p181, %p182
      %p184 = scmp.ne.s32.totalorder %s172, %s173
      %p185 = scmp.eq.s32.totalorder %s37, 1
      %p186 = por %p184, %p185
      %p188 = scmp.ne.s32.totalorder %s173, %s187
      %p189 = scmp.eq.s32.totalorder %s37, 0
      %p190 = por %p188, %p189
      %s192 = sadd.s32 %s191, 1
      %p195 = scmp.eq.s32.totalorder %s31, 1
      %p196 = scmp.ne.s32.totalorder %s191, %s193
      %p197 = scmp.eq.s32.totalorder %s31, 0
      %p198 = por %p196, %p197
      %p199 = scmp.ne.s32.totalorder %s191, %s193
      %p200 = scmp.eq.s32.totalorder %s36, 1
      %p201 = por %p199, %p200
      %p202 = scmp.ne.s32.totalorder %s193, %s194
      %p203 = scmp.eq.s32.totalorder %s36, 0
      %p204 = por %p202, %p203
      %p205 = scmp.ne.s32.totalorder %s193, %s194
      %p206 = scmp.eq.s32.totalorder %s37, 1
      %p207 = por %p205, %p206
      %p209 = scmp.ne.s32.totalorder %s194, %s208
      %p210 = scmp.eq.s32.totalorder %s37, 0
      %p211 = por %p209, %p210
      %s213 = sadd.s32 %s212, 1
      %p216 = scmp.eq.s32.totalorder %s31, 1
      %p217 = scmp.ne.s32.totalorder %s212, %s214
      %p218 = scmp.eq.s32.totalorder %s31, 0
      %p219 = por %p217, %p218
      %p220 = scmp.ne.s32.totalorder %s212, %s214
      %p221 = scmp.eq.s32.totalorder %s36, 1
      %p222 = por %p220, %p221
      %p223 = scmp.ne.s32.totalorder %s214, %s215
      %p224 = scmp.eq.s32.totalorder %s36, 0
      %p225 = por %p223, %p224
      %p226 = scmp.ne.s32.totalorder %s214, %s215
      %p227 = scmp.eq.s32.totalorder %s37, 1
      %p228 = por %p226, %p227
      %p230 = scmp.ne.s32.totalorder %s215, %s229
      %p231 = scmp.eq.s32.totalorder %s37, 0
      %p232 = por %p230, %p231
      %s234 = sadd.s32 %s233, 1
      %p237 = scmp.eq.s32.totalorder %s31, 1
      %p238 = scmp.ne.s32.totalorder %s233, %s235
      %p239 = scmp.eq.s32.totalorder %s31, 0
      %p240 = por %p238, %p239
      %p241 = scmp.ne.s32.totalorder %s233, %s235
      %p242 = scmp.eq.s32.totalorder %s36, 1
      %p243 = por %p241, %p242
      %p244 = scmp.ne.s32.totalorder %s235, %s236
      %p245 = scmp.eq.s32.totalorder %s36, 0
      %p246 = por %p244, %p245
      %p247 = scmp.ne.s32.totalorder %s235, %s236
      %p248 = scmp.eq.s32.totalorder %s37, 1
      %p249 = por %p247, %p248
      %p251 = scmp.ne.s32.totalorder %s236, %s250
      %p252 = scmp.eq.s32.totalorder %s37, 0
      %p253 = por %p251, %p252
      %s255 = sadd.s32 %s254, 1
      %p258 = scmp.eq.s32.totalorder %s31, 1
      %p259 = scmp.ne.s32.totalorder %s254, %s256
      %p260 = scmp.eq.s32.totalorder %s31, 0
      %p261 = por %p259, %p260
      %p262 = scmp.ne.s32.totalorder %s254, %s256
      %p263 = scmp.eq.s32.totalorder %s36, 1
      %p264 = por %p262, %p263
      %p265 = scmp.ne.s32.totalorder %s256, %s257
      %p266 = scmp.eq.s32.totalorder %s36, 0
      %p267 = por %p265, %p266
      %p268 = scmp.ne.s32.totalorder %s256, %s257
      %p269 = scmp.eq.s32.totalorder %s37, 1
      %p270 = por %p268, %p269
      %p272 = scmp.ne.s32.totalorder %s257, %s271
      %p273 = scmp.eq.s32.totalorder %s37, 0
      %p274 = por %p272, %p273
      %s276 = sadd.s32 %s275, 1
      %p279 = scmp.eq.s32.totalorder %s31, 1
      %p280 = scmp.ne.s32.totalorder %s275, %s277
      %p281 = scmp.eq.s32.totalorder %s31, 0
      %p282 = por %p280, %p281
      %p283 = scmp.ne.s32.totalorder %s275, %s277
      %p284 = scmp.eq.s32.totalorder %s36, 1
      %p285 = por %p283, %p284
      %p286 = scmp.ne.s32.totalorder %s277, %s278
      %p287 = scmp.eq.s32.totalorder %s36, 0
      %p288 = por %p286, %p287
      %p289 = scmp.ne.s32.totalorder %s277, %s278
      %p290 = scmp.eq.s32.totalorder %s37, 1
      %p291 = por %p289, %p290
      %p293 = scmp.ne.s32.totalorder %s278, %s292
      %p294 = scmp.eq.s32.totalorder %s37, 0
      %p295 = por %p293, %p294
      %s297 = sadd.s32 %s296, 1
      %p300 = scmp.eq.s32.totalorder %s31, 1
      %p301 = scmp.ne.s32.totalorder %s296, %s298
      %p302 = scmp.eq.s32.totalorder %s31, 0
      %p303 = por %p301, %p302
      %p304 = scmp.ne.s32.totalorder %s296, %s298
      %p305 = scmp.eq.s32.totalorder %s36, 1
      %p306 = por %p304, %p305
      %p307 = scmp.ne.s32.totalorder %s298, %s299
      %p308 = scmp.eq.s32.totalorder %s36, 0
      %p309 = por %p307, %p308
      %p310 = scmp.ne.s32.totalorder %s298, %s299
      %p311 = scmp.eq.s32.totalorder %s37, 1
      %p312 = por %p310, %p311
      %p314 = scmp.ne.s32.totalorder %s299, %s313
      %p315 = scmp.eq.s32.totalorder %s37, 0
      %p316 = por %p314, %p315
      %s318 = sadd.s32 %s317, 1
      %p321 = scmp.eq.s32.totalorder %s31, 1
      %p322 = scmp.ne.s32.totalorder %s317, %s319
      %p323 = scmp.eq.s32.totalorder %s31, 0
      %p324 = por %p322, %p323
      %p325 = scmp.ne.s32.totalorder %s317, %s319
      %p326 = scmp.eq.s32.totalorder %s36, 1
      %p327 = por %p325, %p326
      %p328 = scmp.ne.s32.totalorder %s319, %s320
      %p329 = scmp.eq.s32.totalorder %s36, 0
      %p330 = por %p328, %p329
      %p331 = scmp.ne.s32.totalorder %s319, %s320
      %p332 = scmp.eq.s32.totalorder %s37, 1
      %p333 = por %p331, %p332
      %p335 = scmp.ne.s32.totalorder %s320, %s334
      %p336 = scmp.eq.s32.totalorder %s37, 0
      %p337 = por %p335, %p336
      %s339 = sadd.s32 %s338, 1
      %p342 = scmp.eq.s32.totalorder %s31, 1
      %p343 = scmp.ne.s32.totalorder %s338, %s340
      %p344 = scmp.eq.s32.totalorder %s31, 0
      %p345 = por %p343, %p344
      %p346 = scmp.ne.s32.totalorder %s338, %s340
      %p347 = scmp.eq.s32.totalorder %s36, 1
      %p348 = por %p346, %p347
      %p349 = scmp.ne.s32.totalorder %s340, %s341
      %p350 = scmp.eq.s32.totalorder %s36, 0
      %p351 = por %p349, %p350
      %p352 = scmp.ne.s32.totalorder %s340, %s341
      %p353 = scmp.eq.s32.totalorder %s37, 1
      %p354 = por %p352, %p353
      %p356 = scmp.ne.s32.totalorder %s341, %s355
      %p357 = scmp.eq.s32.totalorder %s37, 0
      %p358 = por %p356, %p357
      %s360 = sadd.s32 %s359, 1
      %p363 = scmp.eq.s32.totalorder %s31, 1
      %p364 = scmp.ne.s32.totalorder %s359, %s361
      %p365 = scmp.eq.s32.totalorder %s31, 0
      %p366 = por %p364, %p365
      %p367 = scmp.ne.s32.totalorder %s359, %s361
      %p368 = scmp.eq.s32.totalorder %s36, 1
      %p369 = por %p367, %p368
      %p370 = scmp.ne.s32.totalorder %s361, %s362
      %p371 = scmp.eq.s32.totalorder %s36, 0
      %p372 = por %p370, %p371
      %p373 = scmp.ne.s32.totalorder %s361, %s362
      %p374 = scmp.eq.s32.totalorder %s37, 1
      %p375 = por %p373, %p374
      %p377 = scmp.ne.s32.totalorder %s362, %s376
      %p378 = scmp.eq.s32.totalorder %s37, 0
      %p379 = por %p377, %p378
      %s381 = sadd.s32 %s380, 1
      %p384 = scmp.eq.s32.totalorder %s31, 1
      %p385 = scmp.ne.s32.totalorder %s380, %s382
      %p386 = scmp.eq.s32.totalorder %s31, 0
      %p387 = por %p385, %p386
      %p388 = scmp.ne.s32.totalorder %s380, %s382
      %p389 = scmp.eq.s32.totalorder %s36, 1
      %p390 = por %p388, %p389
      %p391 = scmp.ne.s32.totalorder %s382, %s383
      %p392 = scmp.eq.s32.totalorder %s36, 0
      %p393 = por %p391, %p392
      %p394 = scmp.ne.s32.totalorder %s382, %s383
      %p395 = scmp.eq.s32.totalorder %s37, 1
      %p396 = por %p394, %p395
      %p398 = scmp.ne.s32.totalorder %s383, %s397
      %p399 = scmp.eq.s32.totalorder %s37, 0
      %p400 = por %p398, %p399
      %s402 = sadd.s32 %s401, 1
      %p405 = scmp.eq.s32.totalorder %s31, 1
      %p406 = scmp.ne.s32.totalorder %s401, %s403
      %p407 = scmp.eq.s32.totalorder %s31, 0
      %p408 = por %p406, %p407
      %p409 = scmp.ne.s32.totalorder %s401, %s403
      %p410 = scmp.eq.s32.totalorder %s36, 1
      %p411 = por %p409, %p410
      %p412 = scmp.ne.s32.totalorder %s403, %s404
      %p413 = scmp.eq.s32.totalorder %s36, 0
      %p414 = por %p412, %p413
      %p415 = scmp.ne.s32.totalorder %s403, %s404
      %p416 = scmp.eq.s32.totalorder %s37, 1
      %p417 = por %p415, %p416
      %p419 = scmp.ne.s32.totalorder %s404, %s418
      %p420 = scmp.eq.s32.totalorder %s37, 0
      %p421 = por %p419, %p420
      %s423 = sadd.s32 %s422, 1
      %p426 = scmp.eq.s32.totalorder %s31, 1
      %p427 = scmp.ne.s32.totalorder %s422, %s424
      %p428 = scmp.eq.s32.totalorder %s31, 0
      %p429 = por %p427, %p428
      %p430 = scmp.ne.s32.totalorder %s422, %s424
      %p431 = scmp.eq.s32.totalorder %s36, 1
      %p432 = por %p430, %p431
      %p433 = scmp.ne.s32.totalorder %s424, %s425
      %p434 = scmp.eq.s32.totalorder %s36, 0
      %p435 = por %p433, %p434
      %p436 = scmp.ne.s32.totalorder %s424, %s425
      %p437 = scmp.eq.s32.totalorder %s37, 1
      %p438 = por %p436, %p437
      %p440 = scmp.ne.s32.totalorder %s425, %s439
      %p441 = scmp.eq.s32.totalorder %s37, 0
      %p442 = por %p440, %p441
      %s444 = sadd.s32 %s443, 1
      %p447 = scmp.eq.s32.totalorder %s31, 1
      %p448 = scmp.ne.s32.totalorder %s443, %s445
      %p449 = scmp.eq.s32.totalorder %s31, 0
      %p450 = por %p448, %p449
      %p451 = scmp.ne.s32.totalorder %s443, %s445
      %p452 = scmp.eq.s32.totalorder %s36, 1
      %p453 = por %p451, %p452
      %p454 = scmp.ne.s32.totalorder %s445, %s446
      %p455 = scmp.eq.s32.totalorder %s36, 0
      %p456 = por %p454, %p455
      %p457 = scmp.ne.s32.totalorder %s445, %s446
      %p458 = scmp.eq.s32.totalorder %s37, 1
      %p459 = por %p457, %p458
      %p461 = scmp.ne.s32.totalorder %s446, %s460
      %p462 = scmp.eq.s32.totalorder %s37, 0
      %p463 = por %p461, %p462
      %s464 = ssub.s32 %s31, %s38
      %p465 = scmp.eq.s32.totalorder %s464, 0
      %s467 = sadd.s32 %s466, 1
      %s468 = scalar_select %p465, %s466, %s467
      %p471 = pneg %p465
      %p472 = scmp.eq.s32.totalorder %s31, 1
      %p473 = por %p471, %p472
      %p474 = scmp.ne.s32.totalorder %s466, %s469
      %p475 = scmp.eq.s32.totalorder %s31, 0
      %p476 = por %p474, %p475
      %p477 = scmp.ne.s32.totalorder %s466, %s469
      %p478 = scmp.eq.s32.totalorder %s36, 1
      %p479 = por %p477, %p478
      %p480 = scmp.ne.s32.totalorder %s469, %s470
      %p481 = scmp.eq.s32.totalorder %s36, 0
      %p482 = por %p480, %p481
      %p483 = scmp.ne.s32.totalorder %s469, %s470
      %p484 = scmp.eq.s32.totalorder %s37, 1
      %p485 = por %p483, %p484
      %p487 = scmp.ne.s32.totalorder %s470, %s486
      %p488 = scmp.eq.s32.totalorder %s37, 0
      %p489 = por %p487, %p488
      %p490 = scmp.le.s32.totalorder 1, %s31
      %p491 = scmp.lt.s32.totalorder %s31, 3
      %p492 = pnand %p490, %p491
      %p493 = pneg %p492
      // Predicated region
      $region9: #{tpu_custom_call.1} parent=5 // pred_check
        _
      $region10: #{tpu_custom_call.1} parent=5 // pred_check_branch
        %495 = sbr.rel (%p492) target = $region12
      $region11: #{tpu_custom_call.1} parent=5 // pred_region
        %s496 = ssub.s32 %s31, 1
        // Predicated region
        $region13: #{tpu_custom_call.1} parent=11 // pred_check
          %p497 = pneg %p78
        $region14: #{tpu_custom_call.1} parent=11 // pred_check_branch
          %499 = sbr.rel (%p497) target = $region16
        $region15: #{tpu_custom_call.1} parent=11 // pred_region
          _
        $region16: #{tpu_custom_call.1} parent=11 // pred_fallthru
          _
        // Predicated region
        $region17: #{tpu_custom_call.1} parent=11 // pred_check
          %p500 = pneg %p99
        $region18: #{tpu_custom_call.1} parent=11 // pred_check_branch
          %502 = sbr.rel (%p500) target = $region20
        $region19: #{tpu_custom_call.1} parent=11 // pred_region
          _
        $region20: #{tpu_custom_call.1} parent=11 // pred_fallthru
          _
        // Predicated region
        $region21: #{tpu_custom_call.1} parent=11 // pred_check
          %p503 = pneg %p120
        $region22: #{tpu_custom_call.1} parent=11 // pred_check_branch
          %505 = sbr.rel (%p503) target = $region24
        $region23: #{tpu_custom_call.1} parent=11 // pred_region
          _
        $region24: #{tpu_custom_call.1} parent=11 // pred_fallthru
          _
        // Predicated region
        $region25: #{tpu_custom_call.1} parent=11 // pred_check
          %p506 = pneg %p141
        $region26: #{tpu_custom_call.1} parent=11 // pred_check_branch
          %508 = sbr.rel (%p506) target = $region28
        $region27: #{tpu_custom_call.1} parent=11 // pred_region
          _
        $region28: #{tpu_custom_call.1} parent=11 // pred_fallthru
          _
        // Predicated region
        $region29: #{tpu_custom_call.1} parent=11 // pred_check
          %p509 = pneg %p162
        $region30: #{tpu_custom_call.1} parent=11 // pred_check_branch
          %511 = sbr.rel (%p509) target = $region32
        $region31: #{tpu_custom_call.1} parent=11 // pred_region
          _
        $region32: #{tpu_custom_call.1} parent=11 // pred_fallthru
          _
        // Predicated region
        $region33: #{tpu_custom_call.1} parent=11 // pred_check
          %p512 = pneg %p183
        $region34: #{tpu_custom_call.1} parent=11 // pred_check_branch
          %514 = sbr.rel (%p512) target = $region36
        $region35: #{tpu_custom_call.1} parent=11 // pred_region
          _
        $region36: #{tpu_custom_call.1} parent=11 // pred_fallthru
          _
        // Predicated region
        $region37: #{tpu_custom_call.1} parent=11 // pred_check
          %p515 = pneg %p204
        $region38: #{tpu_custom_call.1} parent=11 // pred_check_branch
          %517 = sbr.rel (%p515) target = $region40
        $region39: #{tpu_custom_call.1} parent=11 // pred_region
          _
        $region40: #{tpu_custom_call.1} parent=11 // pred_fallthru
          _
        // Predicated region
        $region41: #{tpu_custom_call.1} parent=11 // pred_check
          %p518 = pneg %p225
        $region42: #{tpu_custom_call.1} parent=11 // pred_check_branch
          %520 = sbr.rel (%p518) target = $region44
        $region43: #{tpu_custom_call.1} parent=11 // pred_region
          _
        $region44: #{tpu_custom_call.1} parent=11 // pred_fallthru
          _
        // Predicated region
        $region45: #{tpu_custom_call.1} parent=11 // pred_check
          %p521 = pneg %p246
        $region46: #{tpu_custom_call.1} parent=11 // pred_check_branch
          %523 = sbr.rel (%p521) target = $region48
        $region47: #{tpu_custom_call.1} parent=11 // pred_region
          _
        $region48: #{tpu_custom_call.1} parent=11 // pred_fallthru
          _
        // Predicated region
        $region49: #{tpu_custom_call.1} parent=11 // pred_check
          %p524 = pneg %p267
        $region50: #{tpu_custom_call.1} parent=11 // pred_check_branch
          %526 = sbr.rel (%p524) target = $region52
        $region51: #{tpu_custom_call.1} parent=11 // pred_region
          _
        $region52: #{tpu_custom_call.1} parent=11 // pred_fallthru
          _
        // Predicated region
        $region53: #{tpu_custom_call.1} parent=11 // pred_check
          %p527 = pneg %p288
        $region54: #{tpu_custom_call.1} parent=11 // pred_check_branch
          %529 = sbr.rel (%p527) target = $region56
        $region55: #{tpu_custom_call.1} parent=11 // pred_region
          _
        $region56: #{tpu_custom_call.1} parent=11 // pred_fallthru
          _
        // Predicated region
        $region57: #{tpu_custom_call.1} parent=11 // pred_check
          %p530 = pneg %p309
        $region58: #{tpu_custom_call.1} parent=11 // pred_check_branch
          %532 = sbr.rel (%p530) target = $region60
        $region59: #{tpu_custom_call.1} parent=11 // pred_region
          _
        $region60: #{tpu_custom_call.1} parent=11 // pred_fallthru
          _
        // Predicated region
        $region61: #{tpu_custom_call.1} parent=11 // pred_check
          %p533 = pneg %p330
        $region62: #{tpu_custom_call.1} parent=11 // pred_check_branch
          %535 = sbr.rel (%p533) target = $region64
        $region63: #{tpu_custom_call.1} parent=11 // pred_region
          _
        $region64: #{tpu_custom_call.1} parent=11 // pred_fallthru
          _
        // Predicated region
        $region65: #{tpu_custom_call.1} parent=11 // pred_check
          %p536 = pneg %p351
        $region66: #{tpu_custom_call.1} parent=11 // pred_check_branch
          %538 = sbr.rel (%p536) target = $region68
        $region67: #{tpu_custom_call.1} parent=11 // pred_region
          _
        $region68: #{tpu_custom_call.1} parent=11 // pred_fallthru
          _
        // Predicated region
        $region69: #{tpu_custom_call.1} parent=11 // pred_check
          %p539 = pneg %p372
        $region70: #{tpu_custom_call.1} parent=11 // pred_check_branch
          %541 = sbr.rel (%p539) target = $region72
        $region71: #{tpu_custom_call.1} parent=11 // pred_region
          _
        $region72: #{tpu_custom_call.1} parent=11 // pred_fallthru
          _
        // Predicated region
        $region73: #{tpu_custom_call.1} parent=11 // pred_check
          %p542 = pneg %p393
        $region74: #{tpu_custom_call.1} parent=11 // pred_check_branch
          %544 = sbr.rel (%p542) target = $region76
        $region75: #{tpu_custom_call.1} parent=11 // pred_region
          _
        $region76: #{tpu_custom_call.1} parent=11 // pred_fallthru
          _
        // Predicated region
        $region77: #{tpu_custom_call.1} parent=11 // pred_check
          %p545 = pneg %p414
        $region78: #{tpu_custom_call.1} parent=11 // pred_check_branch
          %547 = sbr.rel (%p545) target = $region80
        $region79: #{tpu_custom_call.1} parent=11 // pred_region
          _
        $region80: #{tpu_custom_call.1} parent=11 // pred_fallthru
          _
        // Predicated region
        $region81: #{tpu_custom_call.1} parent=11 // pred_check
          %p548 = pneg %p435
        $region82: #{tpu_custom_call.1} parent=11 // pred_check_branch
          %550 = sbr.rel (%p548) target = $region84
        $region83: #{tpu_custom_call.1} parent=11 // pred_region
          _
        $region84: #{tpu_custom_call.1} parent=11 // pred_fallthru
          _
        // Predicated region
        $region85: #{tpu_custom_call.1} parent=11 // pred_check
          %p551 = pneg %p456
        $region86: #{tpu_custom_call.1} parent=11 // pred_check_branch
          %553 = sbr.rel (%p551) target = $region88
        $region87: #{tpu_custom_call.1} parent=11 // pred_region
          _
        $region88: #{tpu_custom_call.1} parent=11 // pred_fallthru
          _
      $region12: #{tpu_custom_call.1} parent=5 // pred_fallthru
        _
      %p554 = scmp.lt.s32.totalorder %s31, 2
      // Predicated region
      $region89: #{tpu_custom_call.1} parent=5 // pred_check
        %p555 = pneg %p554
      $region90: #{tpu_custom_call.1} parent=5 // pred_check_branch
        %557 = sbr.rel (%p555) target = $region92
      $region91: #{tpu_custom_call.1} parent=5 // pred_region
        // Predicated region
        $region93: #{tpu_custom_call.1} parent=91 // pred_check
          %p558 = pneg %p51
        $region94: #{tpu_custom_call.1} parent=91 // pred_check_branch
          %560 = sbr.rel (%p558) target = $region96
        $region95: #{tpu_custom_call.1} parent=91 // pred_region
          %p561 = scmp.lt.s32.totalorder %s31, 1
          %s562 = scalar_select %p561, %s31, 1
          %s563 = smul.addr %s562, 2
          %s564 = smul.addr %s563, 8
          %s565 = scalar_lea.vmem %s0, %s564
        $region96: #{tpu_custom_call.1} parent=91 // pred_fallthru
          _
      $region92: #{tpu_custom_call.1} parent=5 // pred_fallthru
        _
      %p566 = scmp.le.s32.totalorder 1, %s31
      %p567 = scmp.lt.s32.totalorder %s31, 3
      %p568 = pnand %p566, %p567
      %p569 = pneg %p568
      // Predicated region
      $region97: #{tpu_custom_call.1} parent=5 // pred_check
        _
      $region98: #{tpu_custom_call.1} parent=5 // pred_check_branch
        %571 = sbr.rel (%p568) target = $region100
      $region99: #{tpu_custom_call.1} parent=5 // pred_region
        %s572 = ssub.s32 %s31, 1
        %p573 = scmp.lt.s32.totalorder %s36, 1
        %s574 = scalar_select %p573, %s36, 1
        %s575 = smul.addr %s574, 2
        %s576 = smul.addr %s575, 8
        %s577 = scalar_lea.vmem %s0, %s576
        %p578 = pneg %p57
        %p579 = pneg %p54
        %p580 = pneg %p78
        %p581 = pneg %p75
        %p582 = pneg %p99
        %p583 = pneg %p96
        %p584 = pneg %p120
        %p585 = pneg %p117
        %p586 = pneg %p141
        %p587 = pneg %p138
        %p588 = pneg %p162
        %p589 = pneg %p159
        %p590 = pneg %p183
        %p591 = pneg %p180
        %p592 = pneg %p204
        %p593 = pneg %p201
        %p594 = pneg %p225
        %p595 = pneg %p222
        %p596 = pneg %p246
        %p597 = pneg %p243
        %p598 = pneg %p267
        %p599 = pneg %p264
        %p600 = pneg %p288
        %p601 = pneg %p285
        %p602 = pneg %p309
        %p603 = pneg %p306
        %p604 = pneg %p330
        %p605 = pneg %p327
        %p606 = pneg %p351
        %p607 = pneg %p348
        %p608 = pneg %p372
        %p609 = pneg %p369
        %p610 = pneg %p393
        %p611 = pneg %p390
        %p612 = pneg %p414
        %p613 = pneg %p411
        %p614 = pneg %p435
        %p615 = pneg %p432
        %p616 = pneg %p456
        %p617 = pneg %p453
        %p618 = pneg %p482
        %p619 = pneg %p479
        %s620 = sand.u32 %s469, 1
        %s621 = scalar_lea.sflag [#allocation5], %s620
        %s622 = sand.u32 %s469, 1
        %s623 = scalar_lea.vmem [#allocation4], %s622
        %p624 = scmp.lt.s32.totalorder %s36, 1
        %s625 = scalar_select %p624, %s36, 1
        %s626 = smul.addr %s625, 2
        %s627 = smul.addr %s626, 8
        %s628 = scalar_lea.vmem %s0, %s627
        %v629 = vld [vmem:[%s628] sm:$0xff]
        %v630 = vld [vmem:[%s628 + $0x8] sm:$0xff]
        %v631 = vld [vmem:[%s1] sm:$0xff]
        %v632 = vld [vmem:[%s3] sm:$0x1]
        %v634 = vlaneseq
        %v635 = vshrl.u32 %v634, 7
        %v636 = vsub.s32 0, %v635
        %v637 = vrot.slane %v632, %v636
        %vm639 = vcmask 64512
        %v641 = vsel %vm639, %v629, 0
        %v644 = vsel %vm639, %v630, 0
        %646 = vmatprep.subr.mxu0 0.0
        %647 = vmatpush1.msra.mxu0 0.0
        %648 = vmatprep.subr.mxu0 0.0
        %649 = vmatpush1.msra.mxu0 0.0
        %650 = vmatprep.subr.mxu0 0.0
        %651 = vmatpush1.msra.mxu0 0.0
        %652 = vmatprep.subr.mxu0 0.0
        %653 = vmatpush1.msra.mxu0 0.0
        %654 = vmatprep.subr.mxu0 0.0
        %655 = vmatpush1.msra.mxu0 0.0
        %656 = vmatprep.subr.mxu0 0.0
        %657 = vmatpush1.msra.mxu0 0.0
        %658 = vmatprep.subr.mxu0 0.0
        %659 = vmatpush1.msra.mxu0 0.0
        %660 = vmatprep.subr.mxu0 0.0
        %661 = vmatpush1.msra.mxu0 0.0
        %662 = vmatprep.subr.mxu0 0.0
        %663 = vmatpush1.msra.mxu0 0.0
        %664 = vmatprep.subr.mxu0 0.0
        %665 = vmatpush1.msra.mxu0 0.0
        %666 = vmatprep.subr.mxu0 0.0
        %667 = vmatpush1.msra.mxu0 0.0
        %668 = vmatprep.subr.mxu0 0.0
        %669 = vmatpush1.msra.mxu0 0.0
        %670 = vmatprep.subr.mxu0 0.0
        %671 = vmatpush1.msra.mxu0 0.0
        %672 = vmatprep.subr.mxu0 0.0
        %673 = vmatpush1.msra.mxu0 0.0
        %674 = vmatprep.subr.mxu0 0.0
        %675 = vmatpush1.msra.mxu0 0.0
        %676 = vmatprep.subr.mxu0 0.0
        %677 = vmatpush1.msra.mxu0 %v631
        %678 = vmatprep.subr.mxu0 0.0
        %679 = vmatpush2.msra.mxu0 0.0
        %680 = vmatprep.subr.mxu0 0.0
        %681 = vmatpush2.msra.mxu0 0.0
        %682 = vmatprep.subr.mxu0 0.0
        %683 = vmatpush2.msra.mxu0 0.0
        %684 = vmatprep.subr.mxu0 0.0
        %685 = vmatpush2.msra.mxu0 0.0
        %686 = vmatprep.subr.mxu0 0.0
        %687 = vmatpush2.msra.mxu0 0.0
        %688 = vmatprep.subr.mxu0 0.0
        %689 = vmatpush2.msra.mxu0 0.0
        %690 = vmatprep.subr.mxu0 0.0
        %691 = vmatpush2.msra.mxu0 0.0
        %692 = vmatprep.subr.mxu0 0.0
        %693 = vmatpush2.msra.mxu0 0.0
        %694 = vmatprep.subr.mxu0 0.0
        %695 = vmatpush2.msra.mxu0 0.0
        %696 = vmatprep.subr.mxu0 0.0
        %697 = vmatpush2.msra.mxu0 0.0
        %698 = vmatprep.subr.mxu0 0.0
        %699 = vmatpush2.msra.mxu0 0.0
        %700 = vmatprep.subr.mxu0 0.0
        %701 = vmatpush2.msra.mxu0 0.0
        %702 = vmatprep.subr.mxu0 0.0
        %703 = vmatpush2.msra.mxu0 0.0
        %704 = vmatprep.subr.mxu0 0.0
        %705 = vmatpush2.msra.mxu0 0.0
        %706 = vmatprep.subr.mxu0 0.0
        %707 = vmatpush2.msra.mxu0 0.0
        %708 = vmatprep.subr.mxu0 0.0
        %709 = vmatpush2.msra.mxu0 0.0
        %710 = vmatprep.mubr.f32.mxu0 0.0
        %711 = vmatmul.mubr.f32.gmra.mxu0 %v641
        %v712 = vpop.f32.mrf.mxu0
        %v713 = vadd.f32 %v637, %v712
        %v714 = vpop.f32.mrf.mxu0
        %715 = vmatprep.mubr.f32.mxu0 0.0
        %716 = vmatmul.mubr.f32.gmra.mxu0 %v644
        %v717 = vpop.f32.mrf.mxu0
        %v718 = vadd.f32 %v637, %v717
        %v719 = vpop.f32.mrf.mxu0
        %720 = vdwg.mxu0
        %v721 = vld [vmem:[%s2] sm:$0xff]
        %v722 = vld [vmem:[%s2 + $0x8] sm:$0xff]
        %v723 = vld [vmem:[%s2 + $0x10] sm:$0xff]
        %v724 = vld [vmem:[%s2 + $0x18] sm:$0xff]
        %vm725 = vcmask 261120
        %v727 = vsel %vm725, 0.0, 0
        %729 = vmatprep.subr.mxu0 0.0
        %730 = vmatpush1.msra.mxu0 0.0
        %731 = vmatprep.subr.mxu0 0.0
        %732 = vmatpush1.msra.mxu0 0.0
        %733 = vmatprep.subr.mxu0 0.0
        %734 = vmatpush1.msra.mxu0 0.0
        %735 = vmatprep.subr.mxu0 0.0
        %736 = vmatpush1.msra.mxu0 0.0
        %737 = vmatprep.subr.mxu0 0.0
        %738 = vmatpush1.msra.mxu0 0.0
        %739 = vmatprep.subr.mxu0 0.0
        %740 = vmatpush1.msra.mxu0 0.0
        %741 = vmatprep.subr.mxu0 0.0
        %742 = vmatpush1.msra.mxu0 0.0
        %743 = vmatprep.subr.mxu0 0.0
        %744 = vmatpush1.msra.mxu0 0.0
        %745 = vmatprep.subr.mxu0 0.0
        %746 = vmatpush1.msra.mxu0 0.0
        %747 = vmatprep.subr.mxu0 0.0
        %748 = vmatpush1.msra.mxu0 0.0
        %749 = vmatprep.subr.mxu0 0.0
        %750 = vmatpush1.msra.mxu0 0.0
        %751 = vmatprep.subr.mxu0 0.0
        %752 = vmatpush1.msra.mxu0 0.0
        %753 = vmatprep.subr.mxu0 0.0
        %754 = vmatpush1.msra.mxu0 %v724
        %755 = vmatprep.subr.mxu0 0.0
        %756 = vmatpush1.msra.mxu0 %v723
        %757 = vmatprep.subr.mxu0 0.0
        %758 = vmatpush1.msra.mxu0 %v722
        %759 = vmatprep.subr.mxu0 0.0
        %760 = vmatpush1.msra.mxu0 %v721
        %761 = vmatprep.subr.mxu0 0.0
        %762 = vmatpush2.msra.mxu0 0.0
        %763 = vmatprep.subr.mxu0 0.0
        %764 = vmatpush2.msra.mxu0 0.0
        %765 = vmatprep.subr.mxu0 0.0
        %766 = vmatpush2.msra.mxu0 0.0
        %767 = vmatprep.subr.mxu0 0.0
        %768 = vmatpush2.msra.mxu0 0.0
        %769 = vmatprep.subr.mxu0 0.0
        %770 = vmatpush2.msra.mxu0 0.0
        %771 = vmatprep.subr.mxu0 0.0
        %772 = vmatpush2.msra.mxu0 0.0
        %773 = vmatprep.subr.mxu0 0.0
        %774 = vmatpush2.msra.mxu0 0.0
        %775 = vmatprep.subr.mxu0 0.0
        %776 = vmatpush2.msra.mxu0 0.0
        %777 = vmatprep.subr.mxu0 0.0
        %778 = vmatpush2.msra.mxu0 0.0
        %779 = vmatprep.subr.mxu0 0.0
        %780 = vmatpush2.msra.mxu0 0.0
        %781 = vmatprep.subr.mxu0 0.0
        %782 = vmatpush2.msra.mxu0 0.0
        %783 = vmatprep.subr.mxu0 0.0
        %784 = vmatpush2.msra.mxu0 0.0
        %785 = vmatprep.subr.mxu0 0.0
        %786 = vmatpush2.msra.mxu0 0.0
        %787 = vmatprep.subr.mxu0 0.0
        %788 = vmatpush2.msra.mxu0 0.0
        %789 = vmatprep.subr.mxu0 0.0
        %790 = vmatpush2.msra.mxu0 0.0
        %791 = vmatprep.subr.mxu0 0.0
        %792 = vmatpush2.msra.mxu0 0.0
        %793 = vmatprep.mubr.f32.mxu0 0.0
        %794 = vmatmul.mubr.f32.gmra.mxu0 %v727
        %v795 = vpop.f32.mrf.mxu0
        %v796 = vadd.f32 0.0, %v795
        %v797 = vpop.f32.mrf.mxu0
        %798 = vdwg.mxu0
        %v799 = vadd.f32 %v713, %v796
        %v800 = vxor.u32 %v799, 2147483648
        %v801 = vmul.f32 %v800, 1.442695
        %v802 = vpow.pop %v801
        %v803 = vadd.f32 %v802, 1.0
        %v804 = vrcp.pop %v803
        %v805 = vmul.f32 1.0, %v804
        %v806 = vtanh.pop %v799
        %v807 = vmul.f32 %v805, 0.0
        %809 = vrot.lane.b32.xlu0 %v806, 64
        %v810 = vpop.permute.xlu0 %809
        %v812 = vmul.f32 %v805, %v810
        %814 = vrot.lane.b32.xlu0 %v812, 32
        %v815 = vpop.permute.xlu0 %814
        %v817 = vadd.f32 %v807, %v815
        %v818 = vtanh.pop %v817
        %820 = vrot.lane.b32.xlu0 %v818, 64
        %v821 = vpop.permute.xlu0 %820
        %v823 = vmul.f32 %v805, %v821
        %825 = vrot.lane.b32.xlu0 %v823, 32
        %v826 = vpop.permute.xlu0 %825
        %vm828 = vcmask 253952
        %829 = vst.msk [vmem:[#allocation2] sm:$0x1] %vm828, %v826
        %v830 = vsel %vm725, %v826, 0
        %832 = vmatprep.subr.mxu0 0.0
        %833 = vmatpush1.msra.mxu0 0.0
        %834 = vmatprep.subr.mxu0 0.0
        %835 = vmatpush1.msra.mxu0 0.0
        %836 = vmatprep.subr.mxu0 0.0
        %837 = vmatpush1.msra.mxu0 0.0
        %838 = vmatprep.subr.mxu0 0.0
        %839 = vmatpush1.msra.mxu0 0.0
        %840 = vmatprep.subr.mxu0 0.0
        %841 = vmatpush1.msra.mxu0 0.0
        %842 = vmatprep.subr.mxu0 0.0
        %843 = vmatpush1.msra.mxu0 0.0
        %844 = vmatprep.subr.mxu0 0.0
        %845 = vmatpush1.msra.mxu0 0.0
        %846 = vmatprep.subr.mxu0 0.0
        %847 = vmatpush1.msra.mxu0 0.0
        %848 = vmatprep.subr.mxu0 0.0
        %849 = vmatpush1.msra.mxu0 0.0
        %850 = vmatprep.subr.mxu0 0.0
        %851 = vmatpush1.msra.mxu0 0.0
        %852 = vmatprep.subr.mxu0 0.0
        %853 = vmatpush1.msra.mxu0 0.0
        %854 = vmatprep.subr.mxu0 0.0
        %855 = vmatpush1.msra.mxu0 0.0
        %856 = vmatprep.subr.mxu0 0.0
        %857 = vmatpush1.msra.mxu0 %v724
        %858 = vmatprep.subr.mxu0 0.0
        %859 = vmatpush1.msra.mxu0 %v723
        %860 = vmatprep.subr.mxu0 0.0
        %861 = vmatpush1.msra.mxu0 %v722
        %862 = vmatprep.subr.mxu0 0.0
        %863 = vmatpush1.msra.mxu0 %v721
        %864 = vmatprep.subr.mxu0 0.0
        %865 = vmatpush2.msra.mxu0 0.0
        %866 = vmatprep.subr.mxu0 0.0
        %867 = vmatpush2.msra.mxu0 0.0
        %868 = vmatprep.subr.mxu0 0.0
        %869 = vmatpush2.msra.mxu0 0.0
        %870 = vmatprep.subr.mxu0 0.0
        %871 = vmatpush2.msra.mxu0 0.0
        %872 = vmatprep.subr.mxu0 0.0
        %873 = vmatpush2.msra.mxu0 0.0
        %874 = vmatprep.subr.mxu0 0.0
        %875 = vmatpush2.msra.mxu0 0.0
        %876 = vmatprep.subr.mxu0 0.0
        %877 = vmatpush2.msra.mxu0 0.0
        %878 = vmatprep.subr.mxu0 0.0
        %879 = vmatpush2.msra.mxu0 0.0
        %880 = vmatprep.subr.mxu0 0.0
        %881 = vmatpush2.msra.mxu0 0.0
        %882 = vmatprep.subr.mxu0 0.0
        %883 = vmatpush2.msra.mxu0 0.0
        %884 = vmatprep.subr.mxu0 0.0
        %885 = vmatpush2.msra.mxu0 0.0
        %886 = vmatprep.subr.mxu0 0.0
        %887 = vmatpush2.msra.mxu0 0.0
        %888 = vmatprep.subr.mxu0 0.0
        %889 = vmatpush2.msra.mxu0 0.0
        %890 = vmatprep.subr.mxu0 0.0
        %891 = vmatpush2.msra.mxu0 0.0
        %892 = vmatprep.subr.mxu0 0.0
        %893 = vmatpush2.msra.mxu0 0.0
        %894 = vmatprep.subr.mxu0 0.0
        %895 = vmatpush2.msra.mxu0 0.0
        %896 = vmatprep.mubr.f32.mxu0 0.0
        %897 = vmatmul.mubr.f32.gmra.mxu0 %v830
        %v898 = vpop.f32.mrf.mxu0
        %v899 = vadd.f32 0.0, %v898
        %v900 = vpop.f32.mrf.mxu0
        %901 = vdwg.mxu0
        %v903 = vrot.slane %v899, 7
        %v905 = vadd.f32 %v713, %v903
        %v906 = vxor.u32 %v905, 2147483648
        %v907 = vmul.f32 %v906, 1.442695
        %v908 = vpow.pop %v907
        %v909 = vadd.f32 %v908, 1.0
        %v910 = vrcp.pop %v909
        %v911 = vmul.f32 1.0, %v910
        %v912 = vtanh.pop %v905
        %v914 = vrot.slane %v817, 7
        %v916 = vmul.f32 %v911, %v914
        %918 = vrot.lane.b32.xlu0 %v912, 64
        %v919 = vpop.permute.xlu0 %918
        %v921 = vmul.f32 %v911, %v919
        %923 = vrot.lane.b32.xlu0 %v921, 32
        %v924 = vpop.permute.xlu0 %923
        %v926 = vadd.f32 %v916, %v924
        %v927 = vtanh.pop %v926
        %929 = vrot.lane.b32.xlu0 %v927, 64
        %v930 = vpop.permute.xlu0 %929
        %v932 = vmul.f32 %v911, %v930
        %934 = vrot.lane.b32.xlu0 %v932, 32
        %v935 = vpop.permute.xlu0 %934
        %vm937 = vcmask 254977
        %938 = vst.msk [vmem:[#allocation2] sm:$0x2] %vm937, %v935
        %v939 = vrot.slane %v932, 1
        %940 = vrot.lane.b32.xlu0 %v939, 32
        %v941 = vpop.permute.xlu0 %940
        %v942 = vsel %vm725, %v941, 0
        %944 = vmatprep.subr.mxu0 0.0
        %945 = vmatpush1.msra.mxu0 0.0
        %946 = vmatprep.subr.mxu0 0.0
        %947 = vmatpush1.msra.mxu0 0.0
        %948 = vmatprep.subr.mxu0 0.0
        %949 = vmatpush1.msra.mxu0 0.0
        %950 = vmatprep.subr.mxu0 0.0
        %951 = vmatpush1.msra.mxu0 0.0
        %952 = vmatprep.subr.mxu0 0.0
        %953 = vmatpush1.msra.mxu0 0.0
        %954 = vmatprep.subr.mxu0 0.0
        %955 = vmatpush1.msra.mxu0 0.0
        %956 = vmatprep.subr.mxu0 0.0
        %957 = vmatpush1.msra.mxu0 0.0
        %958 = vmatprep.subr.mxu0 0.0
        %959 = vmatpush1.msra.mxu0 0.0
        %960 = vmatprep.subr.mxu0 0.0
        %961 = vmatpush1.msra.mxu0 0.0
        %962 = vmatprep.subr.mxu0 0.0
        %963 = vmatpush1.msra.mxu0 0.0
        %964 = vmatprep.subr.mxu0 0.0
        %965 = vmatpush1.msra.mxu0 0.0
        %966 = vmatprep.subr.mxu0 0.0
        %967 = vmatpush1.msra.mxu0 0.0
        %968 = vmatprep.subr.mxu0 0.0
        %969 = vmatpush1.msra.mxu0 %v724
        %970 = vmatprep.subr.mxu0 0.0
        %971 = vmatpush1.msra.mxu0 %v723
        %972 = vmatprep.subr.mxu0 0.0
        %973 = vmatpush1.msra.mxu0 %v722
        %974 = vmatprep.subr.mxu0 0.0
        %975 = vmatpush1.msra.mxu0 %v721
        %976 = vmatprep.subr.mxu0 0.0
        %977 = vmatpush2.msra.mxu0 0.0
        %978 = vmatprep.subr.mxu0 0.0
        %979 = vmatpush2.msra.mxu0 0.0
        %980 = vmatprep.subr.mxu0 0.0
        %981 = vmatpush2.msra.mxu0 0.0
        %982 = vmatprep.subr.mxu0 0.0
        %983 = vmatpush2.msra.mxu0 0.0
        %984 = vmatprep.subr.mxu0 0.0
        %985 = vmatpush2.msra.mxu0 0.0
        %986 = vmatprep.subr.mxu0 0.0
        %987 = vmatpush2.msra.mxu0 0.0
        %988 = vmatprep.subr.mxu0 0.0
        %989 = vmatpush2.msra.mxu0 0.0
        %990 = vmatprep.subr.mxu0 0.0
        %991 = vmatpush2.msra.mxu0 0.0
        %992 = vmatprep.subr.mxu0 0.0
        %993 = vmatpush2.msra.mxu0 0.0
        %994 = vmatprep.subr.mxu0 0.0
        %995 = vmatpush2.msra.mxu0 0.0
        %996 = vmatprep.subr.mxu0 0.0
        %997 = vmatpush2.msra.mxu0 0.0
        %998 = vmatprep.subr.mxu0 0.0
        %999 = vmatpush2.msra.mxu0 0.0
        %1000 = vmatprep.subr.mxu0 0.0
        %1001 = vmatpush2.msra.mxu0 0.0
        %1002 = vmatprep.subr.mxu0 0.0
        %1003 = vmatpush2.msra.mxu0 0.0
        %1004 = vmatprep.subr.mxu0 0.0
        %1005 = vmatpush2.msra.mxu0 0.0
        %1006 = vmatprep.subr.mxu0 0.0
        %1007 = vmatpush2.msra.mxu0 0.0
        %1008 = vmatprep.mubr.f32.mxu0 0.0
        %1009 = vmatmul.mubr.f32.gmra.mxu0 %v942
        %v1010 = vpop.f32.mrf.mxu0
        %v1011 = vadd.f32 0.0, %v1010
        %v1012 = vpop.f32.mrf.mxu0
        %1013 = vdwg.mxu0
        %v1015 = vrot.slane %v1011, 6
        %v1017 = vadd.f32 %v713, %v1015
        %v1018 = vxor.u32 %v1017, 2147483648
        %v1019 = vmul.f32 %v1018, 1.442695
        %v1020 = vpow.pop %v1019
        %v1021 = vadd.f32 %v1020, 1.0
        %v1022 = vrcp.pop %v1021
        %v1023 = vmul.f32 1.0, %v1022
        %v1024 = vtanh.pop %v1017
        %v1026 = vrot.slane %v926, 7
        %v1028 = vmul.f32 %v1023, %v1026
        %1030 = vrot.lane.b32.xlu0 %v1024, 64
        %v1031 = vpop.permute.xlu0 %1030
        %v1033 = vmul.f32 %v1023, %v1031
        %1035 = vrot.lane.b32.xlu0 %v1033, 32
        %v1036 = vpop.permute.xlu0 %1035
        %v1038 = vadd.f32 %v1028, %v1036
        %v1039 = vtanh.pop %v1038
        %1041 = vrot.lane.b32.xlu0 %v1039, 64
        %v1042 = vpop.permute.xlu0 %1041
        %v1044 = vmul.f32 %v1023, %v1042
        %1046 = vrot.lane.b32.xlu0 %v1044, 32
        %v1047 = vpop.permute.xlu0 %1046
        %vm1049 = vcmask 256002
        %1050 = vst.msk [vmem:[#allocation2] sm:$0x4] %vm1049, %v1047
        %v1051 = vrot.slane %v1044, 2
        %1052 = vrot.lane.b32.xlu0 %v1051, 32
        %v1053 = vpop.permute.xlu0 %1052
        %v1054 = vsel %vm725, %v1053, 0
        %1056 = vmatprep.subr.mxu0 0.0
        %1057 = vmatpush1.msra.mxu0 0.0
        %1058 = vmatprep.subr.mxu0 0.0
        %1059 = vmatpush1.msra.mxu0 0.0
        %1060 = vmatprep.subr.mxu0 0.0
        %1061 = vmatpush1.msra.mxu0 0.0
        %1062 = vmatprep.subr.mxu0 0.0
        %1063 = vmatpush1.msra.mxu0 0.0
        %1064 = vmatprep.subr.mxu0 0.0
        %1065 = vmatpush1.msra.mxu0 0.0
        %1066 = vmatprep.subr.mxu0 0.0
        %1067 = vmatpush1.msra.mxu0 0.0
        %1068 = vmatprep.subr.mxu0 0.0
        %1069 = vmatpush1.msra.mxu0 0.0
        %1070 = vmatprep.subr.mxu0 0.0
        %1071 = vmatpush1.msra.mxu0 0.0
        %1072 = vmatprep.subr.mxu0 0.0
        %1073 = vmatpush1.msra.mxu0 0.0
        %1074 = vmatprep.subr.mxu0 0.0
        %1075 = vmatpush1.msra.mxu0 0.0
        %1076 = vmatprep.subr.mxu0 0.0
        %1077 = vmatpush1.msra.mxu0 0.0
        %1078 = vmatprep.subr.mxu0 0.0
        %1079 = vmatpush1.msra.mxu0 0.0
        %1080 = vmatprep.subr.mxu0 0.0
        %1081 = vmatpush1.msra.mxu0 %v724
        %1082 = vmatprep.subr.mxu0 0.0
        %1083 = vmatpush1.msra.mxu0 %v723
        %1084 = vmatprep.subr.mxu0 0.0
        %1085 = vmatpush1.msra.mxu0 %v722
        %1086 = vmatprep.subr.mxu0 0.0
        %1087 = vmatpush1.msra.mxu0 %v721
        %1088 = vmatprep.subr.mxu0 0.0
        %1089 = vmatpush2.msra.mxu0 0.0
        %1090 = vmatprep.subr.mxu0 0.0
        %1091 = vmatpush2.msra.mxu0 0.0
        %1092 = vmatprep.subr.mxu0 0.0
        %1093 = vmatpush2.msra.mxu0 0.0
        %1094 = vmatprep.subr.mxu0 0.0
        %1095 = vmatpush2.msra.mxu0 0.0
        %1096 = vmatprep.subr.mxu0 0.0
        %1097 = vmatpush2.msra.mxu0 0.0
        %1098 = vmatprep.subr.mxu0 0.0
        %1099 = vmatpush2.msra.mxu0 0.0
        %1100 = vmatprep.subr.mxu0 0.0
        %1101 = vmatpush2.msra.mxu0 0.0
        %1102 = vmatprep.subr.mxu0 0.0
        %1103 = vmatpush2.msra.mxu0 0.0
        %1104 = vmatprep.subr.mxu0 0.0
        %1105 = vmatpush2.msra.mxu0 0.0
        %1106 = vmatprep.subr.mxu0 0.0
        %1107 = vmatpush2.msra.mxu0 0.0
        %1108 = vmatprep.subr.mxu0 0.0
        %1109 = vmatpush2.msra.mxu0 0.0
        %1110 = vmatprep.subr.mxu0 0.0
        %1111 = vmatpush2.msra.mxu0 0.0
        %1112 = vmatprep.subr.mxu0 0.0
        %1113 = vmatpush2.msra.mxu0 0.0
        %1114 = vmatprep.subr.mxu0 0.0
        %1115 = vmatpush2.msra.mxu0 0.0
        %1116 = vmatprep.subr.mxu0 0.0
        %1117 = vmatpush2.msra.mxu0 0.0
        %1118 = vmatprep.subr.mxu0 0.0
        %1119 = vmatpush2.msra.mxu0 0.0
        %1120 = vmatprep.mubr.f32.mxu0 0.0
        %1121 = vmatmul.mubr.f32.gmra.mxu0 %v1054
        %v1122 = vpop.f32.mrf.mxu0
        %v1123 = vadd.f32 0.0, %v1122
        %v1124 = vpop.f32.mrf.mxu0
        %1125 = vdwg.mxu0
        %v1127 = vrot.slane %v1123, 5
        %v1129 = vadd.f32 %v713, %v1127
        %v1130 = vxor.u32 %v1129, 2147483648
        %v1131 = vmul.f32 %v1130, 1.442695
        %v1132 = vpow.pop %v1131
        %v1133 = vadd.f32 %v1132, 1.0
        %v1134 = vrcp.pop %v1133
        %v1135 = vmul.f32 1.0, %v1134
        %v1136 = vtanh.pop %v1129
        %v1138 = vrot.slane %v1038, 7
        %v1140 = vmul.f32 %v1135, %v1138
        %1142 = vrot.lane.b32.xlu0 %v1136, 64
        %v1143 = vpop.permute.xlu0 %1142
        %v1145 = vmul.f32 %v1135, %v1143
        %1147 = vrot.lane.b32.xlu0 %v1145, 32
        %v1148 = vpop.permute.xlu0 %1147
        %v1150 = vadd.f32 %v1140, %v1148
        %v1151 = vtanh.pop %v1150
        %1153 = vrot.lane.b32.xlu0 %v1151, 64
        %v1154 = vpop.permute.xlu0 %1153
        %v1156 = vmul.f32 %v1135, %v1154
        %1158 = vrot.lane.b32.xlu0 %v1156, 32
        %v1159 = vpop.permute.xlu0 %1158
        %vm1161 = vcmask 257027
        %1162 = vst.msk [vmem:[#allocation2] sm:$0x8] %vm1161, %v1159
        %v1163 = vrot.slane %v1156, 3
        %1164 = vrot.lane.b32.xlu0 %v1163, 32
        %v1165 = vpop.permute.xlu0 %1164
        %v1166 = vsel %vm725, %v1165, 0
        %1168 = vmatprep.subr.mxu0 0.0
        %1169 = vmatpush1.msra.mxu0 0.0
        %1170 = vmatprep.subr.mxu0 0.0
        %1171 = vmatpush1.msra.mxu0 0.0
        %1172 = vmatprep.subr.mxu0 0.0
        %1173 = vmatpush1.msra.mxu0 0.0
        %1174 = vmatprep.subr.mxu0 0.0
        %1175 = vmatpush1.msra.mxu0 0.0
        %1176 = vmatprep.subr.mxu0 0.0
        %1177 = vmatpush1.msra.mxu0 0.0
        %1178 = vmatprep.subr.mxu0 0.0
        %1179 = vmatpush1.msra.mxu0 0.0
        %1180 = vmatprep.subr.mxu0 0.0
        %1181 = vmatpush1.msra.mxu0 0.0
        %1182 = vmatprep.subr.mxu0 0.0
        %1183 = vmatpush1.msra.mxu0 0.0
        %1184 = vmatprep.subr.mxu0 0.0
        %1185 = vmatpush1.msra.mxu0 0.0
        %1186 = vmatprep.subr.mxu0 0.0
        %1187 = vmatpush1.msra.mxu0 0.0
        %1188 = vmatprep.subr.mxu0 0.0
        %1189 = vmatpush1.msra.mxu0 0.0
        %1190 = vmatprep.subr.mxu0 0.0
        %1191 = vmatpush1.msra.mxu0 0.0
        %1192 = vmatprep.subr.mxu0 0.0
        %1193 = vmatpush1.msra.mxu0 %v724
        %1194 = vmatprep.subr.mxu0 0.0
        %1195 = vmatpush1.msra.mxu0 %v723
        %1196 = vmatprep.subr.mxu0 0.0
        %1197 = vmatpush1.msra.mxu0 %v722
        %1198 = vmatprep.subr.mxu0 0.0
        %1199 = vmatpush1.msra.mxu0 %v721
        %1200 = vmatprep.subr.mxu0 0.0
        %1201 = vmatpush2.msra.mxu0 0.0
        %1202 = vmatprep.subr.mxu0 0.0
        %1203 = vmatpush2.msra.mxu0 0.0
        %1204 = vmatprep.subr.mxu0 0.0
        %1205 = vmatpush2.msra.mxu0 0.0
        %1206 = vmatprep.subr.mxu0 0.0
        %1207 = vmatpush2.msra.mxu0 0.0
        %1208 = vmatprep.subr.mxu0 0.0
        %1209 = vmatpush2.msra.mxu0 0.0
        %1210 = vmatprep.subr.mxu0 0.0
        %1211 = vmatpush2.msra.mxu0 0.0
        %1212 = vmatprep.subr.mxu0 0.0
        %1213 = vmatpush2.msra.mxu0 0.0
        %1214 = vmatprep.subr.mxu0 0.0
        %1215 = vmatpush2.msra.mxu0 0.0
        %1216 = vmatprep.subr.mxu0 0.0
        %1217 = vmatpush2.msra.mxu0 0.0
        %1218 = vmatprep.subr.mxu0 0.0
        %1219 = vmatpush2.msra.mxu0 0.0
        %1220 = vmatprep.subr.mxu0 0.0
        %1221 = vmatpush2.msra.mxu0 0.0
        %1222 = vmatprep.subr.mxu0 0.0
        %1223 = vmatpush2.msra.mxu0 0.0
        %1224 = vmatprep.subr.mxu0 0.0
        %1225 = vmatpush2.msra.mxu0 0.0
        %1226 = vmatprep.subr.mxu0 0.0
        %1227 = vmatpush2.msra.mxu0 0.0
        %1228 = vmatprep.subr.mxu0 0.0
        %1229 = vmatpush2.msra.mxu0 0.0
        %1230 = vmatprep.subr.mxu0 0.0
        %1231 = vmatpush2.msra.mxu0 0.0
        %1232 = vmatprep.mubr.f32.mxu0 0.0
        %1233 = vmatmul.mubr.f32.gmra.mxu0 %v1166
        %v1234 = vpop.f32.mrf.mxu0
        %v1235 = vadd.f32 0.0, %v1234
        %v1236 = vpop.f32.mrf.mxu0
        %1237 = vdwg.mxu0
        %v1239 = vrot.slane %v1235, 4
        %v1241 = vadd.f32 %v713, %v1239
        %v1242 = vxor.u32 %v1241, 2147483648
        %v1243 = vmul.f32 %v1242, 1.442695
        %v1244 = vpow.pop %v1243
        %v1245 = vadd.f32 %v1244, 1.0
        %v1246 = vrcp.pop %v1245
        %v1247 = vmul.f32 1.0, %v1246
        %v1248 = vtanh.pop %v1241
        %v1250 = vrot.slane %v1150, 7
        %v1252 = vmul.f32 %v1247, %v1250
        %1254 = vrot.lane.b32.xlu0 %v1248, 64
        %v1255 = vpop.permute.xlu0 %1254
        %v1257 = vmul.f32 %v1247, %v1255
        %1259 = vrot.lane.b32.xlu0 %v1257, 32
        %v1260 = vpop.permute.xlu0 %1259
        %v1262 = vadd.f32 %v1252, %v1260
        %v1263 = vtanh.pop %v1262
        %1265 = vrot.lane.b32.xlu0 %v1263, 64
        %v1266 = vpop.permute.xlu0 %1265
        %v1268 = vmul.f32 %v1247, %v1266
        %1270 = vrot.lane.b32.xlu0 %v1268, 32
        %v1271 = vpop.permute.xlu0 %1270
        %vm1273 = vcmask 258052
        %1274 = vst.msk [vmem:[#allocation2] sm:$0x10] %vm1273, %v1271
        %v1275 = vrot.slane %v1268, 4
        %1276 = vrot.lane.b32.xlu0 %v1275, 32
        %v1277 = vpop.permute.xlu0 %1276
        %v1278 = vsel %vm725, %v1277, 0
        %1280 = vmatprep.subr.mxu0 0.0
        %1281 = vmatpush1.msra.mxu0 0.0
        %1282 = vmatprep.subr.mxu0 0.0
        %1283 = vmatpush1.msra.mxu0 0.0
        %1284 = vmatprep.subr.mxu0 0.0
        %1285 = vmatpush1.msra.mxu0 0.0
        %1286 = vmatprep.subr.mxu0 0.0
        %1287 = vmatpush1.msra.mxu0 0.0
        %1288 = vmatprep.subr.mxu0 0.0
        %1289 = vmatpush1.msra.mxu0 0.0
        %1290 = vmatprep.subr.mxu0 0.0
        %1291 = vmatpush1.msra.mxu0 0.0
        %1292 = vmatprep.subr.mxu0 0.0
        %1293 = vmatpush1.msra.mxu0 0.0
        %1294 = vmatprep.subr.mxu0 0.0
        %1295 = vmatpush1.msra.mxu0 0.0
        %1296 = vmatprep.subr.mxu0 0.0
        %1297 = vmatpush1.msra.mxu0 0.0
        %1298 = vmatprep.subr.mxu0 0.0
        %1299 = vmatpush1.msra.mxu0 0.0
        %1300 = vmatprep.subr.mxu0 0.0
        %1301 = vmatpush1.msra.mxu0 0.0
        %1302 = vmatprep.subr.mxu0 0.0
        %1303 = vmatpush1.msra.mxu0 0.0
        %1304 = vmatprep.subr.mxu0 0.0
        %1305 = vmatpush1.msra.mxu0 %v724
        %1306 = vmatprep.subr.mxu0 0.0
        %1307 = vmatpush1.msra.mxu0 %v723
        %1308 = vmatprep.subr.mxu0 0.0
        %1309 = vmatpush1.msra.mxu0 %v722
        %1310 = vmatprep.subr.mxu0 0.0
        %1311 = vmatpush1.msra.mxu0 %v721
        %1312 = vmatprep.subr.mxu0 0.0
        %1313 = vmatpush2.msra.mxu0 0.0
        %1314 = vmatprep.subr.mxu0 0.0
        %1315 = vmatpush2.msra.mxu0 0.0
        %1316 = vmatprep.subr.mxu0 0.0
        %1317 = vmatpush2.msra.mxu0 0.0
        %1318 = vmatprep.subr.mxu0 0.0
        %1319 = vmatpush2.msra.mxu0 0.0
        %1320 = vmatprep.subr.mxu0 0.0
        %1321 = vmatpush2.msra.mxu0 0.0
        %1322 = vmatprep.subr.mxu0 0.0
        %1323 = vmatpush2.msra.mxu0 0.0
        %1324 = vmatprep.subr.mxu0 0.0
        %1325 = vmatpush2.msra.mxu0 0.0
        %1326 = vmatprep.subr.mxu0 0.0
        %1327 = vmatpush2.msra.mxu0 0.0
        %1328 = vmatprep.subr.mxu0 0.0
        %1329 = vmatpush2.msra.mxu0 0.0
        %1330 = vmatprep.subr.mxu0 0.0
        %1331 = vmatpush2.msra.mxu0 0.0
        %1332 = vmatprep.subr.mxu0 0.0
        %1333 = vmatpush2.msra.mxu0 0.0
        %1334 = vmatprep.subr.mxu0 0.0
        %1335 = vmatpush2.msra.mxu0 0.0
        %1336 = vmatprep.subr.mxu0 0.0
        %1337 = vmatpush2.msra.mxu0 0.0
        %1338 = vmatprep.subr.mxu0 0.0
        %1339 = vmatpush2.msra.mxu0 0.0
        %1340 = vmatprep.subr.mxu0 0.0
        %1341 = vmatpush2.msra.mxu0 0.0
        %1342 = vmatprep.subr.mxu0 0.0
        %1343 = vmatpush2.msra.mxu0 0.0
        %1344 = vmatprep.mubr.f32.mxu0 0.0
        %1345 = vmatmul.mubr.f32.gmra.mxu0 %v1278
        %v1346 = vpop.f32.mrf.mxu0
        %v1347 = vadd.f32 0.0, %v1346
        %v1348 = vpop.f32.mrf.mxu0
        %1349 = vdwg.mxu0
        %v1351 = vrot.slane %v1347, 3
        %v1353 = vadd.f32 %v713, %v1351
        %v1354 = vxor.u32 %v1353, 2147483648
        %v1355 = vmul.f32 %v1354, 1.442695
        %v1356 = vpow.pop %v1355
        %v1357 = vadd.f32 %v1356, 1.0
        %v1358 = vrcp.pop %v1357
        %v1359 = vmul.f32 1.0, %v1358
        %v1360 = vtanh.pop %v1353
        %v1362 = vrot.slane %v1262, 7
        %v1364 = vmul.f32 %v1359, %v1362
        %1366 = vrot.lane.b32.xlu0 %v1360, 64
        %v1367 = vpop.permute.xlu0 %1366
        %v1369 = vmul.f32 %v1359, %v1367
        %1371 = vrot.lane.b32.xlu0 %v1369, 32
        %v1372 = vpop.permute.xlu0 %1371
        %v1374 = vadd.f32 %v1364, %v1372
        %v1375 = vtanh.pop %v1374
        %1377 = vrot.lane.b32.xlu0 %v1375, 64
        %v1378 = vpop.permute.xlu0 %1377
        %v1380 = vmul.f32 %v1359, %v1378
        %1382 = vrot.lane.b32.xlu0 %v1380, 32
        %v1383 = vpop.permute.xlu0 %1382
        %vm1385 = vcmask 259077
        %1386 = vst.msk [vmem:[#allocation2] sm:$0x20] %vm1385, %v1383
        %v1387 = vrot.slane %v1380, 5
        %1388 = vrot.lane.b32.xlu0 %v1387, 32
        %v1389 = vpop.permute.xlu0 %1388
        %v1390 = vsel %vm725, %v1389, 0
        %1392 = vmatprep.subr.mxu0 0.0
        %1393 = vmatpush1.msra.mxu0 0.0
        %1394 = vmatprep.subr.mxu0 0.0
        %1395 = vmatpush1.msra.mxu0 0.0
        %1396 = vmatprep.subr.mxu0 0.0
        %1397 = vmatpush1.msra.mxu0 0.0
        %1398 = vmatprep.subr.mxu0 0.0
        %1399 = vmatpush1.msra.mxu0 0.0
        %1400 = vmatprep.subr.mxu0 0.0
        %1401 = vmatpush1.msra.mxu0 0.0
        %1402 = vmatprep.subr.mxu0 0.0
        %1403 = vmatpush1.msra.mxu0 0.0
        %1404 = vmatprep.subr.mxu0 0.0
        %1405 = vmatpush1.msra.mxu0 0.0
        %1406 = vmatprep.subr.mxu0 0.0
        %1407 = vmatpush1.msra.mxu0 0.0
        %1408 = vmatprep.subr.mxu0 0.0
        %1409 = vmatpush1.msra.mxu0 0.0
        %1410 = vmatprep.subr.mxu0 0.0
        %1411 = vmatpush1.msra.mxu0 0.0
        %1412 = vmatprep.subr.mxu0 0.0
        %1413 = vmatpush1.msra.mxu0 0.0
        %1414 = vmatprep.subr.mxu0 0.0
        %1415 = vmatpush1.msra.mxu0 0.0
        %1416 = vmatprep.subr.mxu0 0.0
        %1417 = vmatpush1.msra.mxu0 %v724
        %1418 = vmatprep.subr.mxu0 0.0
        %1419 = vmatpush1.msra.mxu0 %v723
        %1420 = vmatprep.subr.mxu0 0.0
        %1421 = vmatpush1.msra.mxu0 %v722
        %1422 = vmatprep.subr.mxu0 0.0
        %1423 = vmatpush1.msra.mxu0 %v721
        %1424 = vmatprep.subr.mxu0 0.0
        %1425 = vmatpush2.msra.mxu0 0.0
        %1426 = vmatprep.subr.mxu0 0.0
        %1427 = vmatpush2.msra.mxu0 0.0
        %1428 = vmatprep.subr.mxu0 0.0
        %1429 = vmatpush2.msra.mxu0 0.0
        %1430 = vmatprep.subr.mxu0 0.0
        %1431 = vmatpush2.msra.mxu0 0.0
        %1432 = vmatprep.subr.mxu0 0.0
        %1433 = vmatpush2.msra.mxu0 0.0
        %1434 = vmatprep.subr.mxu0 0.0
        %1435 = vmatpush2.msra.mxu0 0.0
        %1436 = vmatprep.subr.mxu0 0.0
        %1437 = vmatpush2.msra.mxu0 0.0
        %1438 = vmatprep.subr.mxu0 0.0
        %1439 = vmatpush2.msra.mxu0 0.0
        %1440 = vmatprep.subr.mxu0 0.0
        %1441 = vmatpush2.msra.mxu0 0.0
        %1442 = vmatprep.subr.mxu0 0.0
        %1443 = vmatpush2.msra.mxu0 0.0
        %1444 = vmatprep.subr.mxu0 0.0
        %1445 = vmatpush2.msra.mxu0 0.0
        %1446 = vmatprep.subr.mxu0 0.0
        %1447 = vmatpush2.msra.mxu0 0.0
        %1448 = vmatprep.subr.mxu0 0.0
        %1449 = vmatpush2.msra.mxu0 0.0
        %1450 = vmatprep.subr.mxu0 0.0
        %1451 = vmatpush2.msra.mxu0 0.0
        %1452 = vmatprep.subr.mxu0 0.0
        %1453 = vmatpush2.msra.mxu0 0.0
        %1454 = vmatprep.subr.mxu0 0.0
        %1455 = vmatpush2.msra.mxu0 0.0
        %1456 = vmatprep.mubr.f32.mxu0 0.0
        %1457 = vmatmul.mubr.f32.gmra.mxu0 %v1390
        %v1458 = vpop.f32.mrf.mxu0
        %v1459 = vadd.f32 0.0, %v1458
        %v1460 = vpop.f32.mrf.mxu0
        %1461 = vdwg.mxu0
        %v1463 = vrot.slane %v1459, 2
        %v1465 = vadd.f32 %v713, %v1463
        %v1466 = vxor.u32 %v1465, 2147483648
        %v1467 = vmul.f32 %v1466, 1.442695
        %v1468 = vpow.pop %v1467
        %v1469 = vadd.f32 %v1468, 1.0
        %v1470 = vrcp.pop %v1469
        %v1471 = vmul.f32 1.0, %v1470
        %v1472 = vtanh.pop %v1465
        %v1474 = vrot.slane %v1374, 7
        %v1476 = vmul.f32 %v1471, %v1474
        %1478 = vrot.lane.b32.xlu0 %v1472, 64
        %v1479 = vpop.permute.xlu0 %1478
        %v1481 = vmul.f32 %v1471, %v1479
        %1483 = vrot.lane.b32.xlu0 %v1481, 32
        %v1484 = vpop.permute.xlu0 %1483
        %v1486 = vadd.f32 %v1476, %v1484
        %v1487 = vtanh.pop %v1486
        %1489 = vrot.lane.b32.xlu0 %v1487, 64
        %v1490 = vpop.permute.xlu0 %1489
        %v1492 = vmul.f32 %v1471, %v1490
        %1494 = vrot.lane.b32.xlu0 %v1492, 32
        %v1495 = vpop.permute.xlu0 %1494
        %vm1497 = vcmask 260102
        %1498 = vst.msk [vmem:[#allocation2] sm:$0x40] %vm1497, %v1495
        %v1499 = vrot.slane %v1492, 6
        %1500 = vrot.lane.b32.xlu0 %v1499, 32
        %v1501 = vpop.permute.xlu0 %1500
        %v1502 = vsel %vm725, %v1501, 0
        %1504 = vmatprep.subr.mxu0 0.0
        %1505 = vmatpush1.msra.mxu0 0.0
        %1506 = vmatprep.subr.mxu0 0.0
        %1507 = vmatpush1.msra.mxu0 0.0
        %1508 = vmatprep.subr.mxu0 0.0
        %1509 = vmatpush1.msra.mxu0 0.0
        %1510 = vmatprep.subr.mxu0 0.0
        %1511 = vmatpush1.msra.mxu0 0.0
        %1512 = vmatprep.subr.mxu0 0.0
        %1513 = vmatpush1.msra.mxu0 0.0
        %1514 = vmatprep.subr.mxu0 0.0
        %1515 = vmatpush1.msra.mxu0 0.0
        %1516 = vmatprep.subr.mxu0 0.0
        %1517 = vmatpush1.msra.mxu0 0.0
        %1518 = vmatprep.subr.mxu0 0.0
        %1519 = vmatpush1.msra.mxu0 0.0
        %1520 = vmatprep.subr.mxu0 0.0
        %1521 = vmatpush1.msra.mxu0 0.0
        %1522 = vmatprep.subr.mxu0 0.0
        %1523 = vmatpush1.msra.mxu0 0.0
        %1524 = vmatprep.subr.mxu0 0.0
        %1525 = vmatpush1.msra.mxu0 0.0
        %1526 = vmatprep.subr.mxu0 0.0
        %1527 = vmatpush1.msra.mxu0 0.0
        %1528 = vmatprep.subr.mxu0 0.0
        %1529 = vmatpush1.msra.mxu0 %v724
        %1530 = vmatprep.subr.mxu0 0.0
        %1531 = vmatpush1.msra.mxu0 %v723
        %1532 = vmatprep.subr.mxu0 0.0
        %1533 = vmatpush1.msra.mxu0 %v722
        %1534 = vmatprep.subr.mxu0 0.0
        %1535 = vmatpush1.msra.mxu0 %v721
        %1536 = vmatprep.subr.mxu0 0.0
        %1537 = vmatpush2.msra.mxu0 0.0
        %1538 = vmatprep.subr.mxu0 0.0
        %1539 = vmatpush2.msra.mxu0 0.0
        %1540 = vmatprep.subr.mxu0 0.0
        %1541 = vmatpush2.msra.mxu0 0.0
        %1542 = vmatprep.subr.mxu0 0.0
        %1543 = vmatpush2.msra.mxu0 0.0
        %1544 = vmatprep.subr.mxu0 0.0
        %1545 = vmatpush2.msra.mxu0 0.0
        %1546 = vmatprep.subr.mxu0 0.0
        %1547 = vmatpush2.msra.mxu0 0.0
        %1548 = vmatprep.subr.mxu0 0.0
        %1549 = vmatpush2.msra.mxu0 0.0
        %1550 = vmatprep.subr.mxu0 0.0
        %1551 = vmatpush2.msra.mxu0 0.0
        %1552 = vmatprep.subr.mxu0 0.0
        %1553 = vmatpush2.msra.mxu0 0.0
        %1554 = vmatprep.subr.mxu0 0.0
        %1555 = vmatpush2.msra.mxu0 0.0
        %1556 = vmatprep.subr.mxu0 0.0
        %1557 = vmatpush2.msra.mxu0 0.0
        %1558 = vmatprep.subr.mxu0 0.0
        %1559 = vmatpush2.msra.mxu0 0.0
        %1560 = vmatprep.subr.mxu0 0.0
        %1561 = vmatpush2.msra.mxu0 0.0
        %1562 = vmatprep.subr.mxu0 0.0
        %1563 = vmatpush2.msra.mxu0 0.0
        %1564 = vmatprep.subr.mxu0 0.0
        %1565 = vmatpush2.msra.mxu0 0.0
        %1566 = vmatprep.subr.mxu0 0.0
        %1567 = vmatpush2.msra.mxu0 0.0
        %1568 = vmatprep.mubr.f32.mxu0 0.0
        %1569 = vmatmul.mubr.f32.gmra.mxu0 %v1502
        %v1570 = vpop.f32.mrf.mxu0
        %v1571 = vadd.f32 0.0, %v1570
        %v1572 = vpop.f32.mrf.mxu0
        %1573 = vdwg.mxu0
        %v1575 = vrot.slane %v1571, 1
        %v1577 = vadd.f32 %v713, %v1575
        %v1578 = vxor.u32 %v1577, 2147483648
        %v1579 = vmul.f32 %v1578, 1.442695
        %v1580 = vpow.pop %v1579
        %v1581 = vadd.f32 %v1580, 1.0
        %v1582 = vrcp.pop %v1581
        %v1583 = vmul.f32 1.0, %v1582
        %v1584 = vtanh.pop %v1577
        %v1586 = vrot.slane %v1486, 7
        %v1588 = vmul.f32 %v1583, %v1586
        %1590 = vrot.lane.b32.xlu0 %v1584, 64
        %v1591 = vpop.permute.xlu0 %1590
        %v1593 = vmul.f32 %v1583, %v1591
        %1595 = vrot.lane.b32.xlu0 %v1593, 32
        %v1596 = vpop.permute.xlu0 %1595
        %v1598 = vadd.f32 %v1588, %v1596
        %v1599 = vtanh.pop %v1598
        %1601 = vrot.lane.b32.xlu0 %v1599, 64
        %v1602 = vpop.permute.xlu0 %1601
        %v1604 = vmul.f32 %v1583, %v1602
        %1606 = vrot.lane.b32.xlu0 %v1604, 32
        %v1607 = vpop.permute.xlu0 %1606
        %vm1609 = vcmask 261127
        %1610 = vst.msk [vmem:[#allocation2] sm:$0x80] %vm1609, %v1607
        %v1611 = vrot.slane %v1604, 7
        %1612 = vrot.lane.b32.xlu0 %v1611, 32
        %v1613 = vpop.permute.xlu0 %1612
        %v1614 = vsel %vm725, %v1613, 0
        %1616 = vmatprep.subr.mxu0 0.0
        %1617 = vmatpush1.msra.mxu0 0.0
        %1618 = vmatprep.subr.mxu0 0.0
        %1619 = vmatpush1.msra.mxu0 0.0
        %1620 = vmatprep.subr.mxu0 0.0
        %1621 = vmatpush1.msra.mxu0 0.0
        %1622 = vmatprep.subr.mxu0 0.0
        %1623 = vmatpush1.msra.mxu0 0.0
        %1624 = vmatprep.subr.mxu0 0.0
        %1625 = vmatpush1.msra.mxu0 0.0
        %1626 = vmatprep.subr.mxu0 0.0
        %1627 = vmatpush1.msra.mxu0 0.0
        %1628 = vmatprep.subr.mxu0 0.0
        %1629 = vmatpush1.msra.mxu0 0.0
        %1630 = vmatprep.subr.mxu0 0.0
        %1631 = vmatpush1.msra.mxu0 0.0
        %1632 = vmatprep.subr.mxu0 0.0
        %1633 = vmatpush1.msra.mxu0 0.0
        %1634 = vmatprep.subr.mxu0 0.0
        %1635 = vmatpush1.msra.mxu0 0.0
        %1636 = vmatprep.subr.mxu0 0.0
        %1637 = vmatpush1.msra.mxu0 0.0
        %1638 = vmatprep.subr.mxu0 0.0
        %1639 = vmatpush1.msra.mxu0 0.0
        %1640 = vmatprep.subr.mxu0 0.0
        %1641 = vmatpush1.msra.mxu0 %v724
        %1642 = vmatprep.subr.mxu0 0.0
        %1643 = vmatpush1.msra.mxu0 %v723
        %1644 = vmatprep.subr.mxu0 0.0
        %1645 = vmatpush1.msra.mxu0 %v722
        %1646 = vmatprep.subr.mxu0 0.0
        %1647 = vmatpush1.msra.mxu0 %v721
        %1648 = vmatprep.subr.mxu0 0.0
        %1649 = vmatpush2.msra.mxu0 0.0
        %1650 = vmatprep.subr.mxu0 0.0
        %1651 = vmatpush2.msra.mxu0 0.0
        %1652 = vmatprep.subr.mxu0 0.0
        %1653 = vmatpush2.msra.mxu0 0.0
        %1654 = vmatprep.subr.mxu0 0.0
        %1655 = vmatpush2.msra.mxu0 0.0
        %1656 = vmatprep.subr.mxu0 0.0
        %1657 = vmatpush2.msra.mxu0 0.0
        %1658 = vmatprep.subr.mxu0 0.0
        %1659 = vmatpush2.msra.mxu0 0.0
        %1660 = vmatprep.subr.mxu0 0.0
        %1661 = vmatpush2.msra.mxu0 0.0
        %1662 = vmatprep.subr.mxu0 0.0
        %1663 = vmatpush2.msra.mxu0 0.0
        %1664 = vmatprep.subr.mxu0 0.0
        %1665 = vmatpush2.msra.mxu0 0.0
        %1666 = vmatprep.subr.mxu0 0.0
        %1667 = vmatpush2.msra.mxu0 0.0
        %1668 = vmatprep.subr.mxu0 0.0
        %1669 = vmatpush2.msra.mxu0 0.0
        %1670 = vmatprep.subr.mxu0 0.0
        %1671 = vmatpush2.msra.mxu0 0.0
        %1672 = vmatprep.subr.mxu0 0.0
        %1673 = vmatpush2.msra.mxu0 0.0
        %1674 = vmatprep.subr.mxu0 0.0
        %1675 = vmatpush2.msra.mxu0 0.0
        %1676 = vmatprep.subr.mxu0 0.0
        %1677 = vmatpush2.msra.mxu0 0.0
        %1678 = vmatprep.subr.mxu0 0.0
        %1679 = vmatpush2.msra.mxu0 0.0
        %1680 = vmatprep.mubr.f32.mxu0 0.0
        %1681 = vmatmul.mubr.f32.gmra.mxu0 %v1614
        %v1682 = vpop.f32.mrf.mxu0
        %v1683 = vadd.f32 0.0, %v1682
        %v1684 = vpop.f32.mrf.mxu0
        %1685 = vdwg.mxu0
        %v1686 = vadd.f32 %v718, %v1683
        %v1687 = vxor.u32 %v1686, 2147483648
        %v1688 = vmul.f32 %v1687, 1.442695
        %v1689 = vpow.pop %v1688
        %v1690 = vadd.f32 %v1689, 1.0
        %v1691 = vrcp.pop %v1690
        %v1692 = vmul.f32 1.0, %v1691
        %v1693 = vtanh.pop %v1686
        %v1695 = vrot.slane %v1598, 7
        %v1697 = vmul.f32 %v1692, %v1695
        %1699 = vrot.lane.b32.xlu0 %v1693, 64
        %v1700 = vpop.permute.xlu0 %1699
        %v1702 = vmul.f32 %v1692, %v1700
        %1704 = vrot.lane.b32.xlu0 %v1702, 32
        %v1705 = vpop.permute.xlu0 %1704
        %v1707 = vadd.f32 %v1697, %v1705
        %v1708 = vtanh.pop %v1707
        %1710 = vrot.lane.b32.xlu0 %v1708, 64
        %v1711 = vpop.permute.xlu0 %1710
        %v1713 = vmul.f32 %v1692, %v1711
        %1715 = vrot.lane.b32.xlu0 %v1713, 32
        %v1716 = vpop.permute.xlu0 %1715
        %1718 = vst.msk [vmem:[#allocation2 + $0x8] sm:$0x1] %vm828, %v1716
        %v1719 = vsel %vm725, %v1716, 0
        %1721 = vmatprep.subr.mxu0 0.0
        %1722 = vmatpush1.msra.mxu0 0.0
        %1723 = vmatprep.subr.mxu0 0.0
        %1724 = vmatpush1.msra.mxu0 0.0
        %1725 = vmatprep.subr.mxu0 0.0
        %1726 = vmatpush1.msra.mxu0 0.0
        %1727 = vmatprep.subr.mxu0 0.0
        %1728 = vmatpush1.msra.mxu0 0.0
        %1729 = vmatprep.subr.mxu0 0.0
        %1730 = vmatpush1.msra.mxu0 0.0
        %1731 = vmatprep.subr.mxu0 0.0
        %1732 = vmatpush1.msra.mxu0 0.0
        %1733 = vmatprep.subr.mxu0 0.0
        %1734 = vmatpush1.msra.mxu0 0.0
        %1735 = vmatprep.subr.mxu0 0.0
        %1736 = vmatpush1.msra.mxu0 0.0
        %1737 = vmatprep.subr.mxu0 0.0
        %1738 = vmatpush1.msra.mxu0 0.0
        %1739 = vmatprep.subr.mxu0 0.0
        %1740 = vmatpush1.msra.mxu0 0.0
        %1741 = vmatprep.subr.mxu0 0.0
        %1742 = vmatpush1.msra.mxu0 0.0
        %1743 = vmatprep.subr.mxu0 0.0
        %1744 = vmatpush1.msra.mxu0 0.0
        %1745 = vmatprep.subr.mxu0 0.0
        %1746 = vmatpush1.msra.mxu0 %v724
        %1747 = vmatprep.subr.mxu0 0.0
        %1748 = vmatpush1.msra.mxu0 %v723
        %1749 = vmatprep.subr.mxu0 0.0
        %1750 = vmatpush1.msra.mxu0 %v722
        %1751 = vmatprep.subr.mxu0 0.0
        %1752 = vmatpush1.msra.mxu0 %v721
        %1753 = vmatprep.subr.mxu0 0.0
        %1754 = vmatpush2.msra.mxu0 0.0
        %1755 = vmatprep.subr.mxu0 0.0
        %1756 = vmatpush2.msra.mxu0 0.0
        %1757 = vmatprep.subr.mxu0 0.0
        %1758 = vmatpush2.msra.mxu0 0.0
        %1759 = vmatprep.subr.mxu0 0.0
        %1760 = vmatpush2.msra.mxu0 0.0
        %1761 = vmatprep.subr.mxu0 0.0
        %1762 = vmatpush2.msra.mxu0 0.0
        %1763 = vmatprep.subr.mxu0 0.0
        %1764 = vmatpush2.msra.mxu0 0.0
        %1765 = vmatprep.subr.mxu0 0.0
        %1766 = vmatpush2.msra.mxu0 0.0
        %1767 = vmatprep.subr.mxu0 0.0
        %1768 = vmatpush2.msra.mxu0 0.0
        %1769 = vmatprep.subr.mxu0 0.0
        %1770 = vmatpush2.msra.mxu0 0.0
        %1771 = vmatprep.subr.mxu0 0.0
        %1772 = vmatpush2.msra.mxu0 0.0
        %1773 = vmatprep.subr.mxu0 0.0
        %1774 = vmatpush2.msra.mxu0 0.0
        %1775 = vmatprep.subr.mxu0 0.0
        %1776 = vmatpush2.msra.mxu0 0.0
        %1777 = vmatprep.subr.mxu0 0.0
        %1778 = vmatpush2.msra.mxu0 0.0
        %1779 = vmatprep.subr.mxu0 0.0
        %1780 = vmatpush2.msra.mxu0 0.0
        %1781 = vmatprep.subr.mxu0 0.0
        %1782 = vmatpush2.msra.mxu0 0.0
        %1783 = vmatprep.subr.mxu0 0.0
        %1784 = vmatpush2.msra.mxu0 0.0
        %1785 = vmatprep.mubr.f32.mxu0 0.0
        %1786 = vmatmul.mubr.f32.gmra.mxu0 %v1719
        %v1787 = vpop.f32.mrf.mxu0
        %v1788 = vadd.f32 0.0, %v1787
        %v1789 = vpop.f32.mrf.mxu0
        %1790 = vdwg.mxu0
        %v1792 = vrot.slane %v1788, 7
        %v1794 = vadd.f32 %v718, %v1792
        %v1795 = vxor.u32 %v1794, 2147483648
        %v1796 = vmul.f32 %v1795, 1.442695
        %v1797 = vpow.pop %v1796
        %v1798 = vadd.f32 %v1797, 1.0
        %v1799 = vrcp.pop %v1798
        %v1800 = vmul.f32 1.0, %v1799
        %v1801 = vtanh.pop %v1794
        %v1803 = vrot.slane %v1707, 7
        %v1805 = vmul.f32 %v1800, %v1803
        %1807 = vrot.lane.b32.xlu0 %v1801, 64
        %v1808 = vpop.permute.xlu0 %1807
        %v1810 = vmul.f32 %v1800, %v1808
        %1812 = vrot.lane.b32.xlu0 %v1810, 32
        %v1813 = vpop.permute.xlu0 %1812
        %v1815 = vadd.f32 %v1805, %v1813
        %v1816 = vtanh.pop %v1815
        %1818 = vrot.lane.b32.xlu0 %v1816, 64
        %v1819 = vpop.permute.xlu0 %1818
        %v1821 = vmul.f32 %v1800, %v1819
        %1823 = vrot.lane.b32.xlu0 %v1821, 32
        %v1824 = vpop.permute.xlu0 %1823
        %1826 = vst.msk [vmem:[#allocation2 + $0x8] sm:$0x2] %vm937, %v1824
        %v1827 = vrot.slane %v1821, 1
        %1828 = vrot.lane.b32.xlu0 %v1827, 32
        %v1829 = vpop.permute.xlu0 %1828
        %v1830 = vsel %vm725, %v1829, 0
        %1832 = vmatprep.subr.mxu0 0.0
        %1833 = vmatpush1.msra.mxu0 0.0
        %1834 = vmatprep.subr.mxu0 0.0
        %1835 = vmatpush1.msra.mxu0 0.0
        %1836 = vmatprep.subr.mxu0 0.0
        %1837 = vmatpush1.msra.mxu0 0.0
        %1838 = vmatprep.subr.mxu0 0.0
        %1839 = vmatpush1.msra.mxu0 0.0
        %1840 = vmatprep.subr.mxu0 0.0
        %1841 = vmatpush1.msra.mxu0 0.0
        %1842 = vmatprep.subr.mxu0 0.0
        %1843 = vmatpush1.msra.mxu0 0.0
        %1844 = vmatprep.subr.mxu0 0.0
        %1845 = vmatpush1.msra.mxu0 0.0
        %1846 = vmatprep.subr.mxu0 0.0
        %1847 = vmatpush1.msra.mxu0 0.0
        %1848 = vmatprep.subr.mxu0 0.0
        %1849 = vmatpush1.msra.mxu0 0.0
        %1850 = vmatprep.subr.mxu0 0.0
        %1851 = vmatpush1.msra.mxu0 0.0
        %1852 = vmatprep.subr.mxu0 0.0
        %1853 = vmatpush1.msra.mxu0 0.0
        %1854 = vmatprep.subr.mxu0 0.0
        %1855 = vmatpush1.msra.mxu0 0.0
        %1856 = vmatprep.subr.mxu0 0.0
        %1857 = vmatpush1.msra.mxu0 %v724
        %1858 = vmatprep.subr.mxu0 0.0
        %1859 = vmatpush1.msra.mxu0 %v723
        %1860 = vmatprep.subr.mxu0 0.0
        %1861 = vmatpush1.msra.mxu0 %v722
        %1862 = vmatprep.subr.mxu0 0.0
        %1863 = vmatpush1.msra.mxu0 %v721
        %1864 = vmatprep.subr.mxu0 0.0
        %1865 = vmatpush2.msra.mxu0 0.0
        %1866 = vmatprep.subr.mxu0 0.0
        %1867 = vmatpush2.msra.mxu0 0.0
        %1868 = vmatprep.subr.mxu0 0.0
        %1869 = vmatpush2.msra.mxu0 0.0
        %1870 = vmatprep.subr.mxu0 0.0
        %1871 = vmatpush2.msra.mxu0 0.0
        %1872 = vmatprep.subr.mxu0 0.0
        %1873 = vmatpush2.msra.mxu0 0.0
        %1874 = vmatprep.subr.mxu0 0.0
        %1875 = vmatpush2.msra.mxu0 0.0
        %1876 = vmatprep.subr.mxu0 0.0
        %1877 = vmatpush2.msra.mxu0 0.0
        %1878 = vmatprep.subr.mxu0 0.0
        %1879 = vmatpush2.msra.mxu0 0.0
        %1880 = vmatprep.subr.mxu0 0.0
        %1881 = vmatpush2.msra.mxu0 0.0
        %1882 = vmatprep.subr.mxu0 0.0
        %1883 = vmatpush2.msra.mxu0 0.0
        %1884 = vmatprep.subr.mxu0 0.0
        %1885 = vmatpush2.msra.mxu0 0.0
        %1886 = vmatprep.subr.mxu0 0.0
        %1887 = vmatpush2.msra.mxu0 0.0
        %1888 = vmatprep.subr.mxu0 0.0
        %1889 = vmatpush2.msra.mxu0 0.0
        %1890 = vmatprep.subr.mxu0 0.0
        %1891 = vmatpush2.msra.mxu0 0.0
        %1892 = vmatprep.subr.mxu0 0.0
        %1893 = vmatpush2.msra.mxu0 0.0
        %1894 = vmatprep.subr.mxu0 0.0
        %1895 = vmatpush2.msra.mxu0 0.0
        %1896 = vmatprep.mubr.f32.mxu0 0.0
        %1897 = vmatmul.mubr.f32.gmra.mxu0 %v1830
        %v1898 = vpop.f32.mrf.mxu0
        %v1899 = vadd.f32 0.0, %v1898
        %v1900 = vpop.f32.mrf.mxu0
        %1901 = vdwg.mxu0
        %v1903 = vrot.slane %v1899, 6
        %v1905 = vadd.f32 %v718, %v1903
        %v1906 = vxor.u32 %v1905, 2147483648
        %v1907 = vmul.f32 %v1906, 1.442695
        %v1908 = vpow.pop %v1907
        %v1909 = vadd.f32 %v1908, 1.0
        %v1910 = vrcp.pop %v1909
        %v1911 = vmul.f32 1.0, %v1910
        %v1912 = vtanh.pop %v1905
        %v1914 = vrot.slane %v1815, 7
        %v1916 = vmul.f32 %v1911, %v1914
        %1918 = vrot.lane.b32.xlu0 %v1912, 64
        %v1919 = vpop.permute.xlu0 %1918
        %v1921 = vmul.f32 %v1911, %v1919
        %1923 = vrot.lane.b32.xlu0 %v1921, 32
        %v1924 = vpop.permute.xlu0 %1923
        %v1926 = vadd.f32 %v1916, %v1924
        %v1927 = vtanh.pop %v1926
        %1929 = vrot.lane.b32.xlu0 %v1927, 64
        %v1930 = vpop.permute.xlu0 %1929
        %v1932 = vmul.f32 %v1911, %v1930
        %1934 = vrot.lane.b32.xlu0 %v1932, 32
        %v1935 = vpop.permute.xlu0 %1934
        %1937 = vst.msk [vmem:[#allocation2 + $0x8] sm:$0x4] %vm1049, %v1935
        %v1938 = vrot.slane %v1932, 2
        %1939 = vrot.lane.b32.xlu0 %v1938, 32
        %v1940 = vpop.permute.xlu0 %1939
        %v1941 = vsel %vm725, %v1940, 0
        %1943 = vmatprep.subr.mxu0 0.0
        %1944 = vmatpush1.msra.mxu0 0.0
        %1945 = vmatprep.subr.mxu0 0.0
        %1946 = vmatpush1.msra.mxu0 0.0
        %1947 = vmatprep.subr.mxu0 0.0
        %1948 = vmatpush1.msra.mxu0 0.0
        %1949 = vmatprep.subr.mxu0 0.0
        %1950 = vmatpush1.msra.mxu0 0.0
        %1951 = vmatprep.subr.mxu0 0.0
        %1952 = vmatpush1.msra.mxu0 0.0
        %1953 = vmatprep.subr.mxu0 0.0
        %1954 = vmatpush1.msra.mxu0 0.0
        %1955 = vmatprep.subr.mxu0 0.0
        %1956 = vmatpush1.msra.mxu0 0.0
        %1957 = vmatprep.subr.mxu0 0.0
        %1958 = vmatpush1.msra.mxu0 0.0
        %1959 = vmatprep.subr.mxu0 0.0
        %1960 = vmatpush1.msra.mxu0 0.0
        %1961 = vmatprep.subr.mxu0 0.0
        %1962 = vmatpush1.msra.mxu0 0.0
        %1963 = vmatprep.subr.mxu0 0.0
        %1964 = vmatpush1.msra.mxu0 0.0
        %1965 = vmatprep.subr.mxu0 0.0
        %1966 = vmatpush1.msra.mxu0 0.0
        %1967 = vmatprep.subr.mxu0 0.0
        %1968 = vmatpush1.msra.mxu0 %v724
        %1969 = vmatprep.subr.mxu0 0.0
        %1970 = vmatpush1.msra.mxu0 %v723
        %1971 = vmatprep.subr.mxu0 0.0
        %1972 = vmatpush1.msra.mxu0 %v722
        %1973 = vmatprep.subr.mxu0 0.0
        %1974 = vmatpush1.msra.mxu0 %v721
        %1975 = vmatprep.subr.mxu0 0.0
        %1976 = vmatpush2.msra.mxu0 0.0
        %1977 = vmatprep.subr.mxu0 0.0
        %1978 = vmatpush2.msra.mxu0 0.0
        %1979 = vmatprep.subr.mxu0 0.0
        %1980 = vmatpush2.msra.mxu0 0.0
        %1981 = vmatprep.subr.mxu0 0.0
        %1982 = vmatpush2.msra.mxu0 0.0
        %1983 = vmatprep.subr.mxu0 0.0
        %1984 = vmatpush2.msra.mxu0 0.0
        %1985 = vmatprep.subr.mxu0 0.0
        %1986 = vmatpush2.msra.mxu0 0.0
        %1987 = vmatprep.subr.mxu0 0.0
        %1988 = vmatpush2.msra.mxu0 0.0
        %1989 = vmatprep.subr.mxu0 0.0
        %1990 = vmatpush2.msra.mxu0 0.0
        %1991 = vmatprep.subr.mxu0 0.0
        %1992 = vmatpush2.msra.mxu0 0.0
        %1993 = vmatprep.subr.mxu0 0.0
        %1994 = vmatpush2.msra.mxu0 0.0
        %1995 = vmatprep.subr.mxu0 0.0
        %1996 = vmatpush2.msra.mxu0 0.0
        %1997 = vmatprep.subr.mxu0 0.0
        %1998 = vmatpush2.msra.mxu0 0.0
        %1999 = vmatprep.subr.mxu0 0.0
        %2000 = vmatpush2.msra.mxu0 0.0
        %2001 = vmatprep.subr.mxu0 0.0
        %2002 = vmatpush2.msra.mxu0 0.0
        %2003 = vmatprep.subr.mxu0 0.0
        %2004 = vmatpush2.msra.mxu0 0.0
        %2005 = vmatprep.subr.mxu0 0.0
        %2006 = vmatpush2.msra.mxu0 0.0
        %2007 = vmatprep.mubr.f32.mxu0 0.0
        %2008 = vmatmul.mubr.f32.gmra.mxu0 %v1941
        %v2009 = vpop.f32.mrf.mxu0
        %v2010 = vadd.f32 0.0, %v2009
        %v2011 = vpop.f32.mrf.mxu0
        %2012 = vdwg.mxu0
        %v2014 = vrot.slane %v2010, 5
        %v2016 = vadd.f32 %v718, %v2014
        %v2017 = vxor.u32 %v2016, 2147483648
        %v2018 = vmul.f32 %v2017, 1.442695
        %v2019 = vpow.pop %v2018
        %v2020 = vadd.f32 %v2019, 1.0
        %v2021 = vrcp.pop %v2020
        %v2022 = vmul.f32 1.0, %v2021
        %v2023 = vtanh.pop %v2016
        %v2025 = vrot.slane %v1926, 7
        %v2027 = vmul.f32 %v2022, %v2025
        %2029 = vrot.lane.b32.xlu0 %v2023, 64
        %v2030 = vpop.permute.xlu0 %2029
        %v2032 = vmul.f32 %v2022, %v2030
        %2034 = vrot.lane.b32.xlu0 %v2032, 32
        %v2035 = vpop.permute.xlu0 %2034
        %v2037 = vadd.f32 %v2027, %v2035
        %v2038 = vtanh.pop %v2037
        %2040 = vrot.lane.b32.xlu0 %v2038, 64
        %v2041 = vpop.permute.xlu0 %2040
        %v2043 = vmul.f32 %v2022, %v2041
        %2045 = vrot.lane.b32.xlu0 %v2043, 32
        %v2046 = vpop.permute.xlu0 %2045
        %2048 = vst.msk [vmem:[#allocation2 + $0x8] sm:$0x8] %vm1161, %v2046
        %v2049 = vrot.slane %v2043, 3
        %2050 = vrot.lane.b32.xlu0 %v2049, 32
        %v2051 = vpop.permute.xlu0 %2050
        %v2052 = vsel %vm725, %v2051, 0
        %2054 = vmatprep.subr.mxu0 0.0
        %2055 = vmatpush1.msra.mxu0 0.0
        %2056 = vmatprep.subr.mxu0 0.0
        %2057 = vmatpush1.msra.mxu0 0.0
        %2058 = vmatprep.subr.mxu0 0.0
        %2059 = vmatpush1.msra.mxu0 0.0
        %2060 = vmatprep.subr.mxu0 0.0
        %2061 = vmatpush1.msra.mxu0 0.0
        %2062 = vmatprep.subr.mxu0 0.0
        %2063 = vmatpush1.msra.mxu0 0.0
        %2064 = vmatprep.subr.mxu0 0.0
        %2065 = vmatpush1.msra.mxu0 0.0
        %2066 = vmatprep.subr.mxu0 0.0
        %2067 = vmatpush1.msra.mxu0 0.0
        %2068 = vmatprep.subr.mxu0 0.0
        %2069 = vmatpush1.msra.mxu0 0.0
        %2070 = vmatprep.subr.mxu0 0.0
        %2071 = vmatpush1.msra.mxu0 0.0
        %2072 = vmatprep.subr.mxu0 0.0
        %2073 = vmatpush1.msra.mxu0 0.0
        %2074 = vmatprep.subr.mxu0 0.0
        %2075 = vmatpush1.msra.mxu0 0.0
        %2076 = vmatprep.subr.mxu0 0.0
        %2077 = vmatpush1.msra.mxu0 0.0
        %2078 = vmatprep.subr.mxu0 0.0
        %2079 = vmatpush1.msra.mxu0 %v724
        %2080 = vmatprep.subr.mxu0 0.0
        %2081 = vmatpush1.msra.mxu0 %v723
        %2082 = vmatprep.subr.mxu0 0.0
        %2083 = vmatpush1.msra.mxu0 %v722
        %2084 = vmatprep.subr.mxu0 0.0
        %2085 = vmatpush1.msra.mxu0 %v721
        %2086 = vmatprep.subr.mxu0 0.0
        %2087 = vmatpush2.msra.mxu0 0.0
        %2088 = vmatprep.subr.mxu0 0.0
        %2089 = vmatpush2.msra.mxu0 0.0
        %2090 = vmatprep.subr.mxu0 0.0
        %2091 = vmatpush2.msra.mxu0 0.0
        %2092 = vmatprep.subr.mxu0 0.0
        %2093 = vmatpush2.msra.mxu0 0.0
        %2094 = vmatprep.subr.mxu0 0.0
        %2095 = vmatpush2.msra.mxu0 0.0
        %2096 = vmatprep.subr.mxu0 0.0
        %2097 = vmatpush2.msra.mxu0 0.0
        %2098 = vmatprep.subr.mxu0 0.0
        %2099 = vmatpush2.msra.mxu0 0.0
        %2100 = vmatprep.subr.mxu0 0.0
        %2101 = vmatpush2.msra.mxu0 0.0
        %2102 = vmatprep.subr.mxu0 0.0
        %2103 = vmatpush2.msra.mxu0 0.0
        %2104 = vmatprep.subr.mxu0 0.0
        %2105 = vmatpush2.msra.mxu0 0.0
        %2106 = vmatprep.subr.mxu0 0.0
        %2107 = vmatpush2.msra.mxu0 0.0
        %2108 = vmatprep.subr.mxu0 0.0
        %2109 = vmatpush2.msra.mxu0 0.0
        %2110 = vmatprep.subr.mxu0 0.0
        %2111 = vmatpush2.msra.mxu0 0.0
        %2112 = vmatprep.subr.mxu0 0.0
        %2113 = vmatpush2.msra.mxu0 0.0
        %2114 = vmatprep.subr.mxu0 0.0
        %2115 = vmatpush2.msra.mxu0 0.0
        %2116 = vmatprep.subr.mxu0 0.0
        %2117 = vmatpush2.msra.mxu0 0.0
        %2118 = vmatprep.mubr.f32.mxu0 0.0
        %2119 = vmatmul.mubr.f32.gmra.mxu0 %v2052
        %v2120 = vpop.f32.mrf.mxu0
        %v2121 = vadd.f32 0.0, %v2120
        %v2122 = vpop.f32.mrf.mxu0
        %2123 = vdwg.mxu0
        %v2125 = vrot.slane %v2121, 4
        %v2127 = vadd.f32 %v718, %v2125
        %v2128 = vxor.u32 %v2127, 2147483648
        %v2129 = vmul.f32 %v2128, 1.442695
        %v2130 = vpow.pop %v2129
        %v2131 = vadd.f32 %v2130, 1.0
        %v2132 = vrcp.pop %v2131
        %v2133 = vmul.f32 1.0, %v2132
        %v2134 = vtanh.pop %v2127
        %v2136 = vrot.slane %v2037, 7
        %v2138 = vmul.f32 %v2133, %v2136
        %2140 = vrot.lane.b32.xlu0 %v2134, 64
        %v2141 = vpop.permute.xlu0 %2140
        %v2143 = vmul.f32 %v2133, %v2141
        %2145 = vrot.lane.b32.xlu0 %v2143, 32
        %v2146 = vpop.permute.xlu0 %2145
        %v2148 = vadd.f32 %v2138, %v2146
        %v2149 = vtanh.pop %v2148
        %2151 = vrot.lane.b32.xlu0 %v2149, 64
        %v2152 = vpop.permute.xlu0 %2151
        %v2154 = vmul.f32 %v2133, %v2152
        %2156 = vrot.lane.b32.xlu0 %v2154, 32
        %v2157 = vpop.permute.xlu0 %2156
        %2159 = vst.msk [vmem:[#allocation2 + $0x8] sm:$0x10] %vm1273, %v2157
        %v2160 = vrot.slane %v2154, 4
        %2161 = vrot.lane.b32.xlu0 %v2160, 32
        %v2162 = vpop.permute.xlu0 %2161
        %v2163 = vsel %vm725, %v2162, 0
        %2165 = vmatprep.subr.mxu0 0.0
        %2166 = vmatpush1.msra.mxu0 0.0
        %2167 = vmatprep.subr.mxu0 0.0
        %2168 = vmatpush1.msra.mxu0 0.0
        %2169 = vmatprep.subr.mxu0 0.0
        %2170 = vmatpush1.msra.mxu0 0.0
        %2171 = vmatprep.subr.mxu0 0.0
        %2172 = vmatpush1.msra.mxu0 0.0
        %2173 = vmatprep.subr.mxu0 0.0
        %2174 = vmatpush1.msra.mxu0 0.0
        %2175 = vmatprep.subr.mxu0 0.0
        %2176 = vmatpush1.msra.mxu0 0.0
        %2177 = vmatprep.subr.mxu0 0.0
        %2178 = vmatpush1.msra.mxu0 0.0
        %2179 = vmatprep.subr.mxu0 0.0
        %2180 = vmatpush1.msra.mxu0 0.0
        %2181 = vmatprep.subr.mxu0 0.0
        %2182 = vmatpush1.msra.mxu0 0.0
        %2183 = vmatprep.subr.mxu0 0.0
        %2184 = vmatpush1.msra.mxu0 0.0
        %2185 = vmatprep.subr.mxu0 0.0
        %2186 = vmatpush1.msra.mxu0 0.0
        %2187 = vmatprep.subr.mxu0 0.0
        %2188 = vmatpush1.msra.mxu0 0.0
        %2189 = vmatprep.subr.mxu0 0.0
        %2190 = vmatpush1.msra.mxu0 %v724
        %2191 = vmatprep.subr.mxu0 0.0
        %2192 = vmatpush1.msra.mxu0 %v723
        %2193 = vmatprep.subr.mxu0 0.0
        %2194 = vmatpush1.msra.mxu0 %v722
        %2195 = vmatprep.subr.mxu0 0.0
        %2196 = vmatpush1.msra.mxu0 %v721
        %2197 = vmatprep.subr.mxu0 0.0
        %2198 = vmatpush2.msra.mxu0 0.0
        %2199 = vmatprep.subr.mxu0 0.0
        %2200 = vmatpush2.msra.mxu0 0.0
        %2201 = vmatprep.subr.mxu0 0.0
        %2202 = vmatpush2.msra.mxu0 0.0
        %2203 = vmatprep.subr.mxu0 0.0
        %2204 = vmatpush2.msra.mxu0 0.0
        %2205 = vmatprep.subr.mxu0 0.0
        %2206 = vmatpush2.msra.mxu0 0.0
        %2207 = vmatprep.subr.mxu0 0.0
        %2208 = vmatpush2.msra.mxu0 0.0
        %2209 = vmatprep.subr.mxu0 0.0
        %2210 = vmatpush2.msra.mxu0 0.0
        %2211 = vmatprep.subr.mxu0 0.0
        %2212 = vmatpush2.msra.mxu0 0.0
        %2213 = vmatprep.subr.mxu0 0.0
        %2214 = vmatpush2.msra.mxu0 0.0
        %2215 = vmatprep.subr.mxu0 0.0
        %2216 = vmatpush2.msra.mxu0 0.0
        %2217 = vmatprep.subr.mxu0 0.0
        %2218 = vmatpush2.msra.mxu0 0.0
        %2219 = vmatprep.subr.mxu0 0.0
        %2220 = vmatpush2.msra.mxu0 0.0
        %2221 = vmatprep.subr.mxu0 0.0
        %2222 = vmatpush2.msra.mxu0 0.0
        %2223 = vmatprep.subr.mxu0 0.0
        %2224 = vmatpush2.msra.mxu0 0.0
        %2225 = vmatprep.subr.mxu0 0.0
        %2226 = vmatpush2.msra.mxu0 0.0
        %2227 = vmatprep.subr.mxu0 0.0
        %2228 = vmatpush2.msra.mxu0 0.0
        %2229 = vmatprep.mubr.f32.mxu0 0.0
        %2230 = vmatmul.mubr.f32.gmra.mxu0 %v2163
        %v2231 = vpop.f32.mrf.mxu0
        %v2232 = vadd.f32 0.0, %v2231
        %v2233 = vpop.f32.mrf.mxu0
        %2234 = vdwg.mxu0
        %v2236 = vrot.slane %v2232, 3
        %v2238 = vadd.f32 %v718, %v2236
        %v2239 = vxor.u32 %v2238, 2147483648
        %v2240 = vmul.f32 %v2239, 1.442695
        %v2241 = vpow.pop %v2240
        %v2242 = vadd.f32 %v2241, 1.0
        %v2243 = vrcp.pop %v2242
        %v2244 = vmul.f32 1.0, %v2243
        %v2245 = vtanh.pop %v2238
        %v2247 = vrot.slane %v2148, 7
        %v2249 = vmul.f32 %v2244, %v2247
        %2251 = vrot.lane.b32.xlu0 %v2245, 64
        %v2252 = vpop.permute.xlu0 %2251
        %v2254 = vmul.f32 %v2244, %v2252
        %2256 = vrot.lane.b32.xlu0 %v2254, 32
        %v2257 = vpop.permute.xlu0 %2256
        %v2259 = vadd.f32 %v2249, %v2257
        %v2260 = vtanh.pop %v2259
        %2262 = vrot.lane.b32.xlu0 %v2260, 64
        %v2263 = vpop.permute.xlu0 %2262
        %v2265 = vmul.f32 %v2244, %v2263
        %2267 = vrot.lane.b32.xlu0 %v2265, 32
        %v2268 = vpop.permute.xlu0 %2267
        %2270 = vst.msk [vmem:[#allocation2 + $0x8] sm:$0x20] %vm1385, %v2268
        %v2271 = vrot.slane %v2265, 5
        %2272 = vrot.lane.b32.xlu0 %v2271, 32
        %v2273 = vpop.permute.xlu0 %2272
        %v2274 = vsel %vm725, %v2273, 0
        %2276 = vmatprep.subr.mxu0 0.0
        %2277 = vmatpush1.msra.mxu0 0.0
        %2278 = vmatprep.subr.mxu0 0.0
        %2279 = vmatpush1.msra.mxu0 0.0
        %2280 = vmatprep.subr.mxu0 0.0
        %2281 = vmatpush1.msra.mxu0 0.0
        %2282 = vmatprep.subr.mxu0 0.0
        %2283 = vmatpush1.msra.mxu0 0.0
        %2284 = vmatprep.subr.mxu0 0.0
        %2285 = vmatpush1.msra.mxu0 0.0
        %2286 = vmatprep.subr.mxu0 0.0
        %2287 = vmatpush1.msra.mxu0 0.0
        %2288 = vmatprep.subr.mxu0 0.0
        %2289 = vmatpush1.msra.mxu0 0.0
        %2290 = vmatprep.subr.mxu0 0.0
        %2291 = vmatpush1.msra.mxu0 0.0
        %2292 = vmatprep.subr.mxu0 0.0
        %2293 = vmatpush1.msra.mxu0 0.0
        %2294 = vmatprep.subr.mxu0 0.0
        %2295 = vmatpush1.msra.mxu0 0.0
        %2296 = vmatprep.subr.mxu0 0.0
        %2297 = vmatpush1.msra.mxu0 0.0
        %2298 = vmatprep.subr.mxu0 0.0
        %2299 = vmatpush1.msra.mxu0 0.0
        %2300 = vmatprep.subr.mxu0 0.0
        %2301 = vmatpush1.msra.mxu0 %v724
        %2302 = vmatprep.subr.mxu0 0.0
        %2303 = vmatpush1.msra.mxu0 %v723
        %2304 = vmatprep.subr.mxu0 0.0
        %2305 = vmatpush1.msra.mxu0 %v722
        %2306 = vmatprep.subr.mxu0 0.0
        %2307 = vmatpush1.msra.mxu0 %v721
        %2308 = vmatprep.subr.mxu0 0.0
        %2309 = vmatpush2.msra.mxu0 0.0
        %2310 = vmatprep.subr.mxu0 0.0
        %2311 = vmatpush2.msra.mxu0 0.0
        %2312 = vmatprep.subr.mxu0 0.0
        %2313 = vmatpush2.msra.mxu0 0.0
        %2314 = vmatprep.subr.mxu0 0.0
        %2315 = vmatpush2.msra.mxu0 0.0
        %2316 = vmatprep.subr.mxu0 0.0
        %2317 = vmatpush2.msra.mxu0 0.0
        %2318 = vmatprep.subr.mxu0 0.0
        %2319 = vmatpush2.msra.mxu0 0.0
        %2320 = vmatprep.subr.mxu0 0.0
        %2321 = vmatpush2.msra.mxu0 0.0
        %2322 = vmatprep.subr.mxu0 0.0
        %2323 = vmatpush2.msra.mxu0 0.0
        %2324 = vmatprep.subr.mxu0 0.0
        %2325 = vmatpush2.msra.mxu0 0.0
        %2326 = vmatprep.subr.mxu0 0.0
        %2327 = vmatpush2.msra.mxu0 0.0
        %2328 = vmatprep.subr.mxu0 0.0
        %2329 = vmatpush2.msra.mxu0 0.0
        %2330 = vmatprep.subr.mxu0 0.0
        %2331 = vmatpush2.msra.mxu0 0.0
        %2332 = vmatprep.subr.mxu0 0.0
        %2333 = vmatpush2.msra.mxu0 0.0
        %2334 = vmatprep.subr.mxu0 0.0
        %2335 = vmatpush2.msra.mxu0 0.0
        %2336 = vmatprep.subr.mxu0 0.0
        %2337 = vmatpush2.msra.mxu0 0.0
        %2338 = vmatprep.subr.mxu0 0.0
        %2339 = vmatpush2.msra.mxu0 0.0
        %2340 = vmatprep.mubr.f32.mxu0 0.0
        %2341 = vmatmul.mubr.f32.gmra.mxu0 %v2274
        %v2342 = vpop.f32.mrf.mxu0
        %v2343 = vadd.f32 0.0, %v2342
        %v2344 = vpop.f32.mrf.mxu0
        %2345 = vdwg.mxu0
        %v2347 = vrot.slane %v2343, 2
        %v2349 = vadd.f32 %v718, %v2347
        %v2350 = vxor.u32 %v2349, 2147483648
        %v2351 = vmul.f32 %v2350, 1.442695
        %v2352 = vpow.pop %v2351
        %v2353 = vadd.f32 %v2352, 1.0
        %v2354 = vrcp.pop %v2353
        %v2355 = vmul.f32 1.0, %v2354
        %v2356 = vtanh.pop %v2349
        %v2358 = vrot.slane %v2259, 7
        %v2360 = vmul.f32 %v2355, %v2358
        %2362 = vrot.lane.b32.xlu0 %v2356, 64
        %v2363 = vpop.permute.xlu0 %2362
        %v2365 = vmul.f32 %v2355, %v2363
        %2367 = vrot.lane.b32.xlu0 %v2365, 32
        %v2368 = vpop.permute.xlu0 %2367
        %v2370 = vadd.f32 %v2360, %v2368
        %v2371 = vtanh.pop %v2370
        %2373 = vrot.lane.b32.xlu0 %v2371, 64
        %v2374 = vpop.permute.xlu0 %2373
        %v2376 = vmul.f32 %v2355, %v2374
        %2378 = vrot.lane.b32.xlu0 %v2376, 32
        %v2379 = vpop.permute.xlu0 %2378
        %2381 = vst.msk [vmem:[#allocation2 + $0x8] sm:$0x40] %vm1497, %v2379
        %v2382 = vrot.slane %v2376, 6
        %2383 = vrot.lane.b32.xlu0 %v2382, 32
        %v2384 = vpop.permute.xlu0 %2383
        %v2385 = vsel %vm725, %v2384, 0
        %2387 = vmatprep.subr.mxu0 0.0
        %2388 = vmatpush1.msra.mxu0 0.0
        %2389 = vmatprep.subr.mxu0 0.0
        %2390 = vmatpush1.msra.mxu0 0.0
        %2391 = vmatprep.subr.mxu0 0.0
        %2392 = vmatpush1.msra.mxu0 0.0
        %2393 = vmatprep.subr.mxu0 0.0
        %2394 = vmatpush1.msra.mxu0 0.0
        %2395 = vmatprep.subr.mxu0 0.0
        %2396 = vmatpush1.msra.mxu0 0.0
        %2397 = vmatprep.subr.mxu0 0.0
        %2398 = vmatpush1.msra.mxu0 0.0
        %2399 = vmatprep.subr.mxu0 0.0
        %2400 = vmatpush1.msra.mxu0 0.0
        %2401 = vmatprep.subr.mxu0 0.0
        %2402 = vmatpush1.msra.mxu0 0.0
        %2403 = vmatprep.subr.mxu0 0.0
        %2404 = vmatpush1.msra.mxu0 0.0
        %2405 = vmatprep.subr.mxu0 0.0
        %2406 = vmatpush1.msra.mxu0 0.0
        %2407 = vmatprep.subr.mxu0 0.0
        %2408 = vmatpush1.msra.mxu0 0.0
        %2409 = vmatprep.subr.mxu0 0.0
        %2410 = vmatpush1.msra.mxu0 0.0
        %2411 = vmatprep.subr.mxu0 0.0
        %2412 = vmatpush1.msra.mxu0 %v724
        %2413 = vmatprep.subr.mxu0 0.0
        %2414 = vmatpush1.msra.mxu0 %v723
        %2415 = vmatprep.subr.mxu0 0.0
        %2416 = vmatpush1.msra.mxu0 %v722
        %2417 = vmatprep.subr.mxu0 0.0
        %2418 = vmatpush1.msra.mxu0 %v721
        %2419 = vmatprep.subr.mxu0 0.0
        %2420 = vmatpush2.msra.mxu0 0.0
        %2421 = vmatprep.subr.mxu0 0.0
        %2422 = vmatpush2.msra.mxu0 0.0
        %2423 = vmatprep.subr.mxu0 0.0
        %2424 = vmatpush2.msra.mxu0 0.0
        %2425 = vmatprep.subr.mxu0 0.0
        %2426 = vmatpush2.msra.mxu0 0.0
        %2427 = vmatprep.subr.mxu0 0.0
        %2428 = vmatpush2.msra.mxu0 0.0
        %2429 = vmatprep.subr.mxu0 0.0
        %2430 = vmatpush2.msra.mxu0 0.0
        %2431 = vmatprep.subr.mxu0 0.0
        %2432 = vmatpush2.msra.mxu0 0.0
        %2433 = vmatprep.subr.mxu0 0.0
        %2434 = vmatpush2.msra.mxu0 0.0
        %2435 = vmatprep.subr.mxu0 0.0
        %2436 = vmatpush2.msra.mxu0 0.0
        %2437 = vmatprep.subr.mxu0 0.0
        %2438 = vmatpush2.msra.mxu0 0.0
        %2439 = vmatprep.subr.mxu0 0.0
        %2440 = vmatpush2.msra.mxu0 0.0
        %2441 = vmatprep.subr.mxu0 0.0
        %2442 = vmatpush2.msra.mxu0 0.0
        %2443 = vmatprep.subr.mxu0 0.0
        %2444 = vmatpush2.msra.mxu0 0.0
        %2445 = vmatprep.subr.mxu0 0.0
        %2446 = vmatpush2.msra.mxu0 0.0
        %2447 = vmatprep.subr.mxu0 0.0
        %2448 = vmatpush2.msra.mxu0 0.0
        %2449 = vmatprep.subr.mxu0 0.0
        %2450 = vmatpush2.msra.mxu0 0.0
        %2451 = vmatprep.mubr.f32.mxu0 0.0
        %2452 = vmatmul.mubr.f32.gmra.mxu0 %v2385
        %v2453 = vpop.f32.mrf.mxu0
        %v2454 = vadd.f32 0.0, %v2453
        %v2455 = vpop.f32.mrf.mxu0
        %2456 = vdwg.mxu0
        %v2458 = vrot.slane %v2454, 1
        %v2460 = vadd.f32 %v718, %v2458
        %v2461 = vxor.u32 %v2460, 2147483648
        %v2462 = vmul.f32 %v2461, 1.442695
        %v2463 = vpow.pop %v2462
        %v2464 = vadd.f32 %v2463, 1.0
        %v2465 = vrcp.pop %v2464
        %v2466 = vmul.f32 1.0, %v2465
        %v2467 = vtanh.pop %v2460
        %v2469 = vrot.slane %v2370, 7
        %v2471 = vmul.f32 %v2466, %v2469
        %2473 = vrot.lane.b32.xlu0 %v2467, 64
        %v2474 = vpop.permute.xlu0 %2473
        %v2476 = vmul.f32 %v2466, %v2474
        %2478 = vrot.lane.b32.xlu0 %v2476, 32
        %v2479 = vpop.permute.xlu0 %2478
        %v2481 = vadd.f32 %v2471, %v2479
        %v2482 = vtanh.pop %v2481
        %2484 = vrot.lane.b32.xlu0 %v2482, 64
        %v2485 = vpop.permute.xlu0 %2484
        %v2487 = vmul.f32 %v2466, %v2485
        %2489 = vrot.lane.b32.xlu0 %v2487, 32
        %v2490 = vpop.permute.xlu0 %2489
        %2492 = vst.msk [vmem:[#allocation2 + $0x8] sm:$0x80] %vm1609, %v2490
        %v2493 = vld [vmem:[#allocation2] sm:$0xff]
        %v2494 = vld [vmem:[#allocation2 + $0x8] sm:$0xff]
        %v2495 = vld [vmem:[%s4] sm:$0xff]
        %v2496 = vld [vmem:[%s4 + $0x8] sm:$0xff]
        %v2497 = vld [vmem:[%s4 + $0x10] sm:$0xff]
        %v2498 = vld [vmem:[%s4 + $0x18] sm:$0xff]
        %v2499 = vld [vmem:[%s5] sm:$0x1]
        %v2501 = vlaneseq
        %v2502 = vshrl.u32 %v2501, 7
        %v2503 = vsub.s32 0, %v2502
        %v2504 = vrot.slane %v2499, %v2503
        %v2507 = vsel %vm725, %v2493, 0
        %v2510 = vsel %vm725, %v2494, 0
        %2512 = vmatprep.subr.mxu0 0.0
        %2513 = vmatpush1.msra.mxu0 0.0
        %2514 = vmatprep.subr.mxu0 0.0
        %2515 = vmatpush1.msra.mxu0 0.0
        %2516 = vmatprep.subr.mxu0 0.0
        %2517 = vmatpush1.msra.mxu0 0.0
        %2518 = vmatprep.subr.mxu0 0.0
        %2519 = vmatpush1.msra.mxu0 0.0
        %2520 = vmatprep.subr.mxu0 0.0
        %2521 = vmatpush1.msra.mxu0 0.0
        %2522 = vmatprep.subr.mxu0 0.0
        %2523 = vmatpush1.msra.mxu0 0.0
        %2524 = vmatprep.subr.mxu0 0.0
        %2525 = vmatpush1.msra.mxu0 0.0
        %2526 = vmatprep.subr.mxu0 0.0
        %2527 = vmatpush1.msra.mxu0 0.0
        %2528 = vmatprep.subr.mxu0 0.0
        %2529 = vmatpush1.msra.mxu0 0.0
        %2530 = vmatprep.subr.mxu0 0.0
        %2531 = vmatpush1.msra.mxu0 0.0
        %2532 = vmatprep.subr.mxu0 0.0
        %2533 = vmatpush1.msra.mxu0 0.0
        %2534 = vmatprep.subr.mxu0 0.0
        %2535 = vmatpush1.msra.mxu0 0.0
        %2536 = vmatprep.subr.mxu0 0.0
        %2537 = vmatpush1.msra.mxu0 %v2498
        %2538 = vmatprep.subr.mxu0 0.0
        %2539 = vmatpush1.msra.mxu0 %v2497
        %2540 = vmatprep.subr.mxu0 0.0
        %2541 = vmatpush1.msra.mxu0 %v2496
        %2542 = vmatprep.subr.mxu0 0.0
        %2543 = vmatpush1.msra.mxu0 %v2495
        %2544 = vmatprep.subr.mxu0 0.0
        %2545 = vmatpush2.msra.mxu0 0.0
        %2546 = vmatprep.subr.mxu0 0.0
        %2547 = vmatpush2.msra.mxu0 0.0
        %2548 = vmatprep.subr.mxu0 0.0
        %2549 = vmatpush2.msra.mxu0 0.0
        %2550 = vmatprep.subr.mxu0 0.0
        %2551 = vmatpush2.msra.mxu0 0.0
        %2552 = vmatprep.subr.mxu0 0.0
        %2553 = vmatpush2.msra.mxu0 0.0
        %2554 = vmatprep.subr.mxu0 0.0
        %2555 = vmatpush2.msra.mxu0 0.0
        %2556 = vmatprep.subr.mxu0 0.0
        %2557 = vmatpush2.msra.mxu0 0.0
        %2558 = vmatprep.subr.mxu0 0.0
        %2559 = vmatpush2.msra.mxu0 0.0
        %2560 = vmatprep.subr.mxu0 0.0
        %2561 = vmatpush2.msra.mxu0 0.0
        %2562 = vmatprep.subr.mxu0 0.0
        %2563 = vmatpush2.msra.mxu0 0.0
        %2564 = vmatprep.subr.mxu0 0.0
        %2565 = vmatpush2.msra.mxu0 0.0
        %2566 = vmatprep.subr.mxu0 0.0
        %2567 = vmatpush2.msra.mxu0 0.0
        %2568 = vmatprep.subr.mxu0 0.0
        %2569 = vmatpush2.msra.mxu0 0.0
        %2570 = vmatprep.subr.mxu0 0.0
        %2571 = vmatpush2.msra.mxu0 0.0
        %2572 = vmatprep.subr.mxu0 0.0
        %2573 = vmatpush2.msra.mxu0 0.0
        %2574 = vmatprep.subr.mxu0 0.0
        %2575 = vmatpush2.msra.mxu0 0.0
        %2576 = vmatprep.mubr.f32.mxu0 0.0
        %2577 = vmatmul.mubr.f32.gmra.mxu0 %v2507
        %v2578 = vpop.f32.mrf.mxu0
        %v2579 = vadd.f32 %v2504, %v2578
        %v2580 = vpop.f32.mrf.mxu0
        %2581 = vmatprep.mubr.f32.mxu0 0.0
        %2582 = vmatmul.mubr.f32.gmra.mxu0 %v2510
        %v2583 = vpop.f32.mrf.mxu0
        %v2584 = vadd.f32 %v2504, %v2583
        %v2585 = vpop.f32.mrf.mxu0
        %2586 = vdwg.mxu0
        %v2587 = vmax.f32 %v2579, 0.0
        %v2588 = vmax.f32 %v2584, 0.0
        %v2589 = vld [vmem:[%s6] sm:$0xff]
        %v2590 = vld [vmem:[%s6 + $0x8] sm:$0xff]
        %2592 = vset.pattern.permute.xlu0 0
        %2593 = vperm.xlu0 %2592, %v2589
        %v2594 = vpop.permute.xlu0 %2593
        %2597 = vset.pattern.permute.xlu0 0
        %2598 = vperm.xlu0 %2597, %v2590
        %v2599 = vpop.permute.xlu0 %2598
        %v2601 = vmul.f32 %v2587, %v2594
        %v2602 = vmul.f32 %v2588, %v2599
        %v2603 = vld [vmem:[%s7] sm:$0xff]
        %v2604 = vld [vmem:[%s7 + $0x8] sm:$0xff]
        %2606 = vset.pattern.permute.xlu0 0
        %2607 = vperm.xlu0 %2606, %v2603
        %v2608 = vpop.permute.xlu0 %2607
        %2611 = vset.pattern.permute.xlu0 0
        %2612 = vperm.xlu0 %2611, %v2604
        %v2613 = vpop.permute.xlu0 %2612
        %v2615 = vadd.f32 %v2601, %v2608
        %v2616 = vadd.f32 %v2602, %v2613
        %v2617 = vld [vmem:[%s8] sm:$0xff]
        %v2618 = vld [vmem:[%s8 + $0x8] sm:$0xff]
        %v2619 = vld [vmem:[%s8 + $0x10] sm:$0xff]
        %v2620 = vld [vmem:[%s8 + $0x18] sm:$0xff]
        %v2621 = vld [vmem:[%s9] sm:$0x1]
        %v2623 = vlaneseq
        %v2624 = vshrl.u32 %v2623, 7
        %v2625 = vsub.s32 0, %v2624
        %v2626 = vrot.slane %v2621, %v2625
        %v2629 = vsel %vm725, %v2615, 0
        %v2632 = vsel %vm725, %v2616, 0
        %2634 = vmatprep.subr.mxu0 0.0
        %2635 = vmatpush1.msra.mxu0 0.0
        %2636 = vmatprep.subr.mxu0 0.0
        %2637 = vmatpush1.msra.mxu0 0.0
        %2638 = vmatprep.subr.mxu0 0.0
        %2639 = vmatpush1.msra.mxu0 0.0
        %2640 = vmatprep.subr.mxu0 0.0
        %2641 = vmatpush1.msra.mxu0 0.0
        %2642 = vmatprep.subr.mxu0 0.0
        %2643 = vmatpush1.msra.mxu0 0.0
        %2644 = vmatprep.subr.mxu0 0.0
        %2645 = vmatpush1.msra.mxu0 0.0
        %2646 = vmatprep.subr.mxu0 0.0
        %2647 = vmatpush1.msra.mxu0 0.0
        %2648 = vmatprep.subr.mxu0 0.0
        %2649 = vmatpush1.msra.mxu0 0.0
        %2650 = vmatprep.subr.mxu0 0.0
        %2651 = vmatpush1.msra.mxu0 0.0
        %2652 = vmatprep.subr.mxu0 0.0
        %2653 = vmatpush1.msra.mxu0 0.0
        %2654 = vmatprep.subr.mxu0 0.0
        %2655 = vmatpush1.msra.mxu0 0.0
        %2656 = vmatprep.subr.mxu0 0.0
        %2657 = vmatpush1.msra.mxu0 0.0
        %2658 = vmatprep.subr.mxu0 0.0
        %2659 = vmatpush1.msra.mxu0 %v2620
        %2660 = vmatprep.subr.mxu0 0.0
        %2661 = vmatpush1.msra.mxu0 %v2619
        %2662 = vmatprep.subr.mxu0 0.0
        %2663 = vmatpush1.msra.mxu0 %v2618
        %2664 = vmatprep.subr.mxu0 0.0
        %2665 = vmatpush1.msra.mxu0 %v2617
        %2666 = vmatprep.subr.mxu0 0.0
        %2667 = vmatpush2.msra.mxu0 0.0
        %2668 = vmatprep.subr.mxu0 0.0
        %2669 = vmatpush2.msra.mxu0 0.0
        %2670 = vmatprep.subr.mxu0 0.0
        %2671 = vmatpush2.msra.mxu0 0.0
        %2672 = vmatprep.subr.mxu0 0.0
        %2673 = vmatpush2.msra.mxu0 0.0
        %2674 = vmatprep.subr.mxu0 0.0
        %2675 = vmatpush2.msra.mxu0 0.0
        %2676 = vmatprep.subr.mxu0 0.0
        %2677 = vmatpush2.msra.mxu0 0.0
        %2678 = vmatprep.subr.mxu0 0.0
        %2679 = vmatpush2.msra.mxu0 0.0
        %2680 = vmatprep.subr.mxu0 0.0
        %2681 = vmatpush2.msra.mxu0 0.0
        %2682 = vmatprep.subr.mxu0 0.0
        %2683 = vmatpush2.msra.mxu0 0.0
        %2684 = vmatprep.subr.mxu0 0.0
        %2685 = vmatpush2.msra.mxu0 0.0
        %2686 = vmatprep.subr.mxu0 0.0
        %2687 = vmatpush2.msra.mxu0 0.0
        %2688 = vmatprep.subr.mxu0 0.0
        %2689 = vmatpush2.msra.mxu0 0.0
        %2690 = vmatprep.subr.mxu0 0.0
        %2691 = vmatpush2.msra.mxu0 0.0
        %2692 = vmatprep.subr.mxu0 0.0
        %2693 = vmatpush2.msra.mxu0 0.0
        %2694 = vmatprep.subr.mxu0 0.0
        %2695 = vmatpush2.msra.mxu0 0.0
        %2696 = vmatprep.subr.mxu0 0.0
        %2697 = vmatpush2.msra.mxu0 0.0
        %2698 = vmatprep.mubr.f32.mxu0 0.0
        %2699 = vmatmul.mubr.f32.gmra.mxu0 %v2629
        %v2700 = vpop.f32.mrf.mxu0
        %v2701 = vadd.f32 %v2626, %v2700
        %v2702 = vpop.f32.mrf.mxu0
        %2703 = vmatprep.mubr.f32.mxu0 0.0
        %2704 = vmatmul.mubr.f32.gmra.mxu0 %v2632
        %v2705 = vpop.f32.mrf.mxu0
        %v2706 = vadd.f32 %v2626, %v2705
        %v2707 = vpop.f32.mrf.mxu0
        %2708 = vdwg.mxu0
        %v2709 = vmax.f32 %v2701, 0.0
        %v2710 = vmax.f32 %v2706, 0.0
        %v2711 = vld [vmem:[%s10] sm:$0xff]
        %v2712 = vld [vmem:[%s10 + $0x8] sm:$0xff]
        %v2713 = vld [vmem:[%s10 + $0x10] sm:$0xff]
        %v2714 = vld [vmem:[%s10 + $0x18] sm:$0xff]
        %v2715 = vld [vmem:[%s10 + $0x20] sm:$0xff]
        %v2716 = vld [vmem:[%s10 + $0x28] sm:$0xff]
        %v2717 = vld [vmem:[%s10 + $0x30] sm:$0xff]
        %v2718 = vld [vmem:[%s10 + $0x38] sm:$0xff]
        %v2719 = vld [vmem:[%s11] sm:$0xff]
        %v2720 = vld [vmem:[%s11 + $0x8] sm:$0xff]
        %v2721 = vld [vmem:[%s11 + $0x10] sm:$0xff]
        %v2722 = vld [vmem:[%s11 + $0x18] sm:$0xff]
        %v2723 = vld [vmem:[%s11 + $0x20] sm:$0xff]
        %v2724 = vld [vmem:[%s11 + $0x28] sm:$0xff]
        %v2725 = vld [vmem:[%s11 + $0x30] sm:$0xff]
        %v2726 = vld [vmem:[%s11 + $0x38] sm:$0xff]
        %2728 = vset.pattern.permute.xlu0 0
        %2729 = vperm.xlu0 %2728, %v2719
        %v2730 = vpop.permute.xlu0 %2729
        %2733 = vset.pattern.permute.xlu0 0
        %2734 = vperm.xlu0 %2733, %v2720
        %v2735 = vpop.permute.xlu0 %2734
        %2738 = vset.pattern.permute.xlu0 0
        %2739 = vperm.xlu0 %2738, %v2721
        %v2740 = vpop.permute.xlu0 %2739
        %2743 = vset.pattern.permute.xlu0 0
        %2744 = vperm.xlu0 %2743, %v2722
        %v2745 = vpop.permute.xlu0 %2744
        %2748 = vset.pattern.permute.xlu0 0
        %2749 = vperm.xlu0 %2748, %v2723
        %v2750 = vpop.permute.xlu0 %2749
        %2753 = vset.pattern.permute.xlu0 0
        %2754 = vperm.xlu0 %2753, %v2724
        %v2755 = vpop.permute.xlu0 %2754
        %2758 = vset.pattern.permute.xlu0 0
        %2759 = vperm.xlu0 %2758, %v2725
        %v2760 = vpop.permute.xlu0 %2759
        %2763 = vset.pattern.permute.xlu0 0
        %2764 = vperm.xlu0 %2763, %v2726
        %v2765 = vpop.permute.xlu0 %2764
        %vm2767 = vcmask 130048
        %v2769 = vsel %vm2767, %v2711, 0
        %v2772 = vsel %vm2767, %v2712, 0
        %v2775 = vsel %vm2767, %v2713, 0
        %v2778 = vsel %vm2767, %v2714, 0
        %v2781 = vsel %vm2767, %v2715, 0
        %v2784 = vsel %vm2767, %v2716, 0
        %v2787 = vsel %vm2767, %v2717, 0
        %v2790 = vsel %vm2767, %v2718, 0
        %2792 = vmatprep.subr.mxu0 0.0
        %2793 = vmatpush1.msra.mxu0 0.0
        %2794 = vmatprep.subr.mxu0 0.0
        %2795 = vmatpush1.msra.mxu0 0.0
        %2796 = vmatprep.subr.mxu0 0.0
        %2797 = vmatpush1.msra.mxu0 0.0
        %2798 = vmatprep.subr.mxu0 0.0
        %2799 = vmatpush1.msra.mxu0 0.0
        %2800 = vmatprep.subr.mxu0 0.0
        %2801 = vmatpush1.msra.mxu0 0.0
        %2802 = vmatprep.subr.mxu0 0.0
        %2803 = vmatpush1.msra.mxu0 0.0
        %2804 = vmatprep.subr.mxu0 0.0
        %2805 = vmatpush1.msra.mxu0 0.0
        %2806 = vmatprep.subr.mxu0 0.0
        %2807 = vmatpush1.msra.mxu0 0.0
        %2808 = vmatprep.subr.mxu0 0.0
        %2809 = vmatpush1.msra.mxu0 0.0
        %2810 = vmatprep.subr.mxu0 0.0
        %2811 = vmatpush1.msra.mxu0 0.0
        %2812 = vmatprep.subr.mxu0 0.0
        %2813 = vmatpush1.msra.mxu0 0.0
        %2814 = vmatprep.subr.mxu0 0.0
        %2815 = vmatpush1.msra.mxu0 0.0
        %2816 = vmatprep.subr.mxu0 0.0
        %2817 = vmatpush1.msra.mxu0 0.0
        %2818 = vmatprep.subr.mxu0 0.0
        %2819 = vmatpush1.msra.mxu0 0.0
        %2820 = vmatprep.subr.mxu0 0.0
        %2821 = vmatpush1.msra.mxu0 %v2710
        %2822 = vmatprep.subr.mxu0 0.0
        %2823 = vmatpush1.msra.mxu0 %v2709
        %2824 = vmatprep.subr.mxu0 0.0
        %2825 = vmatpush2.msra.mxu0 0.0
        %2826 = vmatprep.subr.mxu0 0.0
        %2827 = vmatpush2.msra.mxu0 0.0
        %2828 = vmatprep.subr.mxu0 0.0
        %2829 = vmatpush2.msra.mxu0 0.0
        %2830 = vmatprep.subr.mxu0 0.0
        %2831 = vmatpush2.msra.mxu0 0.0
        %2832 = vmatprep.subr.mxu0 0.0
        %2833 = vmatpush2.msra.mxu0 0.0
        %2834 = vmatprep.subr.mxu0 0.0
        %2835 = vmatpush2.msra.mxu0 0.0
        %2836 = vmatprep.subr.mxu0 0.0
        %2837 = vmatpush2.msra.mxu0 0.0
        %2838 = vmatprep.subr.mxu0 0.0
        %2839 = vmatpush2.msra.mxu0 0.0
        %2840 = vmatprep.subr.mxu0 0.0
        %2841 = vmatpush2.msra.mxu0 0.0
        %2842 = vmatprep.subr.mxu0 0.0
        %2843 = vmatpush2.msra.mxu0 0.0
        %2844 = vmatprep.subr.mxu0 0.0
        %2845 = vmatpush2.msra.mxu0 0.0
        %2846 = vmatprep.subr.mxu0 0.0
        %2847 = vmatpush2.msra.mxu0 0.0
        %2848 = vmatprep.subr.mxu0 0.0
        %2849 = vmatpush2.msra.mxu0 0.0
        %2850 = vmatprep.subr.mxu0 0.0
        %2851 = vmatpush2.msra.mxu0 0.0
        %2852 = vmatprep.subr.mxu0 0.0
        %2853 = vmatpush2.msra.mxu0 0.0
        %2854 = vmatprep.subr.mxu0 0.0
        %2855 = vmatpush2.msra.mxu0 0.0
        %2856 = vmatprep.mubr.f32.mxu0 0.0
        %2857 = vmatmul.mubr.f32.gmra.mxu0 %v2769
        %v2858 = vpop.f32.mrf.mxu0
        %v2859 = vadd.f32 %v2730, %v2858
        %v2860 = vpop.f32.mrf.mxu0
        %2861 = vmatprep.mubr.f32.mxu0 0.0
        %2862 = vmatmul.mubr.f32.gmra.mxu0 %v2772
        %v2863 = vpop.f32.mrf.mxu0
        %v2864 = vadd.f32 %v2735, %v2863
        %v2865 = vpop.f32.mrf.mxu0
        %2866 = vmatprep.mubr.f32.mxu0 0.0
        %2867 = vmatmul.mubr.f32.gmra.mxu0 %v2775
        %v2868 = vpop.f32.mrf.mxu0
        %v2869 = vadd.f32 %v2740, %v2868
        %v2870 = vpop.f32.mrf.mxu0
        %2871 = vmatprep.mubr.f32.mxu0 0.0
        %2872 = vmatmul.mubr.f32.gmra.mxu0 %v2778
        %v2873 = vpop.f32.mrf.mxu0
        %v2874 = vadd.f32 %v2745, %v2873
        %v2875 = vpop.f32.mrf.mxu0
        %2876 = vmatprep.mubr.f32.mxu0 0.0
        %2877 = vmatmul.mubr.f32.gmra.mxu0 %v2781
        %v2878 = vpop.f32.mrf.mxu0
        %v2879 = vadd.f32 %v2750, %v2878
        %v2880 = vpop.f32.mrf.mxu0
        %2881 = vmatprep.mubr.f32.mxu0 0.0
        %2882 = vmatmul.mubr.f32.gmra.mxu0 %v2784
        %v2883 = vpop.f32.mrf.mxu0
        %v2884 = vadd.f32 %v2755, %v2883
        %v2885 = vpop.f32.mrf.mxu0
        %2886 = vmatprep.mubr.f32.mxu0 0.0
        %2887 = vmatmul.mubr.f32.gmra.mxu0 %v2787
        %v2888 = vpop.f32.mrf.mxu0
        %v2889 = vadd.f32 %v2760, %v2888
        %v2890 = vpop.f32.mrf.mxu0
        %2891 = vmatprep.mubr.f32.mxu0 0.0
        %2892 = vmatmul.mubr.f32.gmra.mxu0 %v2790
        %v2893 = vpop.f32.mrf.mxu0
        %v2894 = vadd.f32 %v2765, %v2893
        %v2895 = vpop.f32.mrf.mxu0
        %2896 = vdwg.mxu0
        %v2897 = vmax.f32 %v2859, 0.0
        %v2898 = vmax.f32 %v2864, 0.0
        %v2899 = vmax.f32 %v2869, 0.0
        %v2900 = vmax.f32 %v2874, 0.0
        %v2901 = vmax.f32 %v2879, 0.0
        %v2902 = vmax.f32 %v2884, 0.0
        %v2903 = vmax.f32 %v2889, 0.0
        %v2904 = vmax.f32 %v2894, 0.0
        %v2905 = vld [vmem:[%s12] sm:$0x1]
        %v2907 = vlaneseq
        %v2908 = vshrl.u32 %v2907, 7
        %v2909 = vsub.s32 0, %v2908
        %v2910 = vrot.slane %v2905, %v2909
        %v2912 = vmul.f32 %v2897, %v2910
        %v2913 = vmul.f32 %v2898, %v2910
        %v2914 = vmul.f32 %v2899, %v2910
        %v2915 = vmul.f32 %v2900, %v2910
        %v2916 = vmul.f32 %v2901, %v2910
        %v2917 = vmul.f32 %v2902, %v2910
        %v2918 = vmul.f32 %v2903, %v2910
        %v2919 = vmul.f32 %v2904, %v2910
        %v2920 = vld [vmem:[%s13] sm:$0x1]
        %v2922 = vlaneseq
        %v2923 = vshrl.u32 %v2922, 7
        %v2924 = vsub.s32 0, %v2923
        %v2925 = vrot.slane %v2920, %v2924
        %v2927 = vadd.f32 %v2912, %v2925
        %v2928 = vadd.f32 %v2913, %v2925
        %v2929 = vadd.f32 %v2914, %v2925
        %v2930 = vadd.f32 %v2915, %v2925
        %v2931 = vadd.f32 %v2916, %v2925
        %v2932 = vadd.f32 %v2917, %v2925
        %v2933 = vadd.f32 %v2918, %v2925
        %v2934 = vadd.f32 %v2919, %v2925
        %v2935 = vld [vmem:[%s14] sm:$0xff]
        %v2936 = vld [vmem:[%s14 + $0x8] sm:$0xff]
        %v2937 = vld [vmem:[%s15] sm:$0xff]
        %v2938 = vld [vmem:[%s15 + $0x8] sm:$0xff]
        %2940 = vset.pattern.permute.xlu0 0
        %2941 = vperm.xlu0 %2940, %v2937
        %v2942 = vpop.permute.xlu0 %2941
        %2945 = vset.pattern.permute.xlu0 0
        %2946 = vperm.xlu0 %2945, %v2938
        %v2947 = vpop.permute.xlu0 %2946
        %vm2949 = vcmask 523264
        %v2951 = vsel %vm2949, %v2935, 0
        %v2954 = vsel %vm2949, %v2936, 0
        %2956 = vmatprep.subr.mxu0 0.0
        %2957 = vmatpush1.msra.mxu0 0.0
        %2958 = vmatprep.subr.mxu0 0.0
        %2959 = vmatpush1.msra.mxu0 0.0
        %2960 = vmatprep.subr.mxu0 0.0
        %2961 = vmatpush1.msra.mxu0 0.0
        %2962 = vmatprep.subr.mxu0 0.0
        %2963 = vmatpush1.msra.mxu0 0.0
        %2964 = vmatprep.subr.mxu0 0.0
        %2965 = vmatpush1.msra.mxu0 0.0
        %2966 = vmatprep.subr.mxu0 0.0
        %2967 = vmatpush1.msra.mxu0 0.0
        %2968 = vmatprep.subr.mxu0 0.0
        %2969 = vmatpush1.msra.mxu0 0.0
        %2970 = vmatprep.subr.mxu0 0.0
        %2971 = vmatpush1.msra.mxu0 0.0
        %2972 = vmatprep.subr.mxu0 0.0
        %2973 = vmatpush1.msra.mxu0 %v2934
        %2974 = vmatprep.subr.mxu0 0.0
        %2975 = vmatpush1.msra.mxu0 %v2933
        %2976 = vmatprep.subr.mxu0 0.0
        %2977 = vmatpush1.msra.mxu0 %v2932
        %2978 = vmatprep.subr.mxu0 0.0
        %2979 = vmatpush1.msra.mxu0 %v2931
        %2980 = vmatprep.subr.mxu0 0.0
        %2981 = vmatpush1.msra.mxu0 %v2930
        %2982 = vmatprep.subr.mxu0 0.0
        %2983 = vmatpush1.msra.mxu0 %v2929
        %2984 = vmatprep.subr.mxu0 0.0
        %2985 = vmatpush1.msra.mxu0 %v2928
        %2986 = vmatprep.subr.mxu0 0.0
        %2987 = vmatpush1.msra.mxu0 %v2927
        %2988 = vmatprep.subr.mxu0 0.0
        %2989 = vmatpush2.msra.mxu0 0.0
        %2990 = vmatprep.subr.mxu0 0.0
        %2991 = vmatpush2.msra.mxu0 0.0
        %2992 = vmatprep.subr.mxu0 0.0
        %2993 = vmatpush2.msra.mxu0 0.0
        %2994 = vmatprep.subr.mxu0 0.0
        %2995 = vmatpush2.msra.mxu0 0.0
        %2996 = vmatprep.subr.mxu0 0.0
        %2997 = vmatpush2.msra.mxu0 0.0
        %2998 = vmatprep.subr.mxu0 0.0
        %2999 = vmatpush2.msra.mxu0 0.0
        %3000 = vmatprep.subr.mxu0 0.0
        %3001 = vmatpush2.msra.mxu0 0.0
        %3002 = vmatprep.subr.mxu0 0.0
        %3003 = vmatpush2.msra.mxu0 0.0
        %3004 = vmatprep.subr.mxu0 0.0
        %3005 = vmatpush2.msra.mxu0 0.0
        %3006 = vmatprep.subr.mxu0 0.0
        %3007 = vmatpush2.msra.mxu0 0.0
        %3008 = vmatprep.subr.mxu0 0.0
        %3009 = vmatpush2.msra.mxu0 0.0
        %3010 = vmatprep.subr.mxu0 0.0
        %3011 = vmatpush2.msra.mxu0 0.0
        %3012 = vmatprep.subr.mxu0 0.0
        %3013 = vmatpush2.msra.mxu0 0.0
        %3014 = vmatprep.subr.mxu0 0.0
        %3015 = vmatpush2.msra.mxu0 0.0
        %3016 = vmatprep.subr.mxu0 0.0
        %3017 = vmatpush2.msra.mxu0 0.0
        %3018 = vmatprep.subr.mxu0 0.0
        %3019 = vmatpush2.msra.mxu0 0.0
        %3020 = vmatprep.mubr.f32.mxu0 0.0
        %3021 = vmatmul.mubr.f32.gmra.mxu0 %v2951
        %v3022 = vpop.f32.mrf.mxu0
        %v3023 = vadd.f32 %v2942, %v3022
        %v3024 = vpop.f32.mrf.mxu0
        %3025 = vmatprep.mubr.f32.mxu0 0.0
        %3026 = vmatmul.mubr.f32.gmra.mxu0 %v2954
        %v3027 = vpop.f32.mrf.mxu0
        %v3028 = vadd.f32 %v2947, %v3027
        %v3029 = vpop.f32.mrf.mxu0
        %3030 = vdwg.mxu0
        %v3031 = vmax.f32 %v3023, 0.0
        %v3032 = vmax.f32 %v3028, 0.0
        %v3033 = vld [vmem:[%s16] sm:$0x1]
        %v3035 = vlaneseq
        %v3036 = vshrl.u32 %v3035, 7
        %v3037 = vsub.s32 0, %v3036
        %v3038 = vrot.slane %v3033, %v3037
        %v3040 = vmul.f32 %v3031, %v3038
        %v3041 = vmul.f32 %v3032, %v3038
        %v3042 = vld [vmem:[%s17] sm:$0x1]
        %v3044 = vlaneseq
        %v3045 = vshrl.u32 %v3044, 7
        %v3046 = vsub.s32 0, %v3045
        %v3047 = vrot.slane %v3042, %v3046
        %v3049 = vadd.f32 %v3040, %v3047
        %v3050 = vadd.f32 %v3041, %v3047
        %v3051 = vld [vmem:[%s18] sm:$0x1]
        %v3052 = vld [vmem:[#allocation3] sm:$0x1]
        %3054 = vset.pattern.permute.xlu0 0
        %3055 = vperm.xlu0 %3054, %v3052
        %v3056 = vpop.permute.xlu0 %3055
        %v3058 = vlaneseq
        %v3059 = vshrl.u32 %v3058, 7
        %v3060 = vsub.s32 0, %v3059
        %v3061 = vrot.slane %v3056, %v3060
        %v3063 = vsel %vm2767, %v3051, 0
        %3065 = vmatprep.subr.mxu0 0.0
        %3066 = vmatpush1.msra.mxu0 0.0
        %3067 = vmatprep.subr.mxu0 0.0
        %3068 = vmatpush1.msra.mxu0 0.0
        %3069 = vmatprep.subr.mxu0 0.0
        %3070 = vmatpush1.msra.mxu0 0.0
        %3071 = vmatprep.subr.mxu0 0.0
        %3072 = vmatpush1.msra.mxu0 0.0
        %3073 = vmatprep.subr.mxu0 0.0
        %3074 = vmatpush1.msra.mxu0 0.0
        %3075 = vmatprep.subr.mxu0 0.0
        %3076 = vmatpush1.msra.mxu0 0.0
        %3077 = vmatprep.subr.mxu0 0.0
        %3078 = vmatpush1.msra.mxu0 0.0
        %3079 = vmatprep.subr.mxu0 0.0
        %3080 = vmatpush1.msra.mxu0 0.0
        %3081 = vmatprep.subr.mxu0 0.0
        %3082 = vmatpush1.msra.mxu0 0.0
        %3083 = vmatprep.subr.mxu0 0.0
        %3084 = vmatpush1.msra.mxu0 0.0
        %3085 = vmatprep.subr.mxu0 0.0
        %3086 = vmatpush1.msra.mxu0 0.0
        %3087 = vmatprep.subr.mxu0 0.0
        %3088 = vmatpush1.msra.mxu0 0.0
        %3089 = vmatprep.subr.mxu0 0.0
        %3090 = vmatpush1.msra.mxu0 0.0
        %3091 = vmatprep.subr.mxu0 0.0
        %3092 = vmatpush1.msra.mxu0 0.0
        %3093 = vmatprep.subr.mxu0 0.0
        %3094 = vmatpush1.msra.mxu0 %v3050
        %3095 = vmatprep.subr.mxu0 0.0
        %3096 = vmatpush1.msra.mxu0 %v3049
        %3097 = vmatprep.subr.mxu0 0.0
        %3098 = vmatpush2.msra.mxu0 0.0
        %3099 = vmatprep.subr.mxu0 0.0
        %3100 = vmatpush2.msra.mxu0 0.0
        %3101 = vmatprep.subr.mxu0 0.0
        %3102 = vmatpush2.msra.mxu0 0.0
        %3103 = vmatprep.subr.mxu0 0.0
        %3104 = vmatpush2.msra.mxu0 0.0
        %3105 = vmatprep.subr.mxu0 0.0
        %3106 = vmatpush2.msra.mxu0 0.0
        %3107 = vmatprep.subr.mxu0 0.0
        %3108 = vmatpush2.msra.mxu0 0.0
        %3109 = vmatprep.subr.mxu0 0.0
        %3110 = vmatpush2.msra.mxu0 0.0
        %3111 = vmatprep.subr.mxu0 0.0
        %3112 = vmatpush2.msra.mxu0 0.0
        %3113 = vmatprep.subr.mxu0 0.0
        %3114 = vmatpush2.msra.mxu0 0.0
        %3115 = vmatprep.subr.mxu0 0.0
        %3116 = vmatpush2.msra.mxu0 0.0
        %3117 = vmatprep.subr.mxu0 0.0
        %3118 = vmatpush2.msra.mxu0 0.0
        %3119 = vmatprep.subr.mxu0 0.0
        %3120 = vmatpush2.msra.mxu0 0.0
        %3121 = vmatprep.subr.mxu0 0.0
        %3122 = vmatpush2.msra.mxu0 0.0
        %3123 = vmatprep.subr.mxu0 0.0
        %3124 = vmatpush2.msra.mxu0 0.0
        %3125 = vmatprep.subr.mxu0 0.0
        %3126 = vmatpush2.msra.mxu0 0.0
        %3127 = vmatprep.subr.mxu0 0.0
        %3128 = vmatpush2.msra.mxu0 0.0
        %3129 = vmatprep.mubr.f32.mxu0 0.0
        %3130 = vmatmul.mubr.f32.gmra.mxu0 %v3063
        %v3131 = vpop.f32.mrf.mxu0
        %v3132 = vadd.f32 %v3061, %v3131
        %v3133 = vpop.f32.mrf.mxu0
        %3134 = vdwg.mxu0
        %v3135 = vmax.f32 %v3132, 0.0
        %vm3136 = vcmask 8192
        %3137 = vst.msk [vmem:[%s623] sm:$0x1] %vm3136, %v3135
        %s3138 = sand.u32 %s469, 1
        %s3139 = scalar_lea.sflag [#allocation5], %s3138
        %s3140 = sand.u32 %s469, 1
        %s3141 = scalar_lea.vmem [#allocation4], %s3140
        // Predicated region
        $region101: #{tpu_custom_call.1} parent=99 // pred_check
          %p3142 = pneg %p479
        $region102: #{tpu_custom_call.1} parent=99 // pred_check_branch
          %3144 = sbr.rel (%p3142) target = $region104
        $region103: #{tpu_custom_call.1} parent=99 // pred_region
          %s3146 = ssub.s32 16, 16
          %3147 = vsyncadd %s3139, %s3146
          %s3148 = smul.addr %s36, 16
          %s3149 = scalar_lea.hbm %s20, %s3148
          %s3151 = sshll.u32 %s3141, 4
          %s3152 = int_to_ptr.vmem [resolvable:$true] %s3151
          %3154 = dma.vmem_to_hbm [thread:$0]  %s3152, 16, %s3149, %s3139
        $region104: #{tpu_custom_call.1} parent=99 // pred_fallthru
          _
      $region100: #{tpu_custom_call.1} parent=5 // pred_fallthru
        _
      %p3155 = scmp.le.s32.totalorder 2, %s31
      // Predicated region
      $region105: #{tpu_custom_call.1} parent=5 // pred_check
        %p3156 = pneg %p3155
      $region106: #{tpu_custom_call.1} parent=5 // pred_check_branch
        %3158 = sbr.rel (%p3156) target = $region108
      $region107: #{tpu_custom_call.1} parent=5 // pred_region
        %s3159 = ssub.s32 %s31, 2
        // Predicated region
        $region109: #{tpu_custom_call.1} parent=107 // pred_check
          %p3160 = pneg %p485
        $region110: #{tpu_custom_call.1} parent=107 // pred_check_branch
          %3162 = sbr.rel (%p3160) target = $region112
        $region111: #{tpu_custom_call.1} parent=107 // pred_region
          %s3163 = sand.u32 %s470, 1
          %s3164 = scalar_lea.sflag [#allocation5], %s3163
          %s3165 = sand.u32 %s470, 1
          %s3166 = scalar_lea.vmem [#allocation4], %s3165
          %3167 = dma.done %s3164, 16
        $region112: #{tpu_custom_call.1} parent=107 // pred_fallthru
          _
      $region108: #{tpu_custom_call.1} parent=5 // pred_fallthru
        _
    $region6: #{tpu_custom_call.1} parent=1 // loop_footer
      %s35 = sadd.s32 1, %s31
    $region7: #{tpu_custom_call.1} parent=1 // loop_footer_branch
      %30 = sbr.rel target = $region3
    $region8: #{tpu_custom_call.1} parent=1 // loop_exit
      _
    %3168 = vsyncpa [#allocation5], 1
    %s3169 = scalar_lea.sflag [#allocation5], 1
    %3170 = vsyncpa %s3169, 1

</llo_original>
